<compile_context>
chip_gen: v7x
topology: tpu7x:2x2x1
jax: 0.10.0
libtpu: 0.0.40
codegen_flags: <defaults>
</compile_context>

<pallas_src>
import jax
import jax.numpy as jnp
from jax.experimental import pallas as pl
from jax.experimental.pallas import tpu as pltpu

EPS = 1e-5


def _pick_batch_block(B, C, Lp, target_bytes=1 << 20):
    """Batch block that divides B, is a multiple of 8 sublanes (or == B),
    keeps one data tile near `target_bytes`, and leaves >=2 grid blocks when
    the batch allows it (feeds both v7x TensorCores)."""
    per_row = max(1, C * Lp * 4)
    want = max(1, target_bytes // per_row)
    if B >= 16:                               # keep at least 2 parallel blocks
        want = min(want, max(8, B // 2))
    want = min(int(want), B)
    for bb in range(want, 0, -1):
        if B % bb == 0 and (bb % 8 == 0 or bb == B):
            return bb
    return B


def resblock_forward(x, params, *, target_block_bytes=1 << 20):
    """x: (B, C, L) float32 (PyTorch NCL, L even / pre-padded) -> (B, C, L//2)."""
    B, C, L = x.shape
    assert L % 2 == 0, "module expects a pre-padded even sequence length"
    Lp = L // 2
    w1, b1, g1, bt1, w2, b2, g2, bt2 = params

    bb = _pick_batch_block(B, C, Lp, target_block_bytes)
    nb = B // bb
    inv_n = 1.0 / float(B * Lp)               # BatchNorm count (biased stats)

    # ---- layout plumbing (XLA): channel-major, batch on sublanes, L on lanes.
    xt = jnp.transpose(x, (1, 0, 2))          # (C, B, L)
    xe = xt[:, :, 0::2]                       # (C, B, Lp)  x[..., 2i]
    xo = xt[:, :, 1::2]                       # (C, B, Lp)  x[..., 2i+1]

    # conv weights as flat SMEM scalars, layout [k, c_out, c_in]
    w1f = jnp.transpose(w1, (2, 0, 1)).reshape(-1)
    w2f = jnp.transpose(w2, (2, 0, 1)).reshape(-1)

    # ------------------------------ kernels ----------------------------------
    def _lane_masks(bbk, lpk):
        lane = jax.lax.broadcasted_iota(jnp.int32, (bbk, lpk), 1)
        return lane == 0, lane == lpk - 1

    def _shift_prev(a, first):
        # out[..., l] = a[..., l-1], zero at l == 0 (conv left zero-pad)
        return jnp.where(first, 0.0, pltpu.roll(a, 1, 1))

    def _shift_next(a, last):
        # out[..., l] = a[..., l+1], zero at l == L-1 (conv right pad / pool tap)
        return jnp.where(last, 0.0, pltpu.roll(a, a.shape[1] - 1, 1))

    def _conv3_emit(h, hp, hn, w_ref, b_ref, y_ref, st_ref):
        """Conv1d(k=3, pad=1) as scalar*vector VPU MACs on dense (bb, Lp) slabs.
        Also emits per-tile BN partial stats (sum, sumsq) per channel."""
        Cc = len(h)
        row = jax.lax.broadcasted_iota(jnp.int32, (1, 2, Cc), 1)
        col = jax.lax.broadcasted_iota(jnp.int32, (1, 2, Cc), 2)
        st = jnp.zeros((1, 2, Cc), jnp.float32)
        for co in range(Cc):
            acc = None
            for ci in range(Cc):
                t = (w_ref[(0 * Cc + co) * Cc + ci] * hp[ci]
                     + w_ref[(1 * Cc + co) * Cc + ci] * h[ci]
                     + w_ref[(2 * Cc + co) * Cc + ci] * hn[ci])
                acc = t if acc is None else acc + t
            acc = acc + b_ref[co]
            y_ref[co] = acc
            s = jnp.sum(acc, keepdims=True)           # (1, 1)
            q = jnp.sum(acc * acc, keepdims=True)     # (1, 1)
            st = jnp.where((row == 0) & (col == co), s, st)
            st = jnp.where((row == 1) & (col == co), q, st)
        st_ref[...] = st

    def _bn_scale_shift(st_ref, g_ref, bt_ref, c, Cc):
        """Training-mode BatchNorm1d as (1,1) scale/shift from global sums."""
        s11 = jnp.full((1, 1), st_ref[c], jnp.float32)
        q11 = jnp.full((1, 1), st_ref[Cc + c], jnp.float32)
        mean11 = s11 * inv_n
        var11 = jnp.maximum(q11 * inv_n - mean11 * mean11, 0.0)   # clamp >= 0
        scale11 = jnp.full((1, 1), g_ref[c], jnp.float32) * jax.lax.rsqrt(var11 + EPS)
        shift11 = jnp.full((1, 1), bt_ref[c], jnp.float32) - mean11 * scale11
        return scale11, shift11

    def stage1_kernel(xe_ref, xo_ref, w_ref, b_ref, y1_ref, st1_ref):
        Cc, bbk, lpk = xe_ref.shape
        first, last = _lane_masks(bbk, lpk)           # hoisted, reused by all shifts
        h, hp, hn = [], [], []
        for c in range(Cc):
            xe_c = xe_ref[c]
            # MaxPool1d(k=3, s=2) over F.pad(x, (0,1)): taps x[2i], x[2i+1], x[2i+2]
            pool_c = jnp.maximum(jnp.maximum(xe_c, xo_ref[c]), _shift_next(xe_c, last))
            r = jnp.maximum(pool_c, 0.0)              # ReLU
            h.append(r)
            hp.append(_shift_prev(r, first))
            hn.append(_shift_next(r, last))
        _conv3_emit(h, hp, hn, w_ref, b_ref, y1_ref, st1_ref)

    def stage2_kernel(y1_ref, st_ref, g_ref, bt_ref, w_ref, b_ref, y2_ref, st2_ref):
        Cc, bbk, lpk = y1_ref.shape
        first, last = _lane_masks(bbk, lpk)
        h, hp, hn = [], [], []
        for c in range(Cc):
            scale11, shift11 = _bn_scale_shift(st_ref, g_ref, bt_ref, c, Cc)
            r = jnp.maximum(y1_ref[c] * scale11 + shift11, 0.0)   # BN1 + ReLU
            h.append(r)
            hp.append(_shift_prev(r, first))
            hn.append(_shift_next(r, last))
        _conv3_emit(h, hp, hn, w_ref, b_ref, y2_ref, st2_ref)

    def stage3_kernel(xe_ref, xo_ref, y2_ref, st_ref, g_ref, bt_ref, out_ref):
        Cc, bbk, lpk = xe_ref.shape
        _, last = _lane_masks(bbk, lpk)
        for c in range(Cc):
            xe_c = xe_ref[c]
            # recompute pool (cheaper than an HBM round-trip of the pool tensor)
            pool_c = jnp.maximum(jnp.maximum(xe_c, xo_ref[c]), _shift_next(xe_c, last))
            scale11, shift11 = _bn_scale_shift(st_ref, g_ref, bt_ref, c, Cc)
            out_ref[c] = pool_c + y2_ref[c] * scale11 + shift11   # residual add

    # ------------------------------- wiring -----------------------------------
    data = pl.BlockSpec((C, bb, Lp), lambda i: (0, i, 0))
    stat = pl.BlockSpec((1, 2, C), lambda i: (i, 0, 0))
    smem = pl.BlockSpec(memory_space=pltpu.MemorySpace.SMEM)
    cparams = pltpu.CompilerParams(
        dimension_semantics=("parallel",),
        vmem_limit_bytes=48 * 1024 * 1024)
    f32 = jnp.float32
    data_shape = jax.ShapeDtypeStruct((C, B, Lp), f32)
    stat_shape = jax.ShapeDtypeStruct((nb, 2, C), f32)

    # stage 1: maxpool + relu + conv1 (+ per-tile BN1 stats); pool NOT written.
    y1, st1 = pl.pallas_call(
        stage1_kernel,
        out_shape=(data_shape, stat_shape),
        grid=(nb,),
        in_specs=[data, data, smem, smem],
        out_specs=(data, stat),
        compiler_params=cparams,
    )(xe, xo, w1f, b1)
    st1r = jnp.sum(st1, axis=0).reshape(-1)            # (2*C,) global BN1 sums

    # stage 2: BN1 + relu + conv2 (+ per-tile BN2 stats)
    y2, st2 = pl.pallas_call(
        stage2_kernel,
        out_shape=(data_shape, stat_shape),
        grid=(nb,),
        in_specs=[data, smem, smem, smem, smem, smem],
        out_specs=(data, stat),
        compiler_params=cparams,
    )(y1, st1r, g1, bt1, w2f, b2)
    st2r = jnp.sum(st2, axis=0).reshape(-1)            # (2*C,) global BN2 sums

    # stage 3: recompute pool + BN2 + residual add
    out_cbl = pl.pallas_call(
        stage3_kernel,
        out_shape=data_shape,
        grid=(nb,),
        in_specs=[data, data, data, smem, smem, smem],
        out_specs=data,
        compiler_params=cparams,
    )(xe, xo, y2, st2r, g2, bt2)

    return jnp.transpose(out_cbl, (1, 0, 2))           # back to PyTorch NCL


# ------------------------------ pure-JAX reference -----------------------------

def ref_forward(x, w1, b1, g1, bb1, w2, b2, g2, bb2):
    """Mirrors the PyTorch forward (training-mode BN, biased stats)."""
    B, C, L = x.shape
    Lp = L // 2
    pad_x = jnp.pad(x, ((0, 0), (0, 0), (0, 1)))       # F.pad(x, (0, 1))
    pool = jnp.maximum(
        jnp.maximum(pad_x[:, :, 0:2 * Lp:2], pad_x[:, :, 1:2 * Lp:2]),
        pad_x[:, :, 2:2 * Lp + 1:2])

    def conv(h, w, b):
        hp = jnp.pad(h, ((0, 0), (0, 0), (1, 1)))
        y = sum(jnp.einsum('oi,bil->bol', w[:, :, k], hp[:, :, k:k + Lp],
                           precision=jax.lax.Precision.HIGHEST) for k in range(3))
        return y + b[None, :, None]

    def bn(y, g, beta):
        mean = jnp.mean(y, axis=(0, 2), keepdims=True)
        var = jnp.mean((y - mean) ** 2, axis=(0, 2), keepdims=True)
        return ((y - mean) * jax.lax.rsqrt(var + EPS)) * g[None, :, None] \
            + beta[None, :, None]

    r1 = bn(conv(jax.nn.relu(pool), w1, b1), g1, bb1)
    r2 = bn(conv(jax.nn.relu(r1), w2, b2), g2, bb2)
    return pool + r2


if __name__ == "__main__":
    B, C, L = 2, 4, 16          # batch, feature_map, seq_len (pre-padded, even)
    key = jax.random.PRNGKey(0)
    ks = jax.random.split(key, 9)
    x = jax.random.normal(ks[0], (B, C, L), jnp.float32)

    # Conv1d: (C_out, C_in, 3) weight + (C,) bias; BatchNorm1d: gamma, beta (C,)
    w1 = 0.2 * jax.random.normal(ks[1], (C, C, 3), jnp.float32)
    b1 = 0.1 * jax.random.normal(ks[2], (C,), jnp.float32)
    g1 = 1.0 + 0.1 * jax.random.normal(ks[3], (C,), jnp.float32)
    bb1 = 0.1 * jax.random.normal(ks[4], (C,), jnp.float32)
    w2 = 0.2 * jax.random.normal(ks[5], (C, C, 3), jnp.float32)
    b2 = 0.1 * jax.random.normal(ks[6], (C,), jnp.float32)
    g2 = 1.0 + 0.1 * jax.random.normal(ks[7], (C,), jnp.float32)
    bb2 = 0.1 * jax.random.normal(ks[8], (C,), jnp.float32)
    params = (w1, b1, g1, bb1, w2, b2, g2, bb2)

    out = jax.jit(resblock_forward)(x, params)
    jax.block_until_ready(out)

    ref = ref_forward(x, *params)
    assert out.shape == (B, C, L // 2), out.shape
    if not jnp.allclose(out, ref, atol=2e-3, rtol=2e-3):
        raise AssertionError(
            f"mismatch vs reference, max abs err = {jnp.max(jnp.abs(out - ref))}")
    print("KERNEL_OK")
</pallas_src>

<mosaic_0001>
module attributes {stable_mosaic.version = 11 : i64} {
  func.func @stage1_kernel(%arg0: i32, %arg1: memref<4x2x8xf32, #tpu.memory_space<vmem>>, %arg2: memref<4x2x8xf32, #tpu.memory_space<vmem>>, %arg3: memref<48xf32, #tpu.memory_space<smem>>, %arg4: memref<4xf32, #tpu.memory_space<smem>>, %arg5: memref<4x2x8xf32, #tpu.memory_space<vmem>>, %arg6: memref<1x2x4xf32, #tpu.memory_space<vmem>>) attributes {dimension_semantics = [#tpu.dimension_semantics<parallel>], iteration_bounds = array<i64: 1>, scalar_prefetch = 0 : i64, scratch_operands = 0 : i64, tpu.core_type = #tpu.core_type<tc>, window_params = [{transform_indices = @transform_0, window_bounds = array<i64: 4, 2, 8>}, {transform_indices = @transform_1, window_bounds = array<i64: 4, 2, 8>}, {transform_indices = @transform_2, window_bounds = array<i64: 48>}, {transform_indices = @transform_3, window_bounds = array<i64: 4>}, {transform_indices = @transform_4, window_bounds = array<i64: 4, 2, 8>}, {transform_indices = @transform_5, window_bounds = array<i64: 1, 2, 4>}]} {
    %0 = tpu.iota {dimensions = array<i32: 1>} : vector<2x8xi32>
    %c0_i32 = arith.constant 0 : i32
    %1 = vector.broadcast %c0_i32 : i32 to vector<2x8xi32>
    %2 = arith.cmpi eq, %0, %1 : vector<2x8xi32>
    %c7_i32 = arith.constant 7 : i32
    %3 = vector.broadcast %c7_i32 : i32 to vector<2x8xi32>
    %4 = arith.cmpi eq, %0, %3 : vector<2x8xi32>
    %c0 = arith.constant 0 : index
    %c0_0 = arith.constant 0 : index
    %c0_1 = arith.constant 0 : index
    %5 = vector.load %arg1[%c0, %c0_0, %c0_1] : memref<4x2x8xf32, #tpu.memory_space<vmem>>, vector<1x2x8xf32>
    %6 = vector.shape_cast %5 : vector<1x2x8xf32> to vector<2x8xf32>
    %c0_2 = arith.constant 0 : index
    %c0_3 = arith.constant 0 : index
    %c0_4 = arith.constant 0 : index
    %7 = vector.load %arg2[%c0_2, %c0_3, %c0_4] : memref<4x2x8xf32, #tpu.memory_space<vmem>>, vector<1x2x8xf32>
    %8 = vector.shape_cast %7 : vector<1x2x8xf32> to vector<2x8xf32>
    %9 = arith.maximumf %6, %8 : vector<2x8xf32>
    %c7_i32_5 = arith.constant 7 : i32
    %10 = tpu.dynamic_rotate %6 by %c7_i32_5 dim 1 : vector<2x8xf32>, i32 -> vector<2x8xf32>
    %cst = arith.constant 0.000000e+00 : f32
    %11 = vector.broadcast %cst : f32 to vector<2x8xf32>
    %12 = arith.select %4, %11, %10 : vector<2x8xi1>, vector<2x8xf32>
    %13 = arith.maximumf %9, %12 : vector<2x8xf32>
    %cst_6 = arith.constant 0.000000e+00 : f32
    %14 = vector.broadcast %cst_6 : f32 to vector<2x8xf32>
    %15 = arith.maximumf %13, %14 : vector<2x8xf32>
    %c1_i32 = arith.constant 1 : i32
    %16 = tpu.dynamic_rotate %15 by %c1_i32 dim 1 : vector<2x8xf32>, i32 -> vector<2x8xf32>
    %cst_7 = arith.constant 0.000000e+00 : f32
    %17 = vector.broadcast %cst_7 : f32 to vector<2x8xf32>
    %18 = arith.select %2, %17, %16 : vector<2x8xi1>, vector<2x8xf32>
    %c7_i32_8 = arith.constant 7 : i32
    %19 = tpu.dynamic_rotate %15 by %c7_i32_8 dim 1 : vector<2x8xf32>, i32 -> vector<2x8xf32>
    %cst_9 = arith.constant 0.000000e+00 : f32
    %20 = vector.broadcast %cst_9 : f32 to vector<2x8xf32>
    %21 = arith.select %4, %20, %19 : vector<2x8xi1>, vector<2x8xf32>
    %c1 = arith.constant 1 : index
    %c0_10 = arith.constant 0 : index
    %c0_11 = arith.constant 0 : index
    %22 = vector.load %arg1[%c1, %c0_10, %c0_11] : memref<4x2x8xf32, #tpu.memory_space<vmem>>, vector<1x2x8xf32>
    %23 = vector.shape_cast %22 : vector<1x2x8xf32> to vector<2x8xf32>
    %c1_12 = arith.constant 1 : index
    %c0_13 = arith.constant 0 : index
    %c0_14 = arith.constant 0 : index
    %24 = vector.load %arg2[%c1_12, %c0_13, %c0_14] : memref<4x2x8xf32, #tpu.memory_space<vmem>>, vector<1x2x8xf32>
    %25 = vector.shape_cast %24 : vector<1x2x8xf32> to vector<2x8xf32>
    %26 = arith.maximumf %23, %25 : vector<2x8xf32>
    %c7_i32_15 = arith.constant 7 : i32
    %27 = tpu.dynamic_rotate %23 by %c7_i32_15 dim 1 : vector<2x8xf32>, i32 -> vector<2x8xf32>
    %cst_16 = arith.constant 0.000000e+00 : f32
    %28 = vector.broadcast %cst_16 : f32 to vector<2x8xf32>
    %29 = arith.select %4, %28, %27 : vector<2x8xi1>, vector<2x8xf32>
    %30 = arith.maximumf %26, %29 : vector<2x8xf32>
    %cst_17 = arith.constant 0.000000e+00 : f32
    %31 = vector.broadcast %cst_17 : f32 to vector<2x8xf32>
    %32 = arith.maximumf %30, %31 : vector<2x8xf32>
    %c1_i32_18 = arith.constant 1 : i32
    %33 = tpu.dynamic_rotate %32 by %c1_i32_18 dim 1 : vector<2x8xf32>, i32 -> vector<2x8xf32>
    %cst_19 = arith.constant 0.000000e+00 : f32
    %34 = vector.broadcast %cst_19 : f32 to vector<2x8xf32>
    %35 = arith.select %2, %34, %33 : vector<2x8xi1>, vector<2x8xf32>
    %c7_i32_20 = arith.constant 7 : i32
    %36 = tpu.dynamic_rotate %32 by %c7_i32_20 dim 1 : vector<2x8xf32>, i32 -> vector<2x8xf32>
    %cst_21 = arith.constant 0.000000e+00 : f32
    %37 = vector.broadcast %cst_21 : f32 to vector<2x8xf32>
    %38 = arith.select %4, %37, %36 : vector<2x8xi1>, vector<2x8xf32>
    %c2 = arith.constant 2 : index
    %c0_22 = arith.constant 0 : index
    %c0_23 = arith.constant 0 : index
    %39 = vector.load %arg1[%c2, %c0_22, %c0_23] : memref<4x2x8xf32, #tpu.memory_space<vmem>>, vector<1x2x8xf32>
    %40 = vector.shape_cast %39 : vector<1x2x8xf32> to vector<2x8xf32>
    %c2_24 = arith.constant 2 : index
    %c0_25 = arith.constant 0 : index
    %c0_26 = arith.constant 0 : index
    %41 = vector.load %arg2[%c2_24, %c0_25, %c0_26] : memref<4x2x8xf32, #tpu.memory_space<vmem>>, vector<1x2x8xf32>
    %42 = vector.shape_cast %41 : vector<1x2x8xf32> to vector<2x8xf32>
    %43 = arith.maximumf %40, %42 : vector<2x8xf32>
    %c7_i32_27 = arith.constant 7 : i32
    %44 = tpu.dynamic_rotate %40 by %c7_i32_27 dim 1 : vector<2x8xf32>, i32 -> vector<2x8xf32>
    %cst_28 = arith.constant 0.000000e+00 : f32
    %45 = vector.broadcast %cst_28 : f32 to vector<2x8xf32>
    %46 = arith.select %4, %45, %44 : vector<2x8xi1>, vector<2x8xf32>
    %47 = arith.maximumf %43, %46 : vector<2x8xf32>
    %cst_29 = arith.constant 0.000000e+00 : f32
    %48 = vector.broadcast %cst_29 : f32 to vector<2x8xf32>
    %49 = arith.maximumf %47, %48 : vector<2x8xf32>
    %c1_i32_30 = arith.constant 1 : i32
    %50 = tpu.dynamic_rotate %49 by %c1_i32_30 dim 1 : vector<2x8xf32>, i32 -> vector<2x8xf32>
    %cst_31 = arith.constant 0.000000e+00 : f32
    %51 = vector.broadcast %cst_31 : f32 to vector<2x8xf32>
    %52 = arith.select %2, %51, %50 : vector<2x8xi1>, vector<2x8xf32>
    %c7_i32_32 = arith.constant 7 : i32
    %53 = tpu.dynamic_rotate %49 by %c7_i32_32 dim 1 : vector<2x8xf32>, i32 -> vector<2x8xf32>
    %cst_33 = arith.constant 0.000000e+00 : f32
    %54 = vector.broadcast %cst_33 : f32 to vector<2x8xf32>
    %55 = arith.select %4, %54, %53 : vector<2x8xi1>, vector<2x8xf32>
    %c3 = arith.constant 3 : index
    %c0_34 = arith.constant 0 : index
    %c0_35 = arith.constant 0 : index
    %56 = vector.load %arg1[%c3, %c0_34, %c0_35] : memref<4x2x8xf32, #tpu.memory_space<vmem>>, vector<1x2x8xf32>
    %57 = vector.shape_cast %56 : vector<1x2x8xf32> to vector<2x8xf32>
    %c3_36 = arith.constant 3 : index
    %c0_37 = arith.constant 0 : index
    %c0_38 = arith.constant 0 : index
    %58 = vector.load %arg2[%c3_36, %c0_37, %c0_38] : memref<4x2x8xf32, #tpu.memory_space<vmem>>, vector<1x2x8xf32>
    %59 = vector.shape_cast %58 : vector<1x2x8xf32> to vector<2x8xf32>
    %60 = arith.maximumf %57, %59 : vector<2x8xf32>
    %c7_i32_39 = arith.constant 7 : i32
    %61 = tpu.dynamic_rotate %57 by %c7_i32_39 dim 1 : vector<2x8xf32>, i32 -> vector<2x8xf32>
    %cst_40 = arith.constant 0.000000e+00 : f32
    %62 = vector.broadcast %cst_40 : f32 to vector<2x8xf32>
    %63 = arith.select %4, %62, %61 : vector<2x8xi1>, vector<2x8xf32>
    %64 = arith.maximumf %60, %63 : vector<2x8xf32>
    %cst_41 = arith.constant 0.000000e+00 : f32
    %65 = vector.broadcast %cst_41 : f32 to vector<2x8xf32>
    %66 = arith.maximumf %64, %65 : vector<2x8xf32>
    %c1_i32_42 = arith.constant 1 : i32
    %67 = tpu.dynamic_rotate %66 by %c1_i32_42 dim 1 : vector<2x8xf32>, i32 -> vector<2x8xf32>
    %cst_43 = arith.constant 0.000000e+00 : f32
    %68 = vector.broadcast %cst_43 : f32 to vector<2x8xf32>
    %69 = arith.select %2, %68, %67 : vector<2x8xi1>, vector<2x8xf32>
    %c7_i32_44 = arith.constant 7 : i32
    %70 = tpu.dynamic_rotate %66 by %c7_i32_44 dim 1 : vector<2x8xf32>, i32 -> vector<2x8xf32>
    %cst_45 = arith.constant 0.000000e+00 : f32
    %71 = vector.broadcast %cst_45 : f32 to vector<2x8xf32>
    %72 = arith.select %4, %71, %70 : vector<2x8xi1>, vector<2x8xf32>
    %73 = tpu.iota {dimensions = array<i32: 1>} : vector<1x2x4xi32>
    %74 = tpu.iota {dimensions = array<i32: 2>} : vector<1x2x4xi32>
    %cst_46 = arith.constant 0.000000e+00 : f32
    %75 = vector.broadcast %cst_46 : f32 to vector<1x2x4xf32>
    %c0_47 = arith.constant 0 : index
    %76 = memref.load %arg3[%c0_47] : memref<48xf32, #tpu.memory_space<smem>>
    %77 = vector.broadcast %76 : f32 to vector<2x8xf32>
    %78 = arith.mulf %77, %18 : vector<2x8xf32>
    %c16 = arith.constant 16 : index
    %79 = memref.load %arg3[%c16] : memref<48xf32, #tpu.memory_space<smem>>
    %80 = vector.broadcast %79 : f32 to vector<2x8xf32>
    %81 = arith.mulf %80, %15 : vector<2x8xf32>
    %82 = arith.addf %78, %81 : vector<2x8xf32>
    %c32 = arith.constant 32 : index
    %83 = memref.load %arg3[%c32] : memref<48xf32, #tpu.memory_space<smem>>
    %84 = vector.broadcast %83 : f32 to vector<2x8xf32>
    %85 = arith.mulf %84, %21 : vector<2x8xf32>
    %86 = arith.addf %82, %85 : vector<2x8xf32>
    %c1_48 = arith.constant 1 : index
    %87 = memref.load %arg3[%c1_48] : memref<48xf32, #tpu.memory_space<smem>>
    %88 = vector.broadcast %87 : f32 to vector<2x8xf32>
    %89 = arith.mulf %88, %35 : vector<2x8xf32>
    %c17 = arith.constant 17 : index
    %90 = memref.load %arg3[%c17] : memref<48xf32, #tpu.memory_space<smem>>
    %91 = vector.broadcast %90 : f32 to vector<2x8xf32>
    %92 = arith.mulf %91, %32 : vector<2x8xf32>
    %93 = arith.addf %89, %92 : vector<2x8xf32>
    %c33 = arith.constant 33 : index
    %94 = memref.load %arg3[%c33] : memref<48xf32, #tpu.memory_space<smem>>
    %95 = vector.broadcast %94 : f32 to vector<2x8xf32>
    %96 = arith.mulf %95, %38 : vector<2x8xf32>
    %97 = arith.addf %93, %96 : vector<2x8xf32>
    %98 = arith.addf %86, %97 : vector<2x8xf32>
    %c2_49 = arith.constant 2 : index
    %99 = memref.load %arg3[%c2_49] : memref<48xf32, #tpu.memory_space<smem>>
    %100 = vector.broadcast %99 : f32 to vector<2x8xf32>
    %101 = arith.mulf %100, %52 : vector<2x8xf32>
    %c18 = arith.constant 18 : index
    %102 = memref.load %arg3[%c18] : memref<48xf32, #tpu.memory_space<smem>>
    %103 = vector.broadcast %102 : f32 to vector<2x8xf32>
    %104 = arith.mulf %103, %49 : vector<2x8xf32>
    %105 = arith.addf %101, %104 : vector<2x8xf32>
    %c34 = arith.constant 34 : index
    %106 = memref.load %arg3[%c34] : memref<48xf32, #tpu.memory_space<smem>>
    %107 = vector.broadcast %106 : f32 to vector<2x8xf32>
    %108 = arith.mulf %107, %55 : vector<2x8xf32>
    %109 = arith.addf %105, %108 : vector<2x8xf32>
    %110 = arith.addf %98, %109 : vector<2x8xf32>
    %c3_50 = arith.constant 3 : index
    %111 = memref.load %arg3[%c3_50] : memref<48xf32, #tpu.memory_space<smem>>
    %112 = vector.broadcast %111 : f32 to vector<2x8xf32>
    %113 = arith.mulf %112, %69 : vector<2x8xf32>
    %c19 = arith.constant 19 : index
    %114 = memref.load %arg3[%c19] : memref<48xf32, #tpu.memory_space<smem>>
    %115 = vector.broadcast %114 : f32 to vector<2x8xf32>
    %116 = arith.mulf %115, %66 : vector<2x8xf32>
    %117 = arith.addf %113, %116 : vector<2x8xf32>
    %c35 = arith.constant 35 : index
    %118 = memref.load %arg3[%c35] : memref<48xf32, #tpu.memory_space<smem>>
    %119 = vector.broadcast %118 : f32 to vector<2x8xf32>
    %120 = arith.mulf %119, %72 : vector<2x8xf32>
    %121 = arith.addf %117, %120 : vector<2x8xf32>
    %122 = arith.addf %110, %121 : vector<2x8xf32>
    %c0_51 = arith.constant 0 : index
    %123 = memref.load %arg4[%c0_51] : memref<4xf32, #tpu.memory_space<smem>>
    %124 = vector.broadcast %123 : f32 to vector<2x8xf32>
    %125 = arith.addf %122, %124 : vector<2x8xf32>
    %c0_52 = arith.constant 0 : index
    %c0_53 = arith.constant 0 : index
    %c0_54 = arith.constant 0 : index
    %126 = vector.load %arg5[%c0_52, %c0_53, %c0_54] : memref<4x2x8xf32, #tpu.memory_space<vmem>>, vector<1x2x8xf32>
    %127 = vector.shape_cast %126 : vector<1x2x8xf32> to vector<2x8xf32>
    %128 = vector.shape_cast %125 : vector<2x8xf32> to vector<1x2x8xf32>
    tpu.vector_store %arg5[%c0_52, %c0_53, %c0_54], %128 {strides = array<i32>} : memref<4x2x8xf32, #tpu.memory_space<vmem>>, vector<1x2x8xf32>,
    %129 = vector.shape_cast %125 : vector<2x8xf32> to vector<1x2x8xf32>
    %cst_55 = arith.constant dense<0.000000e+00> : vector<1xf32>
    %130 = vector.multi_reduction <add>, %129, %cst_55 [1, 2] : vector<1x2x8xf32> to vector<1xf32>
    %131 = vector.shape_cast %130 : vector<1xf32> to vector<1x1x1xf32>
    %132 = vector.extract %131[0, 0, 0] : f32 from vector<1x1x1xf32>
    %133 = vector.broadcast %132 : f32 to vector<1x1xf32>
    %134 = arith.mulf %125, %125 : vector<2x8xf32>
    %135 = vector.shape_cast %134 : vector<2x8xf32> to vector<1x2x8xf32>
    %cst_56 = arith.constant dense<0.000000e+00> : vector<1xf32>
    %136 = vector.multi_reduction <add>, %135, %cst_56 [1, 2] : vector<1x2x8xf32> to vector<1xf32>
    %137 = vector.shape_cast %136 : vector<1xf32> to vector<1x1x1xf32>
    %138 = vector.extract %137[0, 0, 0] : f32 from vector<1x1x1xf32>
    %139 = vector.broadcast %138 : f32 to vector<1x1xf32>
    %c0_i32_57 = arith.constant 0 : i32
    %140 = vector.broadcast %c0_i32_57 : i32 to vector<1x2x4xi32>
    %141 = arith.cmpi eq, %73, %140 : vector<1x2x4xi32>
    %c0_i32_58 = arith.constant 0 : i32
    %142 = vector.broadcast %c0_i32_58 : i32 to vector<1x2x4xi32>
    %143 = arith.cmpi eq, %74, %142 : vector<1x2x4xi32>
    %144 = arith.andi %141, %143 : vector<1x2x4xi1>
    %145 = vector.shape_cast %133 : vector<1x1xf32> to vector<1x1x1xf32>
    %146 = vector.broadcast %145 : vector<1x1x1xf32> to vector<1x2x4xf32>
    %147 = arith.select %144, %146, %75 : vector<1x2x4xi1>, vector<1x2x4xf32>
    %c1_i32_59 = arith.constant 1 : i32
    %148 = vector.broadcast %c1_i32_59 : i32 to vector<1x2x4xi32>
    %149 = arith.cmpi eq, %73, %148 : vector<1x2x4xi32>
    %c0_i32_60 = arith.constant 0 : i32
    %150 = vector.broadcast %c0_i32_60 : i32 to vector<1x2x4xi32>
    %151 = arith.cmpi eq, %74, %150 : vector<1x2x4xi32>
    %152 = arith.andi %149, %151 : vector<1x2x4xi1>
    %153 = vector.shape_cast %139 : vector<1x1xf32> to vector<1x1x1xf32>
    %154 = vector.broadcast %153 : vector<1x1x1xf32> to vector<1x2x4xf32>
    %155 = arith.select %152, %154, %147 : vector<1x2x4xi1>, vector<1x2x4xf32>
    %c4 = arith.constant 4 : index
    %156 = memref.load %arg3[%c4] : memref<48xf32, #tpu.memory_space<smem>>
    %157 = vector.broadcast %156 : f32 to vector<2x8xf32>
    %158 = arith.mulf %157, %18 : vector<2x8xf32>
    %c20 = arith.constant 20 : index
    %159 = memref.load %arg3[%c20] : memref<48xf32, #tpu.memory_space<smem>>
    %160 = vector.broadcast %159 : f32 to vector<2x8xf32>
    %161 = arith.mulf %160, %15 : vector<2x8xf32>
    %162 = arith.addf %158, %161 : vector<2x8xf32>
    %c36 = arith.constant 36 : index
    %163 = memref.load %arg3[%c36] : memref<48xf32, #tpu.memory_space<smem>>
    %164 = vector.broadcast %163 : f32 to vector<2x8xf32>
    %165 = arith.mulf %164, %21 : vector<2x8xf32>
    %166 = arith.addf %162, %165 : vector<2x8xf32>
    %c5 = arith.constant 5 : index
    %167 = memref.load %arg3[%c5] : memref<48xf32, #tpu.memory_space<smem>>
    %168 = vector.broadcast %167 : f32 to vector<2x8xf32>
    %169 = arith.mulf %168, %35 : vector<2x8xf32>
    %c21 = arith.constant 21 : index
    %170 = memref.load %arg3[%c21] : memref<48xf32, #tpu.memory_space<smem>>
    %171 = vector.broadcast %170 : f32 to vector<2x8xf32>
    %172 = arith.mulf %171, %32 : vector<2x8xf32>
    %173 = arith.addf %169, %172 : vector<2x8xf32>
    %c37 = arith.constant 37 : index
    %174 = memref.load %arg3[%c37] : memref<48xf32, #tpu.memory_space<smem>>
    %175 = vector.broadcast %174 : f32 to vector<2x8xf32>
    %176 = arith.mulf %175, %38 : vector<2x8xf32>
    %177 = arith.addf %173, %176 : vector<2x8xf32>
    %178 = arith.addf %166, %177 : vector<2x8xf32>
    %c6 = arith.constant 6 : index
    %179 = memref.load %arg3[%c6] : memref<48xf32, #tpu.memory_space<smem>>
    %180 = vector.broadcast %179 : f32 to vector<2x8xf32>
    %181 = arith.mulf %180, %52 : vector<2x8xf32>
    %c22 = arith.constant 22 : index
    %182 = memref.load %arg3[%c22] : memref<48xf32, #tpu.memory_space<smem>>
    %183 = vector.broadcast %182 : f32 to vector<2x8xf32>
    %184 = arith.mulf %183, %49 : vector<2x8xf32>
    %185 = arith.addf %181, %184 : vector<2x8xf32>
    %c38 = arith.constant 38 : index
    %186 = memref.load %arg3[%c38] : memref<48xf32, #tpu.memory_space<smem>>
    %187 = vector.broadcast %186 : f32 to vector<2x8xf32>
    %188 = arith.mulf %187, %55 : vector<2x8xf32>
    %189 = arith.addf %185, %188 : vector<2x8xf32>
    %190 = arith.addf %178, %189 : vector<2x8xf32>
    %c7 = arith.constant 7 : index
    %191 = memref.load %arg3[%c7] : memref<48xf32, #tpu.memory_space<smem>>
    %192 = vector.broadcast %191 : f32 to vector<2x8xf32>
    %193 = arith.mulf %192, %69 : vector<2x8xf32>
    %c23 = arith.constant 23 : index
    %194 = memref.load %arg3[%c23] : memref<48xf32, #tpu.memory_space<smem>>
    %195 = vector.broadcast %194 : f32 to vector<2x8xf32>
    %196 = arith.mulf %195, %66 : vector<2x8xf32>
    %197 = arith.addf %193, %196 : vector<2x8xf32>
    %c39 = arith.constant 39 : index
    %198 = memref.load %arg3[%c39] : memref<48xf32, #tpu.memory_space<smem>>
    %199 = vector.broadcast %198 : f32 to vector<2x8xf32>
    %200 = arith.mulf %199, %72 : vector<2x8xf32>
    %201 = arith.addf %197, %200 : vector<2x8xf32>
    %202 = arith.addf %190, %201 : vector<2x8xf32>
    %c1_61 = arith.constant 1 : index
    %203 = memref.load %arg4[%c1_61] : memref<4xf32, #tpu.memory_space<smem>>
    %204 = vector.broadcast %203 : f32 to vector<2x8xf32>
    %205 = arith.addf %202, %204 : vector<2x8xf32>
    %c1_62 = arith.constant 1 : index
    %c0_63 = arith.constant 0 : index
    %c0_64 = arith.constant 0 : index
    %206 = vector.load %arg5[%c1_62, %c0_63, %c0_64] : memref<4x2x8xf32, #tpu.memory_space<vmem>>, vector<1x2x8xf32>
    %207 = vector.shape_cast %206 : vector<1x2x8xf32> to vector<2x8xf32>
    %208 = vector.shape_cast %205 : vector<2x8xf32> to vector<1x2x8xf32>
    tpu.vector_store %arg5[%c1_62, %c0_63, %c0_64], %208 {strides = array<i32>} : memref<4x2x8xf32, #tpu.memory_space<vmem>>, vector<1x2x8xf32>,
    %209 = vector.shape_cast %205 : vector<2x8xf32> to vector<1x2x8xf32>
    %cst_65 = arith.constant dense<0.000000e+00> : vector<1xf32>
    %210 = vector.multi_reduction <add>, %209, %cst_65 [1, 2] : vector<1x2x8xf32> to vector<1xf32>
    %211 = vector.shape_cast %210 : vector<1xf32> to vector<1x1x1xf32>
    %212 = vector.extract %211[0, 0, 0] : f32 from vector<1x1x1xf32>
    %213 = vector.broadcast %212 : f32 to vector<1x1xf32>
    %214 = arith.mulf %205, %205 : vector<2x8xf32>
    %215 = vector.shape_cast %214 : vector<2x8xf32> to vector<1x2x8xf32>
    %cst_66 = arith.constant dense<0.000000e+00> : vector<1xf32>
    %216 = vector.multi_reduction <add>, %215, %cst_66 [1, 2] : vector<1x2x8xf32> to vector<1xf32>
    %217 = vector.shape_cast %216 : vector<1xf32> to vector<1x1x1xf32>
    %218 = vector.extract %217[0, 0, 0] : f32 from vector<1x1x1xf32>
    %219 = vector.broadcast %218 : f32 to vector<1x1xf32>
    %c0_i32_67 = arith.constant 0 : i32
    %220 = vector.broadcast %c0_i32_67 : i32 to vector<1x2x4xi32>
    %221 = arith.cmpi eq, %73, %220 : vector<1x2x4xi32>
    %c1_i32_68 = arith.constant 1 : i32
    %222 = vector.broadcast %c1_i32_68 : i32 to vector<1x2x4xi32>
    %223 = arith.cmpi eq, %74, %222 : vector<1x2x4xi32>
    %224 = arith.andi %221, %223 : vector<1x2x4xi1>
    %225 = vector.shape_cast %213 : vector<1x1xf32> to vector<1x1x1xf32>
    %226 = vector.broadcast %225 : vector<1x1x1xf32> to vector<1x2x4xf32>
    %227 = arith.select %224, %226, %155 : vector<1x2x4xi1>, vector<1x2x4xf32>
    %c1_i32_69 = arith.constant 1 : i32
    %228 = vector.broadcast %c1_i32_69 : i32 to vector<1x2x4xi32>
    %229 = arith.cmpi eq, %73, %228 : vector<1x2x4xi32>
    %c1_i32_70 = arith.constant 1 : i32
    %230 = vector.broadcast %c1_i32_70 : i32 to vector<1x2x4xi32>
    %231 = arith.cmpi eq, %74, %230 : vector<1x2x4xi32>
    %232 = arith.andi %229, %231 : vector<1x2x4xi1>
    %233 = vector.shape_cast %219 : vector<1x1xf32> to vector<1x1x1xf32>
    %234 = vector.broadcast %233 : vector<1x1x1xf32> to vector<1x2x4xf32>
    %235 = arith.select %232, %234, %227 : vector<1x2x4xi1>, vector<1x2x4xf32>
    %c8 = arith.constant 8 : index
    %236 = memref.load %arg3[%c8] : memref<48xf32, #tpu.memory_space<smem>>
    %237 = vector.broadcast %236 : f32 to vector<2x8xf32>
    %238 = arith.mulf %237, %18 : vector<2x8xf32>
    %c24 = arith.constant 24 : index
    %239 = memref.load %arg3[%c24] : memref<48xf32, #tpu.memory_space<smem>>
    %240 = vector.broadcast %239 : f32 to vector<2x8xf32>
    %241 = arith.mulf %240, %15 : vector<2x8xf32>
    %242 = arith.addf %238, %241 : vector<2x8xf32>
    %c40 = arith.constant 40 : index
    %243 = memref.load %arg3[%c40] : memref<48xf32, #tpu.memory_space<smem>>
    %244 = vector.broadcast %243 : f32 to vector<2x8xf32>
    %245 = arith.mulf %244, %21 : vector<2x8xf32>
    %246 = arith.addf %242, %245 : vector<2x8xf32>
    %c9 = arith.constant 9 : index
    %247 = memref.load %arg3[%c9] : memref<48xf32, #tpu.memory_space<smem>>
    %248 = vector.broadcast %247 : f32 to vector<2x8xf32>
    %249 = arith.mulf %248, %35 : vector<2x8xf32>
    %c25 = arith.constant 25 : index
    %250 = memref.load %arg3[%c25] : memref<48xf32, #tpu.memory_space<smem>>
    %251 = vector.broadcast %250 : f32 to vector<2x8xf32>
    %252 = arith.mulf %251, %32 : vector<2x8xf32>
    %253 = arith.addf %249, %252 : vector<2x8xf32>
    %c41 = arith.constant 41 : index
    %254 = memref.load %arg3[%c41] : memref<48xf32, #tpu.memory_space<smem>>
    %255 = vector.broadcast %254 : f32 to vector<2x8xf32>
    %256 = arith.mulf %255, %38 : vector<2x8xf32>
    %257 = arith.addf %253, %256 : vector<2x8xf32>
    %258 = arith.addf %246, %257 : vector<2x8xf32>
    %c10 = arith.constant 10 : index
    %259 = memref.load %arg3[%c10] : memref<48xf32, #tpu.memory_space<smem>>
    %260 = vector.broadcast %259 : f32 to vector<2x8xf32>
    %261 = arith.mulf %260, %52 : vector<2x8xf32>
    %c26 = arith.constant 26 : index
    %262 = memref.load %arg3[%c26] : memref<48xf32, #tpu.memory_space<smem>>
    %263 = vector.broadcast %262 : f32 to vector<2x8xf32>
    %264 = arith.mulf %263, %49 : vector<2x8xf32>
    %265 = arith.addf %261, %264 : vector<2x8xf32>
    %c42 = arith.constant 42 : index
    %266 = memref.load %arg3[%c42] : memref<48xf32, #tpu.memory_space<smem>>
    %267 = vector.broadcast %266 : f32 to vector<2x8xf32>
    %268 = arith.mulf %267, %55 : vector<2x8xf32>
    %269 = arith.addf %265, %268 : vector<2x8xf32>
    %270 = arith.addf %258, %269 : vector<2x8xf32>
    %c11 = arith.constant 11 : index
    %271 = memref.load %arg3[%c11] : memref<48xf32, #tpu.memory_space<smem>>
    %272 = vector.broadcast %271 : f32 to vector<2x8xf32>
    %273 = arith.mulf %272, %69 : vector<2x8xf32>
    %c27 = arith.constant 27 : index
    %274 = memref.load %arg3[%c27] : memref<48xf32, #tpu.memory_space<smem>>
    %275 = vector.broadcast %274 : f32 to vector<2x8xf32>
    %276 = arith.mulf %275, %66 : vector<2x8xf32>
    %277 = arith.addf %273, %276 : vector<2x8xf32>
    %c43 = arith.constant 43 : index
    %278 = memref.load %arg3[%c43] : memref<48xf32, #tpu.memory_space<smem>>
    %279 = vector.broadcast %278 : f32 to vector<2x8xf32>
    %280 = arith.mulf %279, %72 : vector<2x8xf32>
    %281 = arith.addf %277, %280 : vector<2x8xf32>
    %282 = arith.addf %270, %281 : vector<2x8xf32>
    %c2_71 = arith.constant 2 : index
    %283 = memref.load %arg4[%c2_71] : memref<4xf32, #tpu.memory_space<smem>>
    %284 = vector.broadcast %283 : f32 to vector<2x8xf32>
    %285 = arith.addf %282, %284 : vector<2x8xf32>
    %c2_72 = arith.constant 2 : index
    %c0_73 = arith.constant 0 : index
    %c0_74 = arith.constant 0 : index
    %286 = vector.load %arg5[%c2_72, %c0_73, %c0_74] : memref<4x2x8xf32, #tpu.memory_space<vmem>>, vector<1x2x8xf32>
    %287 = vector.shape_cast %286 : vector<1x2x8xf32> to vector<2x8xf32>
    %288 = vector.shape_cast %285 : vector<2x8xf32> to vector<1x2x8xf32>
    tpu.vector_store %arg5[%c2_72, %c0_73, %c0_74], %288 {strides = array<i32>} : memref<4x2x8xf32, #tpu.memory_space<vmem>>, vector<1x2x8xf32>,
    %289 = vector.shape_cast %285 : vector<2x8xf32> to vector<1x2x8xf32>
    %cst_75 = arith.constant dense<0.000000e+00> : vector<1xf32>
    %290 = vector.multi_reduction <add>, %289, %cst_75 [1, 2] : vector<1x2x8xf32> to vector<1xf32>
    %291 = vector.shape_cast %290 : vector<1xf32> to vector<1x1x1xf32>
    %292 = vector.extract %291[0, 0, 0] : f32 from vector<1x1x1xf32>
    %293 = vector.broadcast %292 : f32 to vector<1x1xf32>
    %294 = arith.mulf %285, %285 : vector<2x8xf32>
    %295 = vector.shape_cast %294 : vector<2x8xf32> to vector<1x2x8xf32>
    %cst_76 = arith.constant dense<0.000000e+00> : vector<1xf32>
    %296 = vector.multi_reduction <add>, %295, %cst_76 [1, 2] : vector<1x2x8xf32> to vector<1xf32>
    %297 = vector.shape_cast %296 : vector<1xf32> to vector<1x1x1xf32>
    %298 = vector.extract %297[0, 0, 0] : f32 from vector<1x1x1xf32>
    %299 = vector.broadcast %298 : f32 to vector<1x1xf32>
    %c0_i32_77 = arith.constant 0 : i32
    %300 = vector.broadcast %c0_i32_77 : i32 to vector<1x2x4xi32>
    %301 = arith.cmpi eq, %73, %300 : vector<1x2x4xi32>
    %c2_i32 = arith.constant 2 : i32
    %302 = vector.broadcast %c2_i32 : i32 to vector<1x2x4xi32>
    %303 = arith.cmpi eq, %74, %302 : vector<1x2x4xi32>
    %304 = arith.andi %301, %303 : vector<1x2x4xi1>
    %305 = vector.shape_cast %293 : vector<1x1xf32> to vector<1x1x1xf32>
    %306 = vector.broadcast %305 : vector<1x1x1xf32> to vector<1x2x4xf32>
    %307 = arith.select %304, %306, %235 : vector<1x2x4xi1>, vector<1x2x4xf32>
    %c1_i32_78 = arith.constant 1 : i32
    %308 = vector.broadcast %c1_i32_78 : i32 to vector<1x2x4xi32>
    %309 = arith.cmpi eq, %73, %308 : vector<1x2x4xi32>
    %c2_i32_79 = arith.constant 2 : i32
    %310 = vector.broadcast %c2_i32_79 : i32 to vector<1x2x4xi32>
    %311 = arith.cmpi eq, %74, %310 : vector<1x2x4xi32>
    %312 = arith.andi %309, %311 : vector<1x2x4xi1>
    %313 = vector.shape_cast %299 : vector<1x1xf32> to vector<1x1x1xf32>
    %314 = vector.broadcast %313 : vector<1x1x1xf32> to vector<1x2x4xf32>
    %315 = arith.select %312, %314, %307 : vector<1x2x4xi1>, vector<1x2x4xf32>
    %c12 = arith.constant 12 : index
    %316 = memref.load %arg3[%c12] : memref<48xf32, #tpu.memory_space<smem>>
    %317 = vector.broadcast %316 : f32 to vector<2x8xf32>
    %318 = arith.mulf %317, %18 : vector<2x8xf32>
    %c28 = arith.constant 28 : index
    %319 = memref.load %arg3[%c28] : memref<48xf32, #tpu.memory_space<smem>>
    %320 = vector.broadcast %319 : f32 to vector<2x8xf32>
    %321 = arith.mulf %320, %15 : vector<2x8xf32>
    %322 = arith.addf %318, %321 : vector<2x8xf32>
    %c44 = arith.constant 44 : index
    %323 = memref.load %arg3[%c44] : memref<48xf32, #tpu.memory_space<smem>>
    %324 = vector.broadcast %323 : f32 to vector<2x8xf32>
    %325 = arith.mulf %324, %21 : vector<2x8xf32>
    %326 = arith.addf %322, %325 : vector<2x8xf32>
    %c13 = arith.constant 13 : index
    %327 = memref.load %arg3[%c13] : memref<48xf32, #tpu.memory_space<smem>>
    %328 = vector.broadcast %327 : f32 to vector<2x8xf32>
    %329 = arith.mulf %328, %35 : vector<2x8xf32>
    %c29 = arith.constant 29 : index
    %330 = memref.load %arg3[%c29] : memref<48xf32, #tpu.memory_space<smem>>
    %331 = vector.broadcast %330 : f32 to vector<2x8xf32>
    %332 = arith.mulf %331, %32 : vector<2x8xf32>
    %333 = arith.addf %329, %332 : vector<2x8xf32>
    %c45 = arith.constant 45 : index
    %334 = memref.load %arg3[%c45] : memref<48xf32, #tpu.memory_space<smem>>
    %335 = vector.broadcast %334 : f32 to vector<2x8xf32>
    %336 = arith.mulf %335, %38 : vector<2x8xf32>
    %337 = arith.addf %333, %336 : vector<2x8xf32>
    %338 = arith.addf %326, %337 : vector<2x8xf32>
    %c14 = arith.constant 14 : index
    %339 = memref.load %arg3[%c14] : memref<48xf32, #tpu.memory_space<smem>>
    %340 = vector.broadcast %339 : f32 to vector<2x8xf32>
    %341 = arith.mulf %340, %52 : vector<2x8xf32>
    %c30 = arith.constant 30 : index
    %342 = memref.load %arg3[%c30] : memref<48xf32, #tpu.memory_space<smem>>
    %343 = vector.broadcast %342 : f32 to vector<2x8xf32>
    %344 = arith.mulf %343, %49 : vector<2x8xf32>
    %345 = arith.addf %341, %344 : vector<2x8xf32>
    %c46 = arith.constant 46 : index
    %346 = memref.load %arg3[%c46] : memref<48xf32, #tpu.memory_space<smem>>
    %347 = vector.broadcast %346 : f32 to vector<2x8xf32>
    %348 = arith.mulf %347, %55 : vector<2x8xf32>
    %349 = arith.addf %345, %348 : vector<2x8xf32>
    %350 = arith.addf %338, %349 : vector<2x8xf32>
    %c15 = arith.constant 15 : index
    %351 = memref.load %arg3[%c15] : memref<48xf32, #tpu.memory_space<smem>>
    %352 = vector.broadcast %351 : f32 to vector<2x8xf32>
    %353 = arith.mulf %352, %69 : vector<2x8xf32>
    %c31 = arith.constant 31 : index
    %354 = memref.load %arg3[%c31] : memref<48xf32, #tpu.memory_space<smem>>
    %355 = vector.broadcast %354 : f32 to vector<2x8xf32>
    %356 = arith.mulf %355, %66 : vector<2x8xf32>
    %357 = arith.addf %353, %356 : vector<2x8xf32>
    %c47 = arith.constant 47 : index
    %358 = memref.load %arg3[%c47] : memref<48xf32, #tpu.memory_space<smem>>
    %359 = vector.broadcast %358 : f32 to vector<2x8xf32>
    %360 = arith.mulf %359, %72 : vector<2x8xf32>
    %361 = arith.addf %357, %360 : vector<2x8xf32>
    %362 = arith.addf %350, %361 : vector<2x8xf32>
    %c3_80 = arith.constant 3 : index
    %363 = memref.load %arg4[%c3_80] : memref<4xf32, #tpu.memory_space<smem>>
    %364 = vector.broadcast %363 : f32 to vector<2x8xf32>
    %365 = arith.addf %362, %364 : vector<2x8xf32>
    %c3_81 = arith.constant 3 : index
    %c0_82 = arith.constant 0 : index
    %c0_83 = arith.constant 0 : index
    %366 = vector.load %arg5[%c3_81, %c0_82, %c0_83] : memref<4x2x8xf32, #tpu.memory_space<vmem>>, vector<1x2x8xf32>
    %367 = vector.shape_cast %366 : vector<1x2x8xf32> to vector<2x8xf32>
    %368 = vector.shape_cast %365 : vector<2x8xf32> to vector<1x2x8xf32>
    tpu.vector_store %arg5[%c3_81, %c0_82, %c0_83], %368 {strides = array<i32>} : memref<4x2x8xf32, #tpu.memory_space<vmem>>, vector<1x2x8xf32>,
    %369 = vector.shape_cast %365 : vector<2x8xf32> to vector<1x2x8xf32>
    %cst_84 = arith.constant dense<0.000000e+00> : vector<1xf32>
    %370 = vector.multi_reduction <add>, %369, %cst_84 [1, 2] : vector<1x2x8xf32> to vector<1xf32>
    %371 = vector.shape_cast %370 : vector<1xf32> to vector<1x1x1xf32>
    %372 = vector.extract %371[0, 0, 0] : f32 from vector<1x1x1xf32>
    %373 = vector.broadcast %372 : f32 to vector<1x1xf32>
    %374 = arith.mulf %365, %365 : vector<2x8xf32>
    %375 = vector.shape_cast %374 : vector<2x8xf32> to vector<1x2x8xf32>
    %cst_85 = arith.constant dense<0.000000e+00> : vector<1xf32>
    %376 = vector.multi_reduction <add>, %375, %cst_85 [1, 2] : vector<1x2x8xf32> to vector<1xf32>
    %377 = vector.shape_cast %376 : vector<1xf32> to vector<1x1x1xf32>
    %378 = vector.extract %377[0, 0, 0] : f32 from vector<1x1x1xf32>
    %379 = vector.broadcast %378 : f32 to vector<1x1xf32>
    %c0_i32_86 = arith.constant 0 : i32
    %380 = vector.broadcast %c0_i32_86 : i32 to vector<1x2x4xi32>
    %381 = arith.cmpi eq, %73, %380 : vector<1x2x4xi32>
    %c3_i32 = arith.constant 3 : i32
    %382 = vector.broadcast %c3_i32 : i32 to vector<1x2x4xi32>
    %383 = arith.cmpi eq, %74, %382 : vector<1x2x4xi32>
    %384 = arith.andi %381, %383 : vector<1x2x4xi1>
    %385 = vector.shape_cast %373 : vector<1x1xf32> to vector<1x1x1xf32>
    %386 = vector.broadcast %385 : vector<1x1x1xf32> to vector<1x2x4xf32>
    %387 = arith.select %384, %386, %315 : vector<1x2x4xi1>, vector<1x2x4xf32>
    %c1_i32_87 = arith.constant 1 : i32
    %388 = vector.broadcast %c1_i32_87 : i32 to vector<1x2x4xi32>
    %389 = arith.cmpi eq, %73, %388 : vector<1x2x4xi32>
    %c3_i32_88 = arith.constant 3 : i32
    %390 = vector.broadcast %c3_i32_88 : i32 to vector<1x2x4xi32>
    %391 = arith.cmpi eq, %74, %390 : vector<1x2x4xi32>
    %392 = arith.andi %389, %391 : vector<1x2x4xi1>
    %393 = vector.shape_cast %379 : vector<1x1xf32> to vector<1x1x1xf32>
    %394 = vector.broadcast %393 : vector<1x1x1xf32> to vector<1x2x4xf32>
    %395 = arith.select %392, %394, %387 : vector<1x2x4xi1>, vector<1x2x4xf32>
    %c0_89 = arith.constant 0 : index
    %c0_90 = arith.constant 0 : index
    %c0_91 = arith.constant 0 : index
    %396 = vector.load %arg6[%c0_89, %c0_90, %c0_91] : memref<1x2x4xf32, #tpu.memory_space<vmem>>, vector<1x2x4xf32>
    tpu.vector_store %arg6[%c0_89, %c0_90, %c0_91], %395 {strides = array<i32>} : memref<1x2x4xf32, #tpu.memory_space<vmem>>, vector<1x2x4xf32>,
    return
  }
  func.func @transform_0(%arg0: i32) -> (i32, i32, i32) {
    %c0_i32 = arith.constant 0 : i32
    %c0_i32_0 = arith.constant 0 : i32
    %c0_i32_1 = arith.constant 0 : i32
    return %c0_i32, %arg0, %c0_i32_0 : i32, i32, i32
  }
  func.func @transform_1(%arg0: i32) -> (i32, i32, i32) {
    %c0_i32 = arith.constant 0 : i32
    %c0_i32_0 = arith.constant 0 : i32
    %c0_i32_1 = arith.constant 0 : i32
    return %c0_i32, %arg0, %c0_i32_0 : i32, i32, i32
  }
  func.func @transform_2(%arg0: i32) -> i32 {
    %c0_i32 = arith.constant 0 : i32
    %c0_i32_0 = arith.constant 0 : i32
    return %c0_i32 : i32
  }
  func.func @transform_3(%arg0: i32) -> i32 {
    %c0_i32 = arith.constant 0 : i32
    %c0_i32_0 = arith.constant 0 : i32
    return %c0_i32 : i32
  }
  func.func @transform_4(%arg0: i32) -> (i32, i32, i32) {
    %c0_i32 = arith.constant 0 : i32
    %c0_i32_0 = arith.constant 0 : i32
    %c0_i32_1 = arith.constant 0 : i32
    return %c0_i32, %arg0, %c0_i32_0 : i32, i32, i32
  }
  func.func @transform_5(%arg0: i32) -> (i32, i32, i32) {
    %c0_i32 = arith.constant 0 : i32
    %c0_i32_0 = arith.constant 0 : i32
    %c0_i32_1 = arith.constant 0 : i32
    return %arg0, %c0_i32, %c0_i32_0 : i32, i32, i32
  }
}

module attributes {stable_mosaic.version = 11 : i64} {
  func.func @stage3_kernel(%arg0: i32, %arg1: memref<4x2x8xf32, #tpu.memory_space<vmem>>, %arg2: memref<4x2x8xf32, #tpu.memory_space<vmem>>, %arg3: memref<4x2x8xf32, #tpu.memory_space<vmem>>, %arg4: memref<8xf32, #tpu.memory_space<smem>>, %arg5: memref<4xf32, #tpu.memory_space<smem>>, %arg6: memref<4xf32, #tpu.memory_space<smem>>, %arg7: memref<4x2x8xf32, #tpu.memory_space<vmem>>) attributes {dimension_semantics = [#tpu.dimension_semantics<parallel>], iteration_bounds = array<i64: 1>, scalar_prefetch = 0 : i64, scratch_operands = 0 : i64, tpu.core_type = #tpu.core_type<tc>, window_params = [{transform_indices = @transform_0, window_bounds = array<i64: 4, 2, 8>}, {transform_indices = @transform_1, window_bounds = array<i64: 4, 2, 8>}, {transform_indices = @transform_2, window_bounds = array<i64: 4, 2, 8>}, {transform_indices = @transform_3, window_bounds = array<i64: 8>}, {transform_indices = @transform_4, window_bounds = array<i64: 4>}, {transform_indices = @transform_5, window_bounds = array<i64: 4>}, {transform_indices = @transform_6, window_bounds = array<i64: 4, 2, 8>}]} {
    %0 = tpu.iota {dimensions = array<i32: 1>} : vector<2x8xi32>
    %c7_i32 = arith.constant 7 : i32
    %1 = vector.broadcast %c7_i32 : i32 to vector<2x8xi32>
    %2 = arith.cmpi eq, %0, %1 : vector<2x8xi32>
    %c0 = arith.constant 0 : index
    %c0_0 = arith.constant 0 : index
    %c0_1 = arith.constant 0 : index
    %3 = vector.load %arg1[%c0, %c0_0, %c0_1] : memref<4x2x8xf32, #tpu.memory_space<vmem>>, vector<1x2x8xf32>
    %4 = vector.shape_cast %3 : vector<1x2x8xf32> to vector<2x8xf32>
    %c0_2 = arith.constant 0 : index
    %c0_3 = arith.constant 0 : index
    %c0_4 = arith.constant 0 : index
    %5 = vector.load %arg2[%c0_2, %c0_3, %c0_4] : memref<4x2x8xf32, #tpu.memory_space<vmem>>, vector<1x2x8xf32>
    %6 = vector.shape_cast %5 : vector<1x2x8xf32> to vector<2x8xf32>
    %7 = arith.maximumf %4, %6 : vector<2x8xf32>
    %c7_i32_5 = arith.constant 7 : i32
    %8 = tpu.dynamic_rotate %4 by %c7_i32_5 dim 1 : vector<2x8xf32>, i32 -> vector<2x8xf32>
    %cst = arith.constant 0.000000e+00 : f32
    %9 = vector.broadcast %cst : f32 to vector<2x8xf32>
    %10 = arith.select %2, %9, %8 : vector<2x8xi1>, vector<2x8xf32>
    %11 = arith.maximumf %7, %10 : vector<2x8xf32>
    %c0_6 = arith.constant 0 : index
    %12 = memref.load %arg4[%c0_6] : memref<8xf32, #tpu.memory_space<smem>>
    %13 = vector.broadcast %12 : f32 to vector<1x1xf32>
    %c4 = arith.constant 4 : index
    %14 = memref.load %arg4[%c4] : memref<8xf32, #tpu.memory_space<smem>>
    %15 = vector.broadcast %14 : f32 to vector<1x1xf32>
    %cst_7 = arith.constant 6.250000e-02 : f32
    %16 = vector.broadcast %cst_7 : f32 to vector<1x1xf32>
    %17 = arith.mulf %13, %16 : vector<1x1xf32>
    %cst_8 = arith.constant 6.250000e-02 : f32
    %18 = vector.broadcast %cst_8 : f32 to vector<1x1xf32>
    %19 = arith.mulf %15, %18 : vector<1x1xf32>
    %20 = arith.mulf %17, %17 : vector<1x1xf32>
    %21 = arith.subf %19, %20 : vector<1x1xf32>
    %cst_9 = arith.constant 0.000000e+00 : f32
    %22 = vector.broadcast %cst_9 : f32 to vector<1x1xf32>
    %23 = arith.maximumf %21, %22 : vector<1x1xf32>
    %c0_10 = arith.constant 0 : index
    %24 = memref.load %arg5[%c0_10] : memref<4xf32, #tpu.memory_space<smem>>
    %25 = vector.broadcast %24 : f32 to vector<1x1xf32>
    %cst_11 = arith.constant 9.99999974E-6 : f32
    %26 = vector.broadcast %cst_11 : f32 to vector<1x1xf32>
    %27 = arith.addf %23, %26 : vector<1x1xf32>
    %28 = math.rsqrt %27 : vector<1x1xf32>
    %29 = arith.mulf %25, %28 : vector<1x1xf32>
    %c0_12 = arith.constant 0 : index
    %30 = memref.load %arg6[%c0_12] : memref<4xf32, #tpu.memory_space<smem>>
    %31 = vector.broadcast %30 : f32 to vector<1x1xf32>
    %32 = arith.mulf %17, %29 : vector<1x1xf32>
    %33 = arith.subf %31, %32 : vector<1x1xf32>
    %c0_13 = arith.constant 0 : index
    %c0_14 = arith.constant 0 : index
    %c0_15 = arith.constant 0 : index
    %34 = vector.load %arg3[%c0_13, %c0_14, %c0_15] : memref<4x2x8xf32, #tpu.memory_space<vmem>>, vector<1x2x8xf32>
    %35 = vector.shape_cast %34 : vector<1x2x8xf32> to vector<2x8xf32>
    %36 = vector.broadcast %29 : vector<1x1xf32> to vector<2x8xf32>
    %37 = arith.mulf %35, %36 : vector<2x8xf32>
    %38 = arith.addf %11, %37 : vector<2x8xf32>
    %39 = vector.broadcast %33 : vector<1x1xf32> to vector<2x8xf32>
    %40 = arith.addf %38, %39 : vector<2x8xf32>
    %c0_16 = arith.constant 0 : index
    %c0_17 = arith.constant 0 : index
    %c0_18 = arith.constant 0 : index
    %41 = vector.load %arg7[%c0_16, %c0_17, %c0_18] : memref<4x2x8xf32, #tpu.memory_space<vmem>>, vector<1x2x8xf32>
    %42 = vector.shape_cast %41 : vector<1x2x8xf32> to vector<2x8xf32>
    %43 = vector.shape_cast %40 : vector<2x8xf32> to vector<1x2x8xf32>
    tpu.vector_store %arg7[%c0_16, %c0_17, %c0_18], %43 {strides = array<i32>} : memref<4x2x8xf32, #tpu.memory_space<vmem>>, vector<1x2x8xf32>,
    %c1 = arith.constant 1 : index
    %c0_19 = arith.constant 0 : index
    %c0_20 = arith.constant 0 : index
    %44 = vector.load %arg1[%c1, %c0_19, %c0_20] : memref<4x2x8xf32, #tpu.memory_space<vmem>>, vector<1x2x8xf32>
    %45 = vector.shape_cast %44 : vector<1x2x8xf32> to vector<2x8xf32>
    %c1_21 = arith.constant 1 : index
    %c0_22 = arith.constant 0 : index
    %c0_23 = arith.constant 0 : index
    %46 = vector.load %arg2[%c1_21, %c0_22, %c0_23] : memref<4x2x8xf32, #tpu.memory_space<vmem>>, vector<1x2x8xf32>
    %47 = vector.shape_cast %46 : vector<1x2x8xf32> to vector<2x8xf32>
    %48 = arith.maximumf %45, %47 : vector<2x8xf32>
    %c7_i32_24 = arith.constant 7 : i32
    %49 = tpu.dynamic_rotate %45 by %c7_i32_24 dim 1 : vector<2x8xf32>, i32 -> vector<2x8xf32>
    %cst_25 = arith.constant 0.000000e+00 : f32
    %50 = vector.broadcast %cst_25 : f32 to vector<2x8xf32>
    %51 = arith.select %2, %50, %49 : vector<2x8xi1>, vector<2x8xf32>
    %52 = arith.maximumf %48, %51 : vector<2x8xf32>
    %c1_26 = arith.constant 1 : index
    %53 = memref.load %arg4[%c1_26] : memref<8xf32, #tpu.memory_space<smem>>
    %54 = vector.broadcast %53 : f32 to vector<1x1xf32>
    %c5 = arith.constant 5 : index
    %55 = memref.load %arg4[%c5] : memref<8xf32, #tpu.memory_space<smem>>
    %56 = vector.broadcast %55 : f32 to vector<1x1xf32>
    %cst_27 = arith.constant 6.250000e-02 : f32
    %57 = vector.broadcast %cst_27 : f32 to vector<1x1xf32>
    %58 = arith.mulf %54, %57 : vector<1x1xf32>
    %cst_28 = arith.constant 6.250000e-02 : f32
    %59 = vector.broadcast %cst_28 : f32 to vector<1x1xf32>
    %60 = arith.mulf %56, %59 : vector<1x1xf32>
    %61 = arith.mulf %58, %58 : vector<1x1xf32>
    %62 = arith.subf %60, %61 : vector<1x1xf32>
    %cst_29 = arith.constant 0.000000e+00 : f32
    %63 = vector.broadcast %cst_29 : f32 to vector<1x1xf32>
    %64 = arith.maximumf %62, %63 : vector<1x1xf32>
    %c1_30 = arith.constant 1 : index
    %65 = memref.load %arg5[%c1_30] : memref<4xf32, #tpu.memory_space<smem>>
    %66 = vector.broadcast %65 : f32 to vector<1x1xf32>
    %cst_31 = arith.constant 9.99999974E-6 : f32
    %67 = vector.broadcast %cst_31 : f32 to vector<1x1xf32>
    %68 = arith.addf %64, %67 : vector<1x1xf32>
    %69 = math.rsqrt %68 : vector<1x1xf32>
    %70 = arith.mulf %66, %69 : vector<1x1xf32>
    %c1_32 = arith.constant 1 : index
    %71 = memref.load %arg6[%c1_32] : memref<4xf32, #tpu.memory_space<smem>>
    %72 = vector.broadcast %71 : f32 to vector<1x1xf32>
    %73 = arith.mulf %58, %70 : vector<1x1xf32>
    %74 = arith.subf %72, %73 : vector<1x1xf32>
    %c1_33 = arith.constant 1 : index
    %c0_34 = arith.constant 0 : index
    %c0_35 = arith.constant 0 : index
    %75 = vector.load %arg3[%c1_33, %c0_34, %c0_35] : memref<4x2x8xf32, #tpu.memory_space<vmem>>, vector<1x2x8xf32>
    %76 = vector.shape_cast %75 : vector<1x2x8xf32> to vector<2x8xf32>
    %77 = vector.broadcast %70 : vector<1x1xf32> to vector<2x8xf32>
    %78 = arith.mulf %76, %77 : vector<2x8xf32>
    %79 = arith.addf %52, %78 : vector<2x8xf32>
    %80 = vector.broadcast %74 : vector<1x1xf32> to vector<2x8xf32>
    %81 = arith.addf %79, %80 : vector<2x8xf32>
    %c1_36 = arith.constant 1 : index
    %c0_37 = arith.constant 0 : index
    %c0_38 = arith.constant 0 : index
    %82 = vector.load %arg7[%c1_36, %c0_37, %c0_38] : memref<4x2x8xf32, #tpu.memory_space<vmem>>, vector<1x2x8xf32>
    %83 = vector.shape_cast %82 : vector<1x2x8xf32> to vector<2x8xf32>
    %84 = vector.shape_cast %81 : vector<2x8xf32> to vector<1x2x8xf32>
    tpu.vector_store %arg7[%c1_36, %c0_37, %c0_38], %84 {strides = array<i32>} : memref<4x2x8xf32, #tpu.memory_space<vmem>>, vector<1x2x8xf32>,
    %c2 = arith.constant 2 : index
    %c0_39 = arith.constant 0 : index
    %c0_40 = arith.constant 0 : index
    %85 = vector.load %arg1[%c2, %c0_39, %c0_40] : memref<4x2x8xf32, #tpu.memory_space<vmem>>, vector<1x2x8xf32>
    %86 = vector.shape_cast %85 : vector<1x2x8xf32> to vector<2x8xf32>
    %c2_41 = arith.constant 2 : index
    %c0_42 = arith.constant 0 : index
    %c0_43 = arith.constant 0 : index
    %87 = vector.load %arg2[%c2_41, %c0_42, %c0_43] : memref<4x2x8xf32, #tpu.memory_space<vmem>>, vector<1x2x8xf32>
    %88 = vector.shape_cast %87 : vector<1x2x8xf32> to vector<2x8xf32>
    %89 = arith.maximumf %86, %88 : vector<2x8xf32>
    %c7_i32_44 = arith.constant 7 : i32
    %90 = tpu.dynamic_rotate %86 by %c7_i32_44 dim 1 : vector<2x8xf32>, i32 -> vector<2x8xf32>
    %cst_45 = arith.constant 0.000000e+00 : f32
    %91 = vector.broadcast %cst_45 : f32 to vector<2x8xf32>
    %92 = arith.select %2, %91, %90 : vector<2x8xi1>, vector<2x8xf32>
    %93 = arith.maximumf %89, %92 : vector<2x8xf32>
    %c2_46 = arith.constant 2 : index
    %94 = memref.load %arg4[%c2_46] : memref<8xf32, #tpu.memory_space<smem>>
    %95 = vector.broadcast %94 : f32 to vector<1x1xf32>
    %c6 = arith.constant 6 : index
    %96 = memref.load %arg4[%c6] : memref<8xf32, #tpu.memory_space<smem>>
    %97 = vector.broadcast %96 : f32 to vector<1x1xf32>
    %cst_47 = arith.constant 6.250000e-02 : f32
    %98 = vector.broadcast %cst_47 : f32 to vector<1x1xf32>
    %99 = arith.mulf %95, %98 : vector<1x1xf32>
    %cst_48 = arith.constant 6.250000e-02 : f32
    %100 = vector.broadcast %cst_48 : f32 to vector<1x1xf32>
    %101 = arith.mulf %97, %100 : vector<1x1xf32>
    %102 = arith.mulf %99, %99 : vector<1x1xf32>
    %103 = arith.subf %101, %102 : vector<1x1xf32>
    %cst_49 = arith.constant 0.000000e+00 : f32
    %104 = vector.broadcast %cst_49 : f32 to vector<1x1xf32>
    %105 = arith.maximumf %103, %104 : vector<1x1xf32>
    %c2_50 = arith.constant 2 : index
    %106 = memref.load %arg5[%c2_50] : memref<4xf32, #tpu.memory_space<smem>>
    %107 = vector.broadcast %106 : f32 to vector<1x1xf32>
    %cst_51 = arith.constant 9.99999974E-6 : f32
    %108 = vector.broadcast %cst_51 : f32 to vector<1x1xf32>
    %109 = arith.addf %105, %108 : vector<1x1xf32>
    %110 = math.rsqrt %109 : vector<1x1xf32>
    %111 = arith.mulf %107, %110 : vector<1x1xf32>
    %c2_52 = arith.constant 2 : index
    %112 = memref.load %arg6[%c2_52] : memref<4xf32, #tpu.memory_space<smem>>
    %113 = vector.broadcast %112 : f32 to vector<1x1xf32>
    %114 = arith.mulf %99, %111 : vector<1x1xf32>
    %115 = arith.subf %113, %114 : vector<1x1xf32>
    %c2_53 = arith.constant 2 : index
    %c0_54 = arith.constant 0 : index
    %c0_55 = arith.constant 0 : index
    %116 = vector.load %arg3[%c2_53, %c0_54, %c0_55] : memref<4x2x8xf32, #tpu.memory_space<vmem>>, vector<1x2x8xf32>
    %117 = vector.shape_cast %116 : vector<1x2x8xf32> to vector<2x8xf32>
    %118 = vector.broadcast %111 : vector<1x1xf32> to vector<2x8xf32>
    %119 = arith.mulf %117, %118 : vector<2x8xf32>
    %120 = arith.addf %93, %119 : vector<2x8xf32>
    %121 = vector.broadcast %115 : vector<1x1xf32> to vector<2x8xf32>
    %122 = arith.addf %120, %121 : vector<2x8xf32>
    %c2_56 = arith.constant 2 : index
    %c0_57 = arith.constant 0 : index
    %c0_58 = arith.constant 0 : index
    %123 = vector.load %arg7[%c2_56, %c0_57, %c0_58] : memref<4x2x8xf32, #tpu.memory_space<vmem>>, vector<1x2x8xf32>
    %124 = vector.shape_cast %123 : vector<1x2x8xf32> to vector<2x8xf32>
    %125 = vector.shape_cast %122 : vector<2x8xf32> to vector<1x2x8xf32>
    tpu.vector_store %arg7[%c2_56, %c0_57, %c0_58], %125 {strides = array<i32>} : memref<4x2x8xf32, #tpu.memory_space<vmem>>, vector<1x2x8xf32>,
    %c3 = arith.constant 3 : index
    %c0_59 = arith.constant 0 : index
    %c0_60 = arith.constant 0 : index
    %126 = vector.load %arg1[%c3, %c0_59, %c0_60] : memref<4x2x8xf32, #tpu.memory_space<vmem>>, vector<1x2x8xf32>
    %127 = vector.shape_cast %126 : vector<1x2x8xf32> to vector<2x8xf32>
    %c3_61 = arith.constant 3 : index
    %c0_62 = arith.constant 0 : index
    %c0_63 = arith.constant 0 : index
    %128 = vector.load %arg2[%c3_61, %c0_62, %c0_63] : memref<4x2x8xf32, #tpu.memory_space<vmem>>, vector<1x2x8xf32>
    %129 = vector.shape_cast %128 : vector<1x2x8xf32> to vector<2x8xf32>
    %130 = arith.maximumf %127, %129 : vector<2x8xf32>
    %c7_i32_64 = arith.constant 7 : i32
    %131 = tpu.dynamic_rotate %127 by %c7_i32_64 dim 1 : vector<2x8xf32>, i32 -> vector<2x8xf32>
    %cst_65 = arith.constant 0.000000e+00 : f32
    %132 = vector.broadcast %cst_65 : f32 to vector<2x8xf32>
    %133 = arith.select %2, %132, %131 : vector<2x8xi1>, vector<2x8xf32>
    %134 = arith.maximumf %130, %133 : vector<2x8xf32>
    %c3_66 = arith.constant 3 : index
    %135 = memref.load %arg4[%c3_66] : memref<8xf32, #tpu.memory_space<smem>>
    %136 = vector.broadcast %135 : f32 to vector<1x1xf32>
    %c7 = arith.constant 7 : index
    %137 = memref.load %arg4[%c7] : memref<8xf32, #tpu.memory_space<smem>>
    %138 = vector.broadcast %137 : f32 to vector<1x1xf32>
    %cst_67 = arith.constant 6.250000e-02 : f32
    %139 = vector.broadcast %cst_67 : f32 to vector<1x1xf32>
    %140 = arith.mulf %136, %139 : vector<1x1xf32>
    %cst_68 = arith.constant 6.250000e-02 : f32
    %141 = vector.broadcast %cst_68 : f32 to vector<1x1xf32>
    %142 = arith.mulf %138, %141 : vector<1x1xf32>
    %143 = arith.mulf %140, %140 : vector<1x1xf32>
    %144 = arith.subf %142, %143 : vector<1x1xf32>
    %cst_69 = arith.constant 0.000000e+00 : f32
    %145 = vector.broadcast %cst_69 : f32 to vector<1x1xf32>
    %146 = arith.maximumf %144, %145 : vector<1x1xf32>
    %c3_70 = arith.constant 3 : index
    %147 = memref.load %arg5[%c3_70] : memref<4xf32, #tpu.memory_space<smem>>
    %148 = vector.broadcast %147 : f32 to vector<1x1xf32>
    %cst_71 = arith.constant 9.99999974E-6 : f32
    %149 = vector.broadcast %cst_71 : f32 to vector<1x1xf32>
    %150 = arith.addf %146, %149 : vector<1x1xf32>
    %151 = math.rsqrt %150 : vector<1x1xf32>
    %152 = arith.mulf %148, %151 : vector<1x1xf32>
    %c3_72 = arith.constant 3 : index
    %153 = memref.load %arg6[%c3_72] : memref<4xf32, #tpu.memory_space<smem>>
    %154 = vector.broadcast %153 : f32 to vector<1x1xf32>
    %155 = arith.mulf %140, %152 : vector<1x1xf32>
    %156 = arith.subf %154, %155 : vector<1x1xf32>
    %c3_73 = arith.constant 3 : index
    %c0_74 = arith.constant 0 : index
    %c0_75 = arith.constant 0 : index
    %157 = vector.load %arg3[%c3_73, %c0_74, %c0_75] : memref<4x2x8xf32, #tpu.memory_space<vmem>>, vector<1x2x8xf32>
    %158 = vector.shape_cast %157 : vector<1x2x8xf32> to vector<2x8xf32>
    %159 = vector.broadcast %152 : vector<1x1xf32> to vector<2x8xf32>
    %160 = arith.mulf %158, %159 : vector<2x8xf32>
    %161 = arith.addf %134, %160 : vector<2x8xf32>
    %162 = vector.broadcast %156 : vector<1x1xf32> to vector<2x8xf32>
    %163 = arith.addf %161, %162 : vector<2x8xf32>
    %c3_76 = arith.constant 3 : index
    %c0_77 = arith.constant 0 : index
    %c0_78 = arith.constant 0 : index
    %164 = vector.load %arg7[%c3_76, %c0_77, %c0_78] : memref<4x2x8xf32, #tpu.memory_space<vmem>>, vector<1x2x8xf32>
    %165 = vector.shape_cast %164 : vector<1x2x8xf32> to vector<2x8xf32>
    %166 = vector.shape_cast %163 : vector<2x8xf32> to vector<1x2x8xf32>
    tpu.vector_store %arg7[%c3_76, %c0_77, %c0_78], %166 {strides = array<i32>} : memref<4x2x8xf32, #tpu.memory_space<vmem>>, vector<1x2x8xf32>,
    return
  }
  func.func @transform_0(%arg0: i32) -> (i32, i32, i32) {
    %c0_i32 = arith.constant 0 : i32
    %c0_i32_0 = arith.constant 0 : i32
    %c0_i32_1 = arith.constant 0 : i32
    return %c0_i32, %arg0, %c0_i32_0 : i32, i32, i32
  }
  func.func @transform_1(%arg0: i32) -> (i32, i32, i32) {
    %c0_i32 = arith.constant 0 : i32
    %c0_i32_0 = arith.constant 0 : i32
    %c0_i32_1 = arith.constant 0 : i32
    return %c0_i32, %arg0, %c0_i32_0 : i32, i32, i32
  }
  func.func @transform_2(%arg0: i32) -> (i32, i32, i32) {
    %c0_i32 = arith.constant 0 : i32
    %c0_i32_0 = arith.constant 0 : i32
    %c0_i32_1 = arith.constant 0 : i32
    return %c0_i32, %arg0, %c0_i32_0 : i32, i32, i32
  }
  func.func @transform_3(%arg0: i32) -> i32 {
    %c0_i32 = arith.constant 0 : i32
    %c0_i32_0 = arith.constant 0 : i32
    return %c0_i32 : i32
  }
  func.func @transform_4(%arg0: i32) -> i32 {
    %c0_i32 = arith.constant 0 : i32
    %c0_i32_0 = arith.constant 0 : i32
    return %c0_i32 : i32
  }
  func.func @transform_5(%arg0: i32) -> i32 {
    %c0_i32 = arith.constant 0 : i32
    %c0_i32_0 = arith.constant 0 : i32
    return %c0_i32 : i32
  }
  func.func @transform_6(%arg0: i32) -> (i32, i32, i32) {
    %c0_i32 = arith.constant 0 : i32
    %c0_i32_0 = arith.constant 0 : i32
    %c0_i32_1 = arith.constant 0 : i32
    return %c0_i32, %arg0, %c0_i32_0 : i32, i32, i32
  }
}

module attributes {stable_mosaic.version = 11 : i64} {
  func.func @stage2_kernel(%arg0: i32, %arg1: memref<4x2x8xf32, #tpu.memory_space<vmem>>, %arg2: memref<8xf32, #tpu.memory_space<smem>>, %arg3: memref<4xf32, #tpu.memory_space<smem>>, %arg4: memref<4xf32, #tpu.memory_space<smem>>, %arg5: memref<48xf32, #tpu.memory_space<smem>>, %arg6: memref<4xf32, #tpu.memory_space<smem>>, %arg7: memref<4x2x8xf32, #tpu.memory_space<vmem>>, %arg8: memref<1x2x4xf32, #tpu.memory_space<vmem>>) attributes {dimension_semantics = [#tpu.dimension_semantics<parallel>], iteration_bounds = array<i64: 1>, scalar_prefetch = 0 : i64, scratch_operands = 0 : i64, tpu.core_type = #tpu.core_type<tc>, window_params = [{transform_indices = @transform_0, window_bounds = array<i64: 4, 2, 8>}, {transform_indices = @transform_1, window_bounds = array<i64: 8>}, {transform_indices = @transform_2, window_bounds = array<i64: 4>}, {transform_indices = @transform_3, window_bounds = array<i64: 4>}, {transform_indices = @transform_4, window_bounds = array<i64: 48>}, {transform_indices = @transform_5, window_bounds = array<i64: 4>}, {transform_indices = @transform_6, window_bounds = array<i64: 4, 2, 8>}, {transform_indices = @transform_7, window_bounds = array<i64: 1, 2, 4>}]} {
    %0 = tpu.iota {dimensions = array<i32: 1>} : vector<2x8xi32>
    %c0_i32 = arith.constant 0 : i32
    %1 = vector.broadcast %c0_i32 : i32 to vector<2x8xi32>
    %2 = arith.cmpi eq, %0, %1 : vector<2x8xi32>
    %c7_i32 = arith.constant 7 : i32
    %3 = vector.broadcast %c7_i32 : i32 to vector<2x8xi32>
    %4 = arith.cmpi eq, %0, %3 : vector<2x8xi32>
    %c0 = arith.constant 0 : index
    %5 = memref.load %arg2[%c0] : memref<8xf32, #tpu.memory_space<smem>>
    %6 = vector.broadcast %5 : f32 to vector<1x1xf32>
    %c4 = arith.constant 4 : index
    %7 = memref.load %arg2[%c4] : memref<8xf32, #tpu.memory_space<smem>>
    %8 = vector.broadcast %7 : f32 to vector<1x1xf32>
    %cst = arith.constant 6.250000e-02 : f32
    %9 = vector.broadcast %cst : f32 to vector<1x1xf32>
    %10 = arith.mulf %6, %9 : vector<1x1xf32>
    %cst_0 = arith.constant 6.250000e-02 : f32
    %11 = vector.broadcast %cst_0 : f32 to vector<1x1xf32>
    %12 = arith.mulf %8, %11 : vector<1x1xf32>
    %13 = arith.mulf %10, %10 : vector<1x1xf32>
    %14 = arith.subf %12, %13 : vector<1x1xf32>
    %cst_1 = arith.constant 0.000000e+00 : f32
    %15 = vector.broadcast %cst_1 : f32 to vector<1x1xf32>
    %16 = arith.maximumf %14, %15 : vector<1x1xf32>
    %c0_2 = arith.constant 0 : index
    %17 = memref.load %arg3[%c0_2] : memref<4xf32, #tpu.memory_space<smem>>
    %18 = vector.broadcast %17 : f32 to vector<1x1xf32>
    %cst_3 = arith.constant 9.99999974E-6 : f32
    %19 = vector.broadcast %cst_3 : f32 to vector<1x1xf32>
    %20 = arith.addf %16, %19 : vector<1x1xf32>
    %21 = math.rsqrt %20 : vector<1x1xf32>
    %22 = arith.mulf %18, %21 : vector<1x1xf32>
    %c0_4 = arith.constant 0 : index
    %23 = memref.load %arg4[%c0_4] : memref<4xf32, #tpu.memory_space<smem>>
    %24 = vector.broadcast %23 : f32 to vector<1x1xf32>
    %25 = arith.mulf %10, %22 : vector<1x1xf32>
    %26 = arith.subf %24, %25 : vector<1x1xf32>
    %c0_5 = arith.constant 0 : index
    %c0_6 = arith.constant 0 : index
    %c0_7 = arith.constant 0 : index
    %27 = vector.load %arg1[%c0_5, %c0_6, %c0_7] : memref<4x2x8xf32, #tpu.memory_space<vmem>>, vector<1x2x8xf32>
    %28 = vector.shape_cast %27 : vector<1x2x8xf32> to vector<2x8xf32>
    %29 = vector.broadcast %22 : vector<1x1xf32> to vector<2x8xf32>
    %30 = arith.mulf %28, %29 : vector<2x8xf32>
    %31 = vector.broadcast %26 : vector<1x1xf32> to vector<2x8xf32>
    %32 = arith.addf %30, %31 : vector<2x8xf32>
    %cst_8 = arith.constant 0.000000e+00 : f32
    %33 = vector.broadcast %cst_8 : f32 to vector<2x8xf32>
    %34 = arith.maximumf %32, %33 : vector<2x8xf32>
    %c1_i32 = arith.constant 1 : i32
    %35 = tpu.dynamic_rotate %34 by %c1_i32 dim 1 : vector<2x8xf32>, i32 -> vector<2x8xf32>
    %cst_9 = arith.constant 0.000000e+00 : f32
    %36 = vector.broadcast %cst_9 : f32 to vector<2x8xf32>
    %37 = arith.select %2, %36, %35 : vector<2x8xi1>, vector<2x8xf32>
    %c7_i32_10 = arith.constant 7 : i32
    %38 = tpu.dynamic_rotate %34 by %c7_i32_10 dim 1 : vector<2x8xf32>, i32 -> vector<2x8xf32>
    %cst_11 = arith.constant 0.000000e+00 : f32
    %39 = vector.broadcast %cst_11 : f32 to vector<2x8xf32>
    %40 = arith.select %4, %39, %38 : vector<2x8xi1>, vector<2x8xf32>
    %c1 = arith.constant 1 : index
    %41 = memref.load %arg2[%c1] : memref<8xf32, #tpu.memory_space<smem>>
    %42 = vector.broadcast %41 : f32 to vector<1x1xf32>
    %c5 = arith.constant 5 : index
    %43 = memref.load %arg2[%c5] : memref<8xf32, #tpu.memory_space<smem>>
    %44 = vector.broadcast %43 : f32 to vector<1x1xf32>
    %cst_12 = arith.constant 6.250000e-02 : f32
    %45 = vector.broadcast %cst_12 : f32 to vector<1x1xf32>
    %46 = arith.mulf %42, %45 : vector<1x1xf32>
    %cst_13 = arith.constant 6.250000e-02 : f32
    %47 = vector.broadcast %cst_13 : f32 to vector<1x1xf32>
    %48 = arith.mulf %44, %47 : vector<1x1xf32>
    %49 = arith.mulf %46, %46 : vector<1x1xf32>
    %50 = arith.subf %48, %49 : vector<1x1xf32>
    %cst_14 = arith.constant 0.000000e+00 : f32
    %51 = vector.broadcast %cst_14 : f32 to vector<1x1xf32>
    %52 = arith.maximumf %50, %51 : vector<1x1xf32>
    %c1_15 = arith.constant 1 : index
    %53 = memref.load %arg3[%c1_15] : memref<4xf32, #tpu.memory_space<smem>>
    %54 = vector.broadcast %53 : f32 to vector<1x1xf32>
    %cst_16 = arith.constant 9.99999974E-6 : f32
    %55 = vector.broadcast %cst_16 : f32 to vector<1x1xf32>
    %56 = arith.addf %52, %55 : vector<1x1xf32>
    %57 = math.rsqrt %56 : vector<1x1xf32>
    %58 = arith.mulf %54, %57 : vector<1x1xf32>
    %c1_17 = arith.constant 1 : index
    %59 = memref.load %arg4[%c1_17] : memref<4xf32, #tpu.memory_space<smem>>
    %60 = vector.broadcast %59 : f32 to vector<1x1xf32>
    %61 = arith.mulf %46, %58 : vector<1x1xf32>
    %62 = arith.subf %60, %61 : vector<1x1xf32>
    %c1_18 = arith.constant 1 : index
    %c0_19 = arith.constant 0 : index
    %c0_20 = arith.constant 0 : index
    %63 = vector.load %arg1[%c1_18, %c0_19, %c0_20] : memref<4x2x8xf32, #tpu.memory_space<vmem>>, vector<1x2x8xf32>
    %64 = vector.shape_cast %63 : vector<1x2x8xf32> to vector<2x8xf32>
    %65 = vector.broadcast %58 : vector<1x1xf32> to vector<2x8xf32>
    %66 = arith.mulf %64, %65 : vector<2x8xf32>
    %67 = vector.broadcast %62 : vector<1x1xf32> to vector<2x8xf32>
    %68 = arith.addf %66, %67 : vector<2x8xf32>
    %cst_21 = arith.constant 0.000000e+00 : f32
    %69 = vector.broadcast %cst_21 : f32 to vector<2x8xf32>
    %70 = arith.maximumf %68, %69 : vector<2x8xf32>
    %c1_i32_22 = arith.constant 1 : i32
    %71 = tpu.dynamic_rotate %70 by %c1_i32_22 dim 1 : vector<2x8xf32>, i32 -> vector<2x8xf32>
    %cst_23 = arith.constant 0.000000e+00 : f32
    %72 = vector.broadcast %cst_23 : f32 to vector<2x8xf32>
    %73 = arith.select %2, %72, %71 : vector<2x8xi1>, vector<2x8xf32>
    %c7_i32_24 = arith.constant 7 : i32
    %74 = tpu.dynamic_rotate %70 by %c7_i32_24 dim 1 : vector<2x8xf32>, i32 -> vector<2x8xf32>
    %cst_25 = arith.constant 0.000000e+00 : f32
    %75 = vector.broadcast %cst_25 : f32 to vector<2x8xf32>
    %76 = arith.select %4, %75, %74 : vector<2x8xi1>, vector<2x8xf32>
    %c2 = arith.constant 2 : index
    %77 = memref.load %arg2[%c2] : memref<8xf32, #tpu.memory_space<smem>>
    %78 = vector.broadcast %77 : f32 to vector<1x1xf32>
    %c6 = arith.constant 6 : index
    %79 = memref.load %arg2[%c6] : memref<8xf32, #tpu.memory_space<smem>>
    %80 = vector.broadcast %79 : f32 to vector<1x1xf32>
    %cst_26 = arith.constant 6.250000e-02 : f32
    %81 = vector.broadcast %cst_26 : f32 to vector<1x1xf32>
    %82 = arith.mulf %78, %81 : vector<1x1xf32>
    %cst_27 = arith.constant 6.250000e-02 : f32
    %83 = vector.broadcast %cst_27 : f32 to vector<1x1xf32>
    %84 = arith.mulf %80, %83 : vector<1x1xf32>
    %85 = arith.mulf %82, %82 : vector<1x1xf32>
    %86 = arith.subf %84, %85 : vector<1x1xf32>
    %cst_28 = arith.constant 0.000000e+00 : f32
    %87 = vector.broadcast %cst_28 : f32 to vector<1x1xf32>
    %88 = arith.maximumf %86, %87 : vector<1x1xf32>
    %c2_29 = arith.constant 2 : index
    %89 = memref.load %arg3[%c2_29] : memref<4xf32, #tpu.memory_space<smem>>
    %90 = vector.broadcast %89 : f32 to vector<1x1xf32>
    %cst_30 = arith.constant 9.99999974E-6 : f32
    %91 = vector.broadcast %cst_30 : f32 to vector<1x1xf32>
    %92 = arith.addf %88, %91 : vector<1x1xf32>
    %93 = math.rsqrt %92 : vector<1x1xf32>
    %94 = arith.mulf %90, %93 : vector<1x1xf32>
    %c2_31 = arith.constant 2 : index
    %95 = memref.load %arg4[%c2_31] : memref<4xf32, #tpu.memory_space<smem>>
    %96 = vector.broadcast %95 : f32 to vector<1x1xf32>
    %97 = arith.mulf %82, %94 : vector<1x1xf32>
    %98 = arith.subf %96, %97 : vector<1x1xf32>
    %c2_32 = arith.constant 2 : index
    %c0_33 = arith.constant 0 : index
    %c0_34 = arith.constant 0 : index
    %99 = vector.load %arg1[%c2_32, %c0_33, %c0_34] : memref<4x2x8xf32, #tpu.memory_space<vmem>>, vector<1x2x8xf32>
    %100 = vector.shape_cast %99 : vector<1x2x8xf32> to vector<2x8xf32>
    %101 = vector.broadcast %94 : vector<1x1xf32> to vector<2x8xf32>
    %102 = arith.mulf %100, %101 : vector<2x8xf32>
    %103 = vector.broadcast %98 : vector<1x1xf32> to vector<2x8xf32>
    %104 = arith.addf %102, %103 : vector<2x8xf32>
    %cst_35 = arith.constant 0.000000e+00 : f32
    %105 = vector.broadcast %cst_35 : f32 to vector<2x8xf32>
    %106 = arith.maximumf %104, %105 : vector<2x8xf32>
    %c1_i32_36 = arith.constant 1 : i32
    %107 = tpu.dynamic_rotate %106 by %c1_i32_36 dim 1 : vector<2x8xf32>, i32 -> vector<2x8xf32>
    %cst_37 = arith.constant 0.000000e+00 : f32
    %108 = vector.broadcast %cst_37 : f32 to vector<2x8xf32>
    %109 = arith.select %2, %108, %107 : vector<2x8xi1>, vector<2x8xf32>
    %c7_i32_38 = arith.constant 7 : i32
    %110 = tpu.dynamic_rotate %106 by %c7_i32_38 dim 1 : vector<2x8xf32>, i32 -> vector<2x8xf32>
    %cst_39 = arith.constant 0.000000e+00 : f32
    %111 = vector.broadcast %cst_39 : f32 to vector<2x8xf32>
    %112 = arith.select %4, %111, %110 : vector<2x8xi1>, vector<2x8xf32>
    %c3 = arith.constant 3 : index
    %113 = memref.load %arg2[%c3] : memref<8xf32, #tpu.memory_space<smem>>
    %114 = vector.broadcast %113 : f32 to vector<1x1xf32>
    %c7 = arith.constant 7 : index
    %115 = memref.load %arg2[%c7] : memref<8xf32, #tpu.memory_space<smem>>
    %116 = vector.broadcast %115 : f32 to vector<1x1xf32>
    %cst_40 = arith.constant 6.250000e-02 : f32
    %117 = vector.broadcast %cst_40 : f32 to vector<1x1xf32>
    %118 = arith.mulf %114, %117 : vector<1x1xf32>
    %cst_41 = arith.constant 6.250000e-02 : f32
    %119 = vector.broadcast %cst_41 : f32 to vector<1x1xf32>
    %120 = arith.mulf %116, %119 : vector<1x1xf32>
    %121 = arith.mulf %118, %118 : vector<1x1xf32>
    %122 = arith.subf %120, %121 : vector<1x1xf32>
    %cst_42 = arith.constant 0.000000e+00 : f32
    %123 = vector.broadcast %cst_42 : f32 to vector<1x1xf32>
    %124 = arith.maximumf %122, %123 : vector<1x1xf32>
    %c3_43 = arith.constant 3 : index
    %125 = memref.load %arg3[%c3_43] : memref<4xf32, #tpu.memory_space<smem>>
    %126 = vector.broadcast %125 : f32 to vector<1x1xf32>
    %cst_44 = arith.constant 9.99999974E-6 : f32
    %127 = vector.broadcast %cst_44 : f32 to vector<1x1xf32>
    %128 = arith.addf %124, %127 : vector<1x1xf32>
    %129 = math.rsqrt %128 : vector<1x1xf32>
    %130 = arith.mulf %126, %129 : vector<1x1xf32>
    %c3_45 = arith.constant 3 : index
    %131 = memref.load %arg4[%c3_45] : memref<4xf32, #tpu.memory_space<smem>>
    %132 = vector.broadcast %131 : f32 to vector<1x1xf32>
    %133 = arith.mulf %118, %130 : vector<1x1xf32>
    %134 = arith.subf %132, %133 : vector<1x1xf32>
    %c3_46 = arith.constant 3 : index
    %c0_47 = arith.constant 0 : index
    %c0_48 = arith.constant 0 : index
    %135 = vector.load %arg1[%c3_46, %c0_47, %c0_48] : memref<4x2x8xf32, #tpu.memory_space<vmem>>, vector<1x2x8xf32>
    %136 = vector.shape_cast %135 : vector<1x2x8xf32> to vector<2x8xf32>
    %137 = vector.broadcast %130 : vector<1x1xf32> to vector<2x8xf32>
    %138 = arith.mulf %136, %137 : vector<2x8xf32>
    %139 = vector.broadcast %134 : vector<1x1xf32> to vector<2x8xf32>
    %140 = arith.addf %138, %139 : vector<2x8xf32>
    %cst_49 = arith.constant 0.000000e+00 : f32
    %141 = vector.broadcast %cst_49 : f32 to vector<2x8xf32>
    %142 = arith.maximumf %140, %141 : vector<2x8xf32>
    %c1_i32_50 = arith.constant 1 : i32
    %143 = tpu.dynamic_rotate %142 by %c1_i32_50 dim 1 : vector<2x8xf32>, i32 -> vector<2x8xf32>
    %cst_51 = arith.constant 0.000000e+00 : f32
    %144 = vector.broadcast %cst_51 : f32 to vector<2x8xf32>
    %145 = arith.select %2, %144, %143 : vector<2x8xi1>, vector<2x8xf32>
    %c7_i32_52 = arith.constant 7 : i32
    %146 = tpu.dynamic_rotate %142 by %c7_i32_52 dim 1 : vector<2x8xf32>, i32 -> vector<2x8xf32>
    %cst_53 = arith.constant 0.000000e+00 : f32
    %147 = vector.broadcast %cst_53 : f32 to vector<2x8xf32>
    %148 = arith.select %4, %147, %146 : vector<2x8xi1>, vector<2x8xf32>
    %149 = tpu.iota {dimensions = array<i32: 1>} : vector<1x2x4xi32>
    %150 = tpu.iota {dimensions = array<i32: 2>} : vector<1x2x4xi32>
    %cst_54 = arith.constant 0.000000e+00 : f32
    %151 = vector.broadcast %cst_54 : f32 to vector<1x2x4xf32>
    %c0_55 = arith.constant 0 : index
    %152 = memref.load %arg5[%c0_55] : memref<48xf32, #tpu.memory_space<smem>>
    %153 = vector.broadcast %152 : f32 to vector<2x8xf32>
    %154 = arith.mulf %153, %37 : vector<2x8xf32>
    %c16 = arith.constant 16 : index
    %155 = memref.load %arg5[%c16] : memref<48xf32, #tpu.memory_space<smem>>
    %156 = vector.broadcast %155 : f32 to vector<2x8xf32>
    %157 = arith.mulf %156, %34 : vector<2x8xf32>
    %158 = arith.addf %154, %157 : vector<2x8xf32>
    %c32 = arith.constant 32 : index
    %159 = memref.load %arg5[%c32] : memref<48xf32, #tpu.memory_space<smem>>
    %160 = vector.broadcast %159 : f32 to vector<2x8xf32>
    %161 = arith.mulf %160, %40 : vector<2x8xf32>
    %162 = arith.addf %158, %161 : vector<2x8xf32>
    %c1_56 = arith.constant 1 : index
    %163 = memref.load %arg5[%c1_56] : memref<48xf32, #tpu.memory_space<smem>>
    %164 = vector.broadcast %163 : f32 to vector<2x8xf32>
    %165 = arith.mulf %164, %73 : vector<2x8xf32>
    %c17 = arith.constant 17 : index
    %166 = memref.load %arg5[%c17] : memref<48xf32, #tpu.memory_space<smem>>
    %167 = vector.broadcast %166 : f32 to vector<2x8xf32>
    %168 = arith.mulf %167, %70 : vector<2x8xf32>
    %169 = arith.addf %165, %168 : vector<2x8xf32>
    %c33 = arith.constant 33 : index
    %170 = memref.load %arg5[%c33] : memref<48xf32, #tpu.memory_space<smem>>
    %171 = vector.broadcast %170 : f32 to vector<2x8xf32>
    %172 = arith.mulf %171, %76 : vector<2x8xf32>
    %173 = arith.addf %169, %172 : vector<2x8xf32>
    %174 = arith.addf %162, %173 : vector<2x8xf32>
    %c2_57 = arith.constant 2 : index
    %175 = memref.load %arg5[%c2_57] : memref<48xf32, #tpu.memory_space<smem>>
    %176 = vector.broadcast %175 : f32 to vector<2x8xf32>
    %177 = arith.mulf %176, %109 : vector<2x8xf32>
    %c18 = arith.constant 18 : index
    %178 = memref.load %arg5[%c18] : memref<48xf32, #tpu.memory_space<smem>>
    %179 = vector.broadcast %178 : f32 to vector<2x8xf32>
    %180 = arith.mulf %179, %106 : vector<2x8xf32>
    %181 = arith.addf %177, %180 : vector<2x8xf32>
    %c34 = arith.constant 34 : index
    %182 = memref.load %arg5[%c34] : memref<48xf32, #tpu.memory_space<smem>>
    %183 = vector.broadcast %182 : f32 to vector<2x8xf32>
    %184 = arith.mulf %183, %112 : vector<2x8xf32>
    %185 = arith.addf %181, %184 : vector<2x8xf32>
    %186 = arith.addf %174, %185 : vector<2x8xf32>
    %c3_58 = arith.constant 3 : index
    %187 = memref.load %arg5[%c3_58] : memref<48xf32, #tpu.memory_space<smem>>
    %188 = vector.broadcast %187 : f32 to vector<2x8xf32>
    %189 = arith.mulf %188, %145 : vector<2x8xf32>
    %c19 = arith.constant 19 : index
    %190 = memref.load %arg5[%c19] : memref<48xf32, #tpu.memory_space<smem>>
    %191 = vector.broadcast %190 : f32 to vector<2x8xf32>
    %192 = arith.mulf %191, %142 : vector<2x8xf32>
    %193 = arith.addf %189, %192 : vector<2x8xf32>
    %c35 = arith.constant 35 : index
    %194 = memref.load %arg5[%c35] : memref<48xf32, #tpu.memory_space<smem>>
    %195 = vector.broadcast %194 : f32 to vector<2x8xf32>
    %196 = arith.mulf %195, %148 : vector<2x8xf32>
    %197 = arith.addf %193, %196 : vector<2x8xf32>
    %198 = arith.addf %186, %197 : vector<2x8xf32>
    %c0_59 = arith.constant 0 : index
    %199 = memref.load %arg6[%c0_59] : memref<4xf32, #tpu.memory_space<smem>>
    %200 = vector.broadcast %199 : f32 to vector<2x8xf32>
    %201 = arith.addf %198, %200 : vector<2x8xf32>
    %c0_60 = arith.constant 0 : index
    %c0_61 = arith.constant 0 : index
    %c0_62 = arith.constant 0 : index
    %202 = vector.load %arg7[%c0_60, %c0_61, %c0_62] : memref<4x2x8xf32, #tpu.memory_space<vmem>>, vector<1x2x8xf32>
    %203 = vector.shape_cast %202 : vector<1x2x8xf32> to vector<2x8xf32>
    %204 = vector.shape_cast %201 : vector<2x8xf32> to vector<1x2x8xf32>
    tpu.vector_store %arg7[%c0_60, %c0_61, %c0_62], %204 {strides = array<i32>} : memref<4x2x8xf32, #tpu.memory_space<vmem>>, vector<1x2x8xf32>,
    %205 = vector.shape_cast %201 : vector<2x8xf32> to vector<1x2x8xf32>
    %cst_63 = arith.constant dense<0.000000e+00> : vector<1xf32>
    %206 = vector.multi_reduction <add>, %205, %cst_63 [1, 2] : vector<1x2x8xf32> to vector<1xf32>
    %207 = vector.shape_cast %206 : vector<1xf32> to vector<1x1x1xf32>
    %208 = vector.extract %207[0, 0, 0] : f32 from vector<1x1x1xf32>
    %209 = vector.broadcast %208 : f32 to vector<1x1xf32>
    %210 = arith.mulf %201, %201 : vector<2x8xf32>
    %211 = vector.shape_cast %210 : vector<2x8xf32> to vector<1x2x8xf32>
    %cst_64 = arith.constant dense<0.000000e+00> : vector<1xf32>
    %212 = vector.multi_reduction <add>, %211, %cst_64 [1, 2] : vector<1x2x8xf32> to vector<1xf32>
    %213 = vector.shape_cast %212 : vector<1xf32> to vector<1x1x1xf32>
    %214 = vector.extract %213[0, 0, 0] : f32 from vector<1x1x1xf32>
    %215 = vector.broadcast %214 : f32 to vector<1x1xf32>
    %c0_i32_65 = arith.constant 0 : i32
    %216 = vector.broadcast %c0_i32_65 : i32 to vector<1x2x4xi32>
    %217 = arith.cmpi eq, %149, %216 : vector<1x2x4xi32>
    %c0_i32_66 = arith.constant 0 : i32
    %218 = vector.broadcast %c0_i32_66 : i32 to vector<1x2x4xi32>
    %219 = arith.cmpi eq, %150, %218 : vector<1x2x4xi32>
    %220 = arith.andi %217, %219 : vector<1x2x4xi1>
    %221 = vector.shape_cast %209 : vector<1x1xf32> to vector<1x1x1xf32>
    %222 = vector.broadcast %221 : vector<1x1x1xf32> to vector<1x2x4xf32>
    %223 = arith.select %220, %222, %151 : vector<1x2x4xi1>, vector<1x2x4xf32>
    %c1_i32_67 = arith.constant 1 : i32
    %224 = vector.broadcast %c1_i32_67 : i32 to vector<1x2x4xi32>
    %225 = arith.cmpi eq, %149, %224 : vector<1x2x4xi32>
    %c0_i32_68 = arith.constant 0 : i32
    %226 = vector.broadcast %c0_i32_68 : i32 to vector<1x2x4xi32>
    %227 = arith.cmpi eq, %150, %226 : vector<1x2x4xi32>
    %228 = arith.andi %225, %227 : vector<1x2x4xi1>
    %229 = vector.shape_cast %215 : vector<1x1xf32> to vector<1x1x1xf32>
    %230 = vector.broadcast %229 : vector<1x1x1xf32> to vector<1x2x4xf32>
    %231 = arith.select %228, %230, %223 : vector<1x2x4xi1>, vector<1x2x4xf32>
    %c4_69 = arith.constant 4 : index
    %232 = memref.load %arg5[%c4_69] : memref<48xf32, #tpu.memory_space<smem>>
    %233 = vector.broadcast %232 : f32 to vector<2x8xf32>
    %234 = arith.mulf %233, %37 : vector<2x8xf32>
    %c20 = arith.constant 20 : index
    %235 = memref.load %arg5[%c20] : memref<48xf32, #tpu.memory_space<smem>>
    %236 = vector.broadcast %235 : f32 to vector<2x8xf32>
    %237 = arith.mulf %236, %34 : vector<2x8xf32>
    %238 = arith.addf %234, %237 : vector<2x8xf32>
    %c36 = arith.constant 36 : index
    %239 = memref.load %arg5[%c36] : memref<48xf32, #tpu.memory_space<smem>>
    %240 = vector.broadcast %239 : f32 to vector<2x8xf32>
    %241 = arith.mulf %240, %40 : vector<2x8xf32>
    %242 = arith.addf %238, %241 : vector<2x8xf32>
    %c5_70 = arith.constant 5 : index
    %243 = memref.load %arg5[%c5_70] : memref<48xf32, #tpu.memory_space<smem>>
    %244 = vector.broadcast %243 : f32 to vector<2x8xf32>
    %245 = arith.mulf %244, %73 : vector<2x8xf32>
    %c21 = arith.constant 21 : index
    %246 = memref.load %arg5[%c21] : memref<48xf32, #tpu.memory_space<smem>>
    %247 = vector.broadcast %246 : f32 to vector<2x8xf32>
    %248 = arith.mulf %247, %70 : vector<2x8xf32>
    %249 = arith.addf %245, %248 : vector<2x8xf32>
    %c37 = arith.constant 37 : index
    %250 = memref.load %arg5[%c37] : memref<48xf32, #tpu.memory_space<smem>>
    %251 = vector.broadcast %250 : f32 to vector<2x8xf32>
    %252 = arith.mulf %251, %76 : vector<2x8xf32>
    %253 = arith.addf %249, %252 : vector<2x8xf32>
    %254 = arith.addf %242, %253 : vector<2x8xf32>
    %c6_71 = arith.constant 6 : index
    %255 = memref.load %arg5[%c6_71] : memref<48xf32, #tpu.memory_space<smem>>
    %256 = vector.broadcast %255 : f32 to vector<2x8xf32>
    %257 = arith.mulf %256, %109 : vector<2x8xf32>
    %c22 = arith.constant 22 : index
    %258 = memref.load %arg5[%c22] : memref<48xf32, #tpu.memory_space<smem>>
    %259 = vector.broadcast %258 : f32 to vector<2x8xf32>
    %260 = arith.mulf %259, %106 : vector<2x8xf32>
    %261 = arith.addf %257, %260 : vector<2x8xf32>
    %c38 = arith.constant 38 : index
    %262 = memref.load %arg5[%c38] : memref<48xf32, #tpu.memory_space<smem>>
    %263 = vector.broadcast %262 : f32 to vector<2x8xf32>
    %264 = arith.mulf %263, %112 : vector<2x8xf32>
    %265 = arith.addf %261, %264 : vector<2x8xf32>
    %266 = arith.addf %254, %265 : vector<2x8xf32>
    %c7_72 = arith.constant 7 : index
    %267 = memref.load %arg5[%c7_72] : memref<48xf32, #tpu.memory_space<smem>>
    %268 = vector.broadcast %267 : f32 to vector<2x8xf32>
    %269 = arith.mulf %268, %145 : vector<2x8xf32>
    %c23 = arith.constant 23 : index
    %270 = memref.load %arg5[%c23] : memref<48xf32, #tpu.memory_space<smem>>
    %271 = vector.broadcast %270 : f32 to vector<2x8xf32>
    %272 = arith.mulf %271, %142 : vector<2x8xf32>
    %273 = arith.addf %269, %272 : vector<2x8xf32>
    %c39 = arith.constant 39 : index
    %274 = memref.load %arg5[%c39] : memref<48xf32, #tpu.memory_space<smem>>
    %275 = vector.broadcast %274 : f32 to vector<2x8xf32>
    %276 = arith.mulf %275, %148 : vector<2x8xf32>
    %277 = arith.addf %273, %276 : vector<2x8xf32>
    %278 = arith.addf %266, %277 : vector<2x8xf32>
    %c1_73 = arith.constant 1 : index
    %279 = memref.load %arg6[%c1_73] : memref<4xf32, #tpu.memory_space<smem>>
    %280 = vector.broadcast %279 : f32 to vector<2x8xf32>
    %281 = arith.addf %278, %280 : vector<2x8xf32>
    %c1_74 = arith.constant 1 : index
    %c0_75 = arith.constant 0 : index
    %c0_76 = arith.constant 0 : index
    %282 = vector.load %arg7[%c1_74, %c0_75, %c0_76] : memref<4x2x8xf32, #tpu.memory_space<vmem>>, vector<1x2x8xf32>
    %283 = vector.shape_cast %282 : vector<1x2x8xf32> to vector<2x8xf32>
    %284 = vector.shape_cast %281 : vector<2x8xf32> to vector<1x2x8xf32>
    tpu.vector_store %arg7[%c1_74, %c0_75, %c0_76], %284 {strides = array<i32>} : memref<4x2x8xf32, #tpu.memory_space<vmem>>, vector<1x2x8xf32>,
    %285 = vector.shape_cast %281 : vector<2x8xf32> to vector<1x2x8xf32>
    %cst_77 = arith.constant dense<0.000000e+00> : vector<1xf32>
    %286 = vector.multi_reduction <add>, %285, %cst_77 [1, 2] : vector<1x2x8xf32> to vector<1xf32>
    %287 = vector.shape_cast %286 : vector<1xf32> to vector<1x1x1xf32>
    %288 = vector.extract %287[0, 0, 0] : f32 from vector<1x1x1xf32>
    %289 = vector.broadcast %288 : f32 to vector<1x1xf32>
    %290 = arith.mulf %281, %281 : vector<2x8xf32>
    %291 = vector.shape_cast %290 : vector<2x8xf32> to vector<1x2x8xf32>
    %cst_78 = arith.constant dense<0.000000e+00> : vector<1xf32>
    %292 = vector.multi_reduction <add>, %291, %cst_78 [1, 2] : vector<1x2x8xf32> to vector<1xf32>
    %293 = vector.shape_cast %292 : vector<1xf32> to vector<1x1x1xf32>
    %294 = vector.extract %293[0, 0, 0] : f32 from vector<1x1x1xf32>
    %295 = vector.broadcast %294 : f32 to vector<1x1xf32>
    %c0_i32_79 = arith.constant 0 : i32
    %296 = vector.broadcast %c0_i32_79 : i32 to vector<1x2x4xi32>
    %297 = arith.cmpi eq, %149, %296 : vector<1x2x4xi32>
    %c1_i32_80 = arith.constant 1 : i32
    %298 = vector.broadcast %c1_i32_80 : i32 to vector<1x2x4xi32>
    %299 = arith.cmpi eq, %150, %298 : vector<1x2x4xi32>
    %300 = arith.andi %297, %299 : vector<1x2x4xi1>
    %301 = vector.shape_cast %289 : vector<1x1xf32> to vector<1x1x1xf32>
    %302 = vector.broadcast %301 : vector<1x1x1xf32> to vector<1x2x4xf32>
    %303 = arith.select %300, %302, %231 : vector<1x2x4xi1>, vector<1x2x4xf32>
    %c1_i32_81 = arith.constant 1 : i32
    %304 = vector.broadcast %c1_i32_81 : i32 to vector<1x2x4xi32>
    %305 = arith.cmpi eq, %149, %304 : vector<1x2x4xi32>
    %c1_i32_82 = arith.constant 1 : i32
    %306 = vector.broadcast %c1_i32_82 : i32 to vector<1x2x4xi32>
    %307 = arith.cmpi eq, %150, %306 : vector<1x2x4xi32>
    %308 = arith.andi %305, %307 : vector<1x2x4xi1>
    %309 = vector.shape_cast %295 : vector<1x1xf32> to vector<1x1x1xf32>
    %310 = vector.broadcast %309 : vector<1x1x1xf32> to vector<1x2x4xf32>
    %311 = arith.select %308, %310, %303 : vector<1x2x4xi1>, vector<1x2x4xf32>
    %c8 = arith.constant 8 : index
    %312 = memref.load %arg5[%c8] : memref<48xf32, #tpu.memory_space<smem>>
    %313 = vector.broadcast %312 : f32 to vector<2x8xf32>
    %314 = arith.mulf %313, %37 : vector<2x8xf32>
    %c24 = arith.constant 24 : index
    %315 = memref.load %arg5[%c24] : memref<48xf32, #tpu.memory_space<smem>>
    %316 = vector.broadcast %315 : f32 to vector<2x8xf32>
    %317 = arith.mulf %316, %34 : vector<2x8xf32>
    %318 = arith.addf %314, %317 : vector<2x8xf32>
    %c40 = arith.constant 40 : index
    %319 = memref.load %arg5[%c40] : memref<48xf32, #tpu.memory_space<smem>>
    %320 = vector.broadcast %319 : f32 to vector<2x8xf32>
    %321 = arith.mulf %320, %40 : vector<2x8xf32>
    %322 = arith.addf %318, %321 : vector<2x8xf32>
    %c9 = arith.constant 9 : index
    %323 = memref.load %arg5[%c9] : memref<48xf32, #tpu.memory_space<smem>>
    %324 = vector.broadcast %323 : f32 to vector<2x8xf32>
    %325 = arith.mulf %324, %73 : vector<2x8xf32>
    %c25 = arith.constant 25 : index
    %326 = memref.load %arg5[%c25] : memref<48xf32, #tpu.memory_space<smem>>
    %327 = vector.broadcast %326 : f32 to vector<2x8xf32>
    %328 = arith.mulf %327, %70 : vector<2x8xf32>
    %329 = arith.addf %325, %328 : vector<2x8xf32>
    %c41 = arith.constant 41 : index
    %330 = memref.load %arg5[%c41] : memref<48xf32, #tpu.memory_space<smem>>
    %331 = vector.broadcast %330 : f32 to vector<2x8xf32>
    %332 = arith.mulf %331, %76 : vector<2x8xf32>
    %333 = arith.addf %329, %332 : vector<2x8xf32>
    %334 = arith.addf %322, %333 : vector<2x8xf32>
    %c10 = arith.constant 10 : index
    %335 = memref.load %arg5[%c10] : memref<48xf32, #tpu.memory_space<smem>>
    %336 = vector.broadcast %335 : f32 to vector<2x8xf32>
    %337 = arith.mulf %336, %109 : vector<2x8xf32>
    %c26 = arith.constant 26 : index
    %338 = memref.load %arg5[%c26] : memref<48xf32, #tpu.memory_space<smem>>
    %339 = vector.broadcast %338 : f32 to vector<2x8xf32>
    %340 = arith.mulf %339, %106 : vector<2x8xf32>
    %341 = arith.addf %337, %340 : vector<2x8xf32>
    %c42 = arith.constant 42 : index
    %342 = memref.load %arg5[%c42] : memref<48xf32, #tpu.memory_space<smem>>
    %343 = vector.broadcast %342 : f32 to vector<2x8xf32>
    %344 = arith.mulf %343, %112 : vector<2x8xf32>
    %345 = arith.addf %341, %344 : vector<2x8xf32>
    %346 = arith.addf %334, %345 : vector<2x8xf32>
    %c11 = arith.constant 11 : index
    %347 = memref.load %arg5[%c11] : memref<48xf32, #tpu.memory_space<smem>>
    %348 = vector.broadcast %347 : f32 to vector<2x8xf32>
    %349 = arith.mulf %348, %145 : vector<2x8xf32>
    %c27 = arith.constant 27 : index
    %350 = memref.load %arg5[%c27] : memref<48xf32, #tpu.memory_space<smem>>
    %351 = vector.broadcast %350 : f32 to vector<2x8xf32>
    %352 = arith.mulf %351, %142 : vector<2x8xf32>
    %353 = arith.addf %349, %352 : vector<2x8xf32>
    %c43 = arith.constant 43 : index
    %354 = memref.load %arg5[%c43] : memref<48xf32, #tpu.memory_space<smem>>
    %355 = vector.broadcast %354 : f32 to vector<2x8xf32>
    %356 = arith.mulf %355, %148 : vector<2x8xf32>
    %357 = arith.addf %353, %356 : vector<2x8xf32>
    %358 = arith.addf %346, %357 : vector<2x8xf32>
    %c2_83 = arith.constant 2 : index
    %359 = memref.load %arg6[%c2_83] : memref<4xf32, #tpu.memory_space<smem>>
    %360 = vector.broadcast %359 : f32 to vector<2x8xf32>
    %361 = arith.addf %358, %360 : vector<2x8xf32>
    %c2_84 = arith.constant 2 : index
    %c0_85 = arith.constant 0 : index
    %c0_86 = arith.constant 0 : index
    %362 = vector.load %arg7[%c2_84, %c0_85, %c0_86] : memref<4x2x8xf32, #tpu.memory_space<vmem>>, vector<1x2x8xf32>
    %363 = vector.shape_cast %362 : vector<1x2x8xf32> to vector<2x8xf32>
    %364 = vector.shape_cast %361 : vector<2x8xf32> to vector<1x2x8xf32>
    tpu.vector_store %arg7[%c2_84, %c0_85, %c0_86], %364 {strides = array<i32>} : memref<4x2x8xf32, #tpu.memory_space<vmem>>, vector<1x2x8xf32>,
    %365 = vector.shape_cast %361 : vector<2x8xf32> to vector<1x2x8xf32>
    %cst_87 = arith.constant dense<0.000000e+00> : vector<1xf32>
    %366 = vector.multi_reduction <add>, %365, %cst_87 [1, 2] : vector<1x2x8xf32> to vector<1xf32>
    %367 = vector.shape_cast %366 : vector<1xf32> to vector<1x1x1xf32>
    %368 = vector.extract %367[0, 0, 0] : f32 from vector<1x1x1xf32>
    %369 = vector.broadcast %368 : f32 to vector<1x1xf32>
    %370 = arith.mulf %361, %361 : vector<2x8xf32>
    %371 = vector.shape_cast %370 : vector<2x8xf32> to vector<1x2x8xf32>
    %cst_88 = arith.constant dense<0.000000e+00> : vector<1xf32>
    %372 = vector.multi_reduction <add>, %371, %cst_88 [1, 2] : vector<1x2x8xf32> to vector<1xf32>
    %373 = vector.shape_cast %372 : vector<1xf32> to vector<1x1x1xf32>
    %374 = vector.extract %373[0, 0, 0] : f32 from vector<1x1x1xf32>
    %375 = vector.broadcast %374 : f32 to vector<1x1xf32>
    %c0_i32_89 = arith.constant 0 : i32
    %376 = vector.broadcast %c0_i32_89 : i32 to vector<1x2x4xi32>
    %377 = arith.cmpi eq, %149, %376 : vector<1x2x4xi32>
    %c2_i32 = arith.constant 2 : i32
    %378 = vector.broadcast %c2_i32 : i32 to vector<1x2x4xi32>
    %379 = arith.cmpi eq, %150, %378 : vector<1x2x4xi32>
    %380 = arith.andi %377, %379 : vector<1x2x4xi1>
    %381 = vector.shape_cast %369 : vector<1x1xf32> to vector<1x1x1xf32>
    %382 = vector.broadcast %381 : vector<1x1x1xf32> to vector<1x2x4xf32>
    %383 = arith.select %380, %382, %311 : vector<1x2x4xi1>, vector<1x2x4xf32>
    %c1_i32_90 = arith.constant 1 : i32
    %384 = vector.broadcast %c1_i32_90 : i32 to vector<1x2x4xi32>
    %385 = arith.cmpi eq, %149, %384 : vector<1x2x4xi32>
    %c2_i32_91 = arith.constant 2 : i32
    %386 = vector.broadcast %c2_i32_91 : i32 to vector<1x2x4xi32>
    %387 = arith.cmpi eq, %150, %386 : vector<1x2x4xi32>
    %388 = arith.andi %385, %387 : vector<1x2x4xi1>
    %389 = vector.shape_cast %375 : vector<1x1xf32> to vector<1x1x1xf32>
    %390 = vector.broadcast %389 : vector<1x1x1xf32> to vector<1x2x4xf32>
    %391 = arith.select %388, %390, %383 : vector<1x2x4xi1>, vector<1x2x4xf32>
    %c12 = arith.constant 12 : index
    %392 = memref.load %arg5[%c12] : memref<48xf32, #tpu.memory_space<smem>>
    %393 = vector.broadcast %392 : f32 to vector<2x8xf32>
    %394 = arith.mulf %393, %37 : vector<2x8xf32>
    %c28 = arith.constant 28 : index
    %395 = memref.load %arg5[%c28] : memref<48xf32, #tpu.memory_space<smem>>
    %396 = vector.broadcast %395 : f32 to vector<2x8xf32>
    %397 = arith.mulf %396, %34 : vector<2x8xf32>
    %398 = arith.addf %394, %397 : vector<2x8xf32>
    %c44 = arith.constant 44 : index
    %399 = memref.load %arg5[%c44] : memref<48xf32, #tpu.memory_space<smem>>
    %400 = vector.broadcast %399 : f32 to vector<2x8xf32>
    %401 = arith.mulf %400, %40 : vector<2x8xf32>
    %402 = arith.addf %398, %401 : vector<2x8xf32>
    %c13 = arith.constant 13 : index
    %403 = memref.load %arg5[%c13] : memref<48xf32, #tpu.memory_space<smem>>
    %404 = vector.broadcast %403 : f32 to vector<2x8xf32>
    %405 = arith.mulf %404, %73 : vector<2x8xf32>
    %c29 = arith.constant 29 : index
    %406 = memref.load %arg5[%c29] : memref<48xf32, #tpu.memory_space<smem>>
    %407 = vector.broadcast %406 : f32 to vector<2x8xf32>
    %408 = arith.mulf %407, %70 : vector<2x8xf32>
    %409 = arith.addf %405, %408 : vector<2x8xf32>
    %c45 = arith.constant 45 : index
    %410 = memref.load %arg5[%c45] : memref<48xf32, #tpu.memory_space<smem>>
    %411 = vector.broadcast %410 : f32 to vector<2x8xf32>
    %412 = arith.mulf %411, %76 : vector<2x8xf32>
    %413 = arith.addf %409, %412 : vector<2x8xf32>
    %414 = arith.addf %402, %413 : vector<2x8xf32>
    %c14 = arith.constant 14 : index
    %415 = memref.load %arg5[%c14] : memref<48xf32, #tpu.memory_space<smem>>
    %416 = vector.broadcast %415 : f32 to vector<2x8xf32>
    %417 = arith.mulf %416, %109 : vector<2x8xf32>
    %c30 = arith.constant 30 : index
    %418 = memref.load %arg5[%c30] : memref<48xf32, #tpu.memory_space<smem>>
    %419 = vector.broadcast %418 : f32 to vector<2x8xf32>
    %420 = arith.mulf %419, %106 : vector<2x8xf32>
    %421 = arith.addf %417, %420 : vector<2x8xf32>
    %c46 = arith.constant 46 : index
    %422 = memref.load %arg5[%c46] : memref<48xf32, #tpu.memory_space<smem>>
    %423 = vector.broadcast %422 : f32 to vector<2x8xf32>
    %424 = arith.mulf %423, %112 : vector<2x8xf32>
    %425 = arith.addf %421, %424 : vector<2x8xf32>
    %426 = arith.addf %414, %425 : vector<2x8xf32>
    %c15 = arith.constant 15 : index
    %427 = memref.load %arg5[%c15] : memref<48xf32, #tpu.memory_space<smem>>
    %428 = vector.broadcast %427 : f32 to vector<2x8xf32>
    %429 = arith.mulf %428, %145 : vector<2x8xf32>
    %c31 = arith.constant 31 : index
    %430 = memref.load %arg5[%c31] : memref<48xf32, #tpu.memory_space<smem>>
    %431 = vector.broadcast %430 : f32 to vector<2x8xf32>
    %432 = arith.mulf %431, %142 : vector<2x8xf32>
    %433 = arith.addf %429, %432 : vector<2x8xf32>
    %c47 = arith.constant 47 : index
    %434 = memref.load %arg5[%c47] : memref<48xf32, #tpu.memory_space<smem>>
    %435 = vector.broadcast %434 : f32 to vector<2x8xf32>
    %436 = arith.mulf %435, %148 : vector<2x8xf32>
    %437 = arith.addf %433, %436 : vector<2x8xf32>
    %438 = arith.addf %426, %437 : vector<2x8xf32>
    %c3_92 = arith.constant 3 : index
    %439 = memref.load %arg6[%c3_92] : memref<4xf32, #tpu.memory_space<smem>>
    %440 = vector.broadcast %439 : f32 to vector<2x8xf32>
    %441 = arith.addf %438, %440 : vector<2x8xf32>
    %c3_93 = arith.constant 3 : index
    %c0_94 = arith.constant 0 : index
    %c0_95 = arith.constant 0 : index
    %442 = vector.load %arg7[%c3_93, %c0_94, %c0_95] : memref<4x2x8xf32, #tpu.memory_space<vmem>>, vector<1x2x8xf32>
    %443 = vector.shape_cast %442 : vector<1x2x8xf32> to vector<2x8xf32>
    %444 = vector.shape_cast %441 : vector<2x8xf32> to vector<1x2x8xf32>
    tpu.vector_store %arg7[%c3_93, %c0_94, %c0_95], %444 {strides = array<i32>} : memref<4x2x8xf32, #tpu.memory_space<vmem>>, vector<1x2x8xf32>,
    %445 = vector.shape_cast %441 : vector<2x8xf32> to vector<1x2x8xf32>
    %cst_96 = arith.constant dense<0.000000e+00> : vector<1xf32>
    %446 = vector.multi_reduction <add>, %445, %cst_96 [1, 2] : vector<1x2x8xf32> to vector<1xf32>
    %447 = vector.shape_cast %446 : vector<1xf32> to vector<1x1x1xf32>
    %448 = vector.extract %447[0, 0, 0] : f32 from vector<1x1x1xf32>
    %449 = vector.broadcast %448 : f32 to vector<1x1xf32>
    %450 = arith.mulf %441, %441 : vector<2x8xf32>
    %451 = vector.shape_cast %450 : vector<2x8xf32> to vector<1x2x8xf32>
    %cst_97 = arith.constant dense<0.000000e+00> : vector<1xf32>
    %452 = vector.multi_reduction <add>, %451, %cst_97 [1, 2] : vector<1x2x8xf32> to vector<1xf32>
    %453 = vector.shape_cast %452 : vector<1xf32> to vector<1x1x1xf32>
    %454 = vector.extract %453[0, 0, 0] : f32 from vector<1x1x1xf32>
    %455 = vector.broadcast %454 : f32 to vector<1x1xf32>
    %c0_i32_98 = arith.constant 0 : i32
    %456 = vector.broadcast %c0_i32_98 : i32 to vector<1x2x4xi32>
    %457 = arith.cmpi eq, %149, %456 : vector<1x2x4xi32>
    %c3_i32 = arith.constant 3 : i32
    %458 = vector.broadcast %c3_i32 : i32 to vector<1x2x4xi32>
    %459 = arith.cmpi eq, %150, %458 : vector<1x2x4xi32>
    %460 = arith.andi %457, %459 : vector<1x2x4xi1>
    %461 = vector.shape_cast %449 : vector<1x1xf32> to vector<1x1x1xf32>
    %462 = vector.broadcast %461 : vector<1x1x1xf32> to vector<1x2x4xf32>
    %463 = arith.select %460, %462, %391 : vector<1x2x4xi1>, vector<1x2x4xf32>
    %c1_i32_99 = arith.constant 1 : i32
    %464 = vector.broadcast %c1_i32_99 : i32 to vector<1x2x4xi32>
    %465 = arith.cmpi eq, %149, %464 : vector<1x2x4xi32>
    %c3_i32_100 = arith.constant 3 : i32
    %466 = vector.broadcast %c3_i32_100 : i32 to vector<1x2x4xi32>
    %467 = arith.cmpi eq, %150, %466 : vector<1x2x4xi32>
    %468 = arith.andi %465, %467 : vector<1x2x4xi1>
    %469 = vector.shape_cast %455 : vector<1x1xf32> to vector<1x1x1xf32>
    %470 = vector.broadcast %469 : vector<1x1x1xf32> to vector<1x2x4xf32>
    %471 = arith.select %468, %470, %463 : vector<1x2x4xi1>, vector<1x2x4xf32>
    %c0_101 = arith.constant 0 : index
    %c0_102 = arith.constant 0 : index
    %c0_103 = arith.constant 0 : index
    %472 = vector.load %arg8[%c0_101, %c0_102, %c0_103] : memref<1x2x4xf32, #tpu.memory_space<vmem>>, vector<1x2x4xf32>
    tpu.vector_store %arg8[%c0_101, %c0_102, %c0_103], %471 {strides = array<i32>} : memref<1x2x4xf32, #tpu.memory_space<vmem>>, vector<1x2x4xf32>,
    return
  }
  func.func @transform_0(%arg0: i32) -> (i32, i32, i32) {
    %c0_i32 = arith.constant 0 : i32
    %c0_i32_0 = arith.constant 0 : i32
    %c0_i32_1 = arith.constant 0 : i32
    return %c0_i32, %arg0, %c0_i32_0 : i32, i32, i32
  }
  func.func @transform_1(%arg0: i32) -> i32 {
    %c0_i32 = arith.constant 0 : i32
    %c0_i32_0 = arith.constant 0 : i32
    return %c0_i32 : i32
  }
  func.func @transform_2(%arg0: i32) -> i32 {
    %c0_i32 = arith.constant 0 : i32
    %c0_i32_0 = arith.constant 0 : i32
    return %c0_i32 : i32
  }
  func.func @transform_3(%arg0: i32) -> i32 {
    %c0_i32 = arith.constant 0 : i32
    %c0_i32_0 = arith.constant 0 : i32
    return %c0_i32 : i32
  }
  func.func @transform_4(%arg0: i32) -> i32 {
    %c0_i32 = arith.constant 0 : i32
    %c0_i32_0 = arith.constant 0 : i32
    return %c0_i32 : i32
  }
  func.func @transform_5(%arg0: i32) -> i32 {
    %c0_i32 = arith.constant 0 : i32
    %c0_i32_0 = arith.constant 0 : i32
    return %c0_i32 : i32
  }
  func.func @transform_6(%arg0: i32) -> (i32, i32, i32) {
    %c0_i32 = arith.constant 0 : i32
    %c0_i32_0 = arith.constant 0 : i32
    %c0_i32_1 = arith.constant 0 : i32
    return %c0_i32, %arg0, %c0_i32_0 : i32, i32, i32
  }
  func.func @transform_7(%arg0: i32) -> (i32, i32, i32) {
    %c0_i32 = arith.constant 0 : i32
    %c0_i32_0 = arith.constant 0 : i32
    %c0_i32_1 = arith.constant 0 : i32
    return %arg0, %c0_i32, %c0_i32_0 : i32, i32, i32
  }
}

</mosaic_0001>

<llo_original>
// kernel: resblock_forward.5
$region0: #{resblock_forward.5}
  #allocation0 [shape = 'u32[]', space=smem, size = 0x4, offset = 0x4, fixed_abs, tag = 'smem constant byte address 0x4 - core index']
  #allocation1 [shape = 'u32[144,128]{1,0:T(1,128)}', space=vmem, size = 0x12000, scoped, tag = 'internal scratch']
  %s0 = inlined_call_operand.vmem [shape: f32[4,2,8], index: 0, kind: input, shape index: {}]
  %s1 = inlined_call_operand.vmem [shape: f32[4,2,8], index: 1, kind: input, shape index: {}]
  %s2 = inlined_call_operand.vmem [shape: f32[4,2,8], index: 2, kind: input, shape index: {}]
  %s3 = inlined_call_operand.vmem [shape: f32[8], index: 3, kind: input, shape index: {}]
  %s4 = inlined_call_operand.vmem [shape: f32[4], index: 4, kind: input, shape index: {}]
  %s5 = inlined_call_operand.vmem [shape: f32[4], index: 5, kind: input, shape index: {}]
  %s6 = inlined_call_operand.vmem [shape: f32[4,2,8], index: 6, kind: output, shape index: {}]
  %s7 = sld [smem:[#allocation0]]
  $region46: #{resblock_forward.5} parent=0
    _
  %s9 = ssub.s32 1, %s7
  %s10 = scalar_select 0, %s9, %s7
  $region1: #{resblock_forward.5} parent=0
    #allocation2 [shape = 'u8[512]{0}', space=smem, size = 0x200, scoped, tag = 'input window, operand 3, single buffered']
    #allocation3 [shape = 's32[1]{0}', space=sflag, size = 0x4, scoped, tag = 'scoped memory for resblock_forward.5']
    #allocation4 [shape = 'u8[512]{0}', space=smem, size = 0x200, scoped, tag = 'input window, operand 4, single buffered']
    #allocation5 [shape = 's32[1]{0}', space=sflag, size = 0x4, scoped, tag = 'scoped memory for resblock_forward.5']
    #allocation6 [shape = 'u8[512]{0}', space=smem, size = 0x200, scoped, tag = 'input window, operand 5, single buffered']
    %11 = vsyncpa [#allocation3], 0
    %12 = vsyncpa [#allocation5], 0
    // Predicated region
    $region2: #{resblock_forward.5} parent=1 // pred_check
      _
    $region3: #{resblock_forward.5} parent=1 // pred_check_branch
      %14 = sbr.rel (0) target = $region5
    $region4: #{resblock_forward.5} parent=1 // pred_region
      _
    $region5: #{resblock_forward.5} parent=1 // pred_fallthru
      _
    // Predicated region
    $region6: #{resblock_forward.5} parent=1 // pred_check
      _
    $region7: #{resblock_forward.5} parent=1 // pred_check_branch
      %16 = sbr.rel (0) target = $region9
    $region8: #{resblock_forward.5} parent=1 // pred_region
      _
    $region9: #{resblock_forward.5} parent=1 // pred_fallthru
      _
    // Predicated region
    $region10: #{resblock_forward.5} parent=1 // pred_check
      _
    $region11: #{resblock_forward.5} parent=1 // pred_check_branch
      %18 = sbr.rel (0) target = $region13
    $region12: #{resblock_forward.5} parent=1 // pred_region
      _
    $region13: #{resblock_forward.5} parent=1 // pred_fallthru
      _
    // Predicated region
    $region14: #{resblock_forward.5} parent=1 // pred_check
      _
    $region15: #{resblock_forward.5} parent=1 // pred_check_branch
      %20 = sbr.rel (0) target = $region17
    $region16: #{resblock_forward.5} parent=1 // pred_region
      %s22 = ssub.s32 16, 16
      %23 = vsyncadd [#allocation3], %s22
      %s25 = sshll.u32 %s3, 4
      %s26 = int_to_ptr.vmem [resolvable:$true] %s25
      %28 = dma.vmem_to_smem %s26, 16, [#allocation2], [#allocation3]
    $region17: #{resblock_forward.5} parent=1 // pred_fallthru
      _
    // Predicated region
    $region18: #{resblock_forward.5} parent=1 // pred_check
      _
    $region19: #{resblock_forward.5} parent=1 // pred_check_branch
      %30 = sbr.rel (0) target = $region21
    $region20: #{resblock_forward.5} parent=1 // pred_region
      %s32 = ssub.s32 16, 16
      %33 = vsyncadd [#allocation5], %s32
      %s35 = sshll.u32 %s4, 4
      %s36 = int_to_ptr.vmem [resolvable:$true] %s35
      %38 = dma.vmem_to_smem %s36, 16, [#allocation4], [#allocation5]
    $region21: #{resblock_forward.5} parent=1 // pred_fallthru
      _
    // Predicated region
    $region22: #{resblock_forward.5} parent=1 // pred_check
      _
    $region23: #{resblock_forward.5} parent=1 // pred_check_branch
      %40 = sbr.rel (0) target = $region25
    $region24: #{resblock_forward.5} parent=1 // pred_region
      %s42 = ssub.s32 16, 16
      %43 = vsyncadd [#allocation5], %s42
      %s45 = sshll.u32 %s5, 4
      %s46 = int_to_ptr.vmem [resolvable:$true] %s45
      %48 = dma.vmem_to_smem %s46, 16, [#allocation6], [#allocation5]
    $region25: #{resblock_forward.5} parent=1 // pred_fallthru
      _
    // Predicated region
    $region26: #{resblock_forward.5} parent=1 // pred_check
      _
    $region27: #{resblock_forward.5} parent=1 // pred_check_branch
      %50 = sbr.rel (0) target = $region29
    $region28: #{resblock_forward.5} parent=1 // pred_region
      %51 = dma.done [#allocation3], 16
    $region29: #{resblock_forward.5} parent=1 // pred_fallthru
      _
    // Predicated region
    $region30: #{resblock_forward.5} parent=1 // pred_check
      _
    $region31: #{resblock_forward.5} parent=1 // pred_check_branch
      %53 = sbr.rel (0) target = $region33
    $region32: #{resblock_forward.5} parent=1 // pred_region
      %54 = dma.done [#allocation5], 16
    $region33: #{resblock_forward.5} parent=1 // pred_fallthru
      _
    // Predicated region
    $region34: #{resblock_forward.5} parent=1 // pred_check
      _
    $region35: #{resblock_forward.5} parent=1 // pred_check_branch
      %56 = sbr.rel (0) target = $region37
    $region36: #{resblock_forward.5} parent=1 // pred_region
      %57 = dma.done [#allocation5], 16
    $region37: #{resblock_forward.5} parent=1 // pred_fallthru
      _
    %58 = sfence
    %v59 = vlaneseq
    %v60 = vand.u32 %v59, 127
    %vm61 = vcmp.eq.s32.totalorder %v60, 7
    %v62 = vld [vmem:[%s0] sm:$0x3]
    %v63 = vld [vmem:[%s1] sm:$0x3]
    %v64 = vmax.f32 %v62, %v63
    %vm65 = vcmask 1047616
    %66 = vrot.lane.b32.xlu0 %v62, 8
    %v67 = vpop.permute.xlu0 %66
    %v68 = vsel %vm65, %v67, %v62
    %69 = vrot.lane.b32.xlu0 %v68, 8
    %v70 = vpop.permute.xlu0 %69
    %v71 = vsel %vm65, %v70, %v62
    %73 = vrot.lane.b32.xlu0 %v71, 127
    %v74 = vpop.permute.xlu0 %73
    %v76 = vsel %vm61, 0.0, %v74
    %v77 = vmax.f32 %v64, %v76
    %s78 = sld [smem:[#allocation2]]
    %v79 = vstv %s78
    %s80 = sld [smem:[#allocation2 + $0x4]]
    %v81 = vstv %s80
    %v82 = vmul.f32 %v79, 0.0625
    %v83 = vmul.f32 %v81, 0.0625
    %v84 = vmul.f32 %v82, %v82
    %v85 = vsub.f32 %v83, %v84
    %v86 = vmax.f32 %v85, 0.0
    %s87 = sld [smem:[#allocation4]]
    %v88 = vstv %s87
    %v89 = vadd.f32 %v86, 1e-05
    %v90 = vrsqrt.pop %v89
    %v91 = vmul.f32 %v88, %v90
    %s92 = sld [smem:[#allocation6]]
    %v93 = vstv %s92
    %v94 = vmul.f32 %v82, %v91
    %v95 = vsub.f32 %v93, %v94
    %v96 = vld [vmem:[%s2] sm:$0x3]
    %v97 = vmul.f32 %v96, %v91
    %v98 = vadd.f32 %v77, %v97
    %v99 = vadd.f32 %v98, %v95
    %vm100 = vcmask 58368
    %101 = vst.msk [vmem:[%s6] sm:$0x3] %vm100, %v99
    %s102 = scalar_lea.vmem %s0, 2
    %v103 = vld [vmem:[%s102] sm:$0x3]
    %s104 = scalar_lea.vmem %s1, 2
    %v105 = vld [vmem:[%s104] sm:$0x3]
    %v106 = vmax.f32 %v103, %v105
    %107 = vrot.lane.b32.xlu0 %v103, 8
    %v108 = vpop.permute.xlu0 %107
    %v109 = vsel %vm65, %v108, %v103
    %110 = vrot.lane.b32.xlu0 %v109, 8
    %v111 = vpop.permute.xlu0 %110
    %v112 = vsel %vm65, %v111, %v103
    %114 = vrot.lane.b32.xlu0 %v112, 127
    %v115 = vpop.permute.xlu0 %114
    %v117 = vsel %vm61, 0.0, %v115
    %v118 = vmax.f32 %v106, %v117
    %s119 = sld [smem:[#allocation2 + $0x1]]
    %v120 = vstv %s119
    %s121 = sld [smem:[#allocation2 + $0x5]]
    %v122 = vstv %s121
    %v123 = vmul.f32 %v120, 0.0625
    %v124 = vmul.f32 %v122, 0.0625
    %v125 = vmul.f32 %v123, %v123
    %v126 = vsub.f32 %v124, %v125
    %v127 = vmax.f32 %v126, 0.0
    %s128 = sld [smem:[#allocation4 + $0x1]]
    %v129 = vstv %s128
    %v130 = vadd.f32 %v127, 1e-05
    %v131 = vrsqrt.pop %v130
    %v132 = vmul.f32 %v129, %v131
    %s133 = sld [smem:[#allocation6 + $0x1]]
    %v134 = vstv %s133
    %v135 = vmul.f32 %v123, %v132
    %v136 = vsub.f32 %v134, %v135
    %s137 = scalar_lea.vmem %s2, 2
    %v138 = vld [vmem:[%s137] sm:$0x3]
    %v139 = vmul.f32 %v138, %v132
    %v140 = vadd.f32 %v118, %v139
    %v141 = vadd.f32 %v140, %v136
    %s142 = scalar_lea.vmem %s6, 2
    %143 = vst.msk [vmem:[%s142] sm:$0x3] %vm100, %v141
    %s144 = scalar_lea.vmem %s0, 4
    %v145 = vld [vmem:[%s144] sm:$0x3]
    %s146 = scalar_lea.vmem %s1, 4
    %v147 = vld [vmem:[%s146] sm:$0x3]
    %v148 = vmax.f32 %v145, %v147
    %149 = vrot.lane.b32.xlu0 %v145, 8
    %v150 = vpop.permute.xlu0 %149
    %v151 = vsel %vm65, %v150, %v145
    %152 = vrot.lane.b32.xlu0 %v151, 8
    %v153 = vpop.permute.xlu0 %152
    %v154 = vsel %vm65, %v153, %v145
    %156 = vrot.lane.b32.xlu0 %v154, 127
    %v157 = vpop.permute.xlu0 %156
    %v159 = vsel %vm61, 0.0, %v157
    %v160 = vmax.f32 %v148, %v159
    %s161 = sld [smem:[#allocation2 + $0x2]]
    %v162 = vstv %s161
    %s163 = sld [smem:[#allocation2 + $0x6]]
    %v164 = vstv %s163
    %v165 = vmul.f32 %v162, 0.0625
    %v166 = vmul.f32 %v164, 0.0625
    %v167 = vmul.f32 %v165, %v165
    %v168 = vsub.f32 %v166, %v167
    %v169 = vmax.f32 %v168, 0.0
    %s170 = sld [smem:[#allocation4 + $0x2]]
    %v171 = vstv %s170
    %v172 = vadd.f32 %v169, 1e-05
    %v173 = vrsqrt.pop %v172
    %v174 = vmul.f32 %v171, %v173
    %s175 = sld [smem:[#allocation6 + $0x2]]
    %v176 = vstv %s175
    %v177 = vmul.f32 %v165, %v174
    %v178 = vsub.f32 %v176, %v177
    %s179 = scalar_lea.vmem %s2, 4
    %v180 = vld [vmem:[%s179] sm:$0x3]
    %v181 = vmul.f32 %v180, %v174
    %v182 = vadd.f32 %v160, %v181
    %v183 = vadd.f32 %v182, %v178
    %s184 = scalar_lea.vmem %s6, 4
    %185 = vst.msk [vmem:[%s184] sm:$0x3] %vm100, %v183
    %s186 = scalar_lea.vmem %s0, 6
    %v187 = vld [vmem:[%s186] sm:$0x3]
    %s188 = scalar_lea.vmem %s1, 6
    %v189 = vld [vmem:[%s188] sm:$0x3]
    %v190 = vmax.f32 %v187, %v189
    %191 = vrot.lane.b32.xlu0 %v187, 8
    %v192 = vpop.permute.xlu0 %191
    %v193 = vsel %vm65, %v192, %v187
    %194 = vrot.lane.b32.xlu0 %v193, 8
    %v195 = vpop.permute.xlu0 %194
    %v196 = vsel %vm65, %v195, %v187
    %198 = vrot.lane.b32.xlu0 %v196, 127
    %v199 = vpop.permute.xlu0 %198
    %v201 = vsel %vm61, 0.0, %v199
    %v202 = vmax.f32 %v190, %v201
    %s203 = sld [smem:[#allocation2 + $0x3]]
    %v204 = vstv %s203
    %s205 = sld [smem:[#allocation2 + $0x7]]
    %v206 = vstv %s205
    %v207 = vmul.f32 %v204, 0.0625
    %v208 = vmul.f32 %v206, 0.0625
    %v209 = vmul.f32 %v207, %v207
    %v210 = vsub.f32 %v208, %v209
    %v211 = vmax.f32 %v210, 0.0
    %s212 = sld [smem:[#allocation4 + $0x3]]
    %v213 = vstv %s212
    %v214 = vadd.f32 %v211, 1e-05
    %v215 = vrsqrt.pop %v214
    %v216 = vmul.f32 %v213, %v215
    %s217 = sld [smem:[#allocation6 + $0x3]]
    %v218 = vstv %s217
    %v219 = vmul.f32 %v207, %v216
    %v220 = vsub.f32 %v218, %v219
    %s221 = scalar_lea.vmem %s2, 6
    %v222 = vld [vmem:[%s221] sm:$0x3]
    %v223 = vmul.f32 %v222, %v216
    %v224 = vadd.f32 %v202, %v223
    %v225 = vadd.f32 %v224, %v220
    %s226 = scalar_lea.vmem %s6, 6
    %227 = vst.msk [vmem:[%s226] sm:$0x3] %vm100, %v225
    // Predicated region
    $region38: #{resblock_forward.5} parent=1 // pred_check
      _
    $region39: #{resblock_forward.5} parent=1 // pred_check_branch
      %229 = sbr.rel (0) target = $region41
    $region40: #{resblock_forward.5} parent=1 // pred_region
      _
    $region41: #{resblock_forward.5} parent=1 // pred_fallthru
      _
    // Predicated region
    $region42: #{resblock_forward.5} parent=1 // pred_check
      _
    $region43: #{resblock_forward.5} parent=1 // pred_check_branch
      %231 = sbr.rel (0) target = $region45
    $region44: #{resblock_forward.5} parent=1 // pred_region
      _
    $region45: #{resblock_forward.5} parent=1 // pred_fallthru
      _
    %232 = vsyncpa [#allocation3], 1
    %233 = vsyncpa [#allocation5], 1

// kernel: resblock_forward.3
$region0: #{resblock_forward.3}
  #allocation0 [shape = 'u32[]', space=smem, size = 0x4, offset = 0x4, fixed_abs, tag = 'smem constant byte address 0x4 - core index']
  #allocation1 [shape = 'u32[144,128]{1,0:T(1,128)}', space=vmem, size = 0x12000, scoped, tag = 'internal scratch']
  %s0 = inlined_call_operand.vmem [shape: f32[4,2,8], index: 0, kind: input, shape index: {}]
  %s1 = inlined_call_operand.vmem [shape: f32[4,2,8], index: 1, kind: input, shape index: {}]
  %s2 = inlined_call_operand.vmem [shape: f32[48], index: 2, kind: input, shape index: {}]
  %s3 = inlined_call_operand.vmem [shape: f32[4], index: 3, kind: input, shape index: {}]
  %s4 = inlined_call_operand.vmem [shape: f32[4,2,8], index: 4, kind: output, shape index: {0}]
  %s5 = inlined_call_operand.vmem [shape: f32[1,2,4], index: 5, kind: output, shape index: {1}]
  %6 = xla_tuple %s4, %s5
  %s7 = sld [smem:[#allocation0]]
  $region42: #{resblock_forward.3} parent=0
    _
  %s9 = ssub.s32 1, %s7
  %s10 = scalar_select 0, %s9, %s7
  $region1: #{resblock_forward.3} parent=0
    #allocation2 [shape = 'u8[512]{0}', space=smem, size = 0x200, scoped, tag = 'input window, operand 2, single buffered']
    #allocation3 [shape = 's32[1]{0}', space=sflag, size = 0x4, scoped, tag = 'scoped memory for resblock_forward.3']
    #allocation4 [shape = 'u8[512]{0}', space=smem, size = 0x200, scoped, tag = 'input window, operand 3, single buffered']
    #allocation5 [shape = 's32[1]{0}', space=sflag, size = 0x4, scoped, tag = 'scoped memory for resblock_forward.3']
    %11 = vsyncpa [#allocation3], 0
    %12 = vsyncpa [#allocation5], 0
    // Predicated region
    $region2: #{resblock_forward.3} parent=1 // pred_check
      _
    $region3: #{resblock_forward.3} parent=1 // pred_check_branch
      %14 = sbr.rel (0) target = $region5
    $region4: #{resblock_forward.3} parent=1 // pred_region
      _
    $region5: #{resblock_forward.3} parent=1 // pred_fallthru
      _
    // Predicated region
    $region6: #{resblock_forward.3} parent=1 // pred_check
      _
    $region7: #{resblock_forward.3} parent=1 // pred_check_branch
      %16 = sbr.rel (0) target = $region9
    $region8: #{resblock_forward.3} parent=1 // pred_region
      _
    $region9: #{resblock_forward.3} parent=1 // pred_fallthru
      _
    // Predicated region
    $region10: #{resblock_forward.3} parent=1 // pred_check
      _
    $region11: #{resblock_forward.3} parent=1 // pred_check_branch
      %18 = sbr.rel (0) target = $region13
    $region12: #{resblock_forward.3} parent=1 // pred_region
      %s20 = ssub.s32 16, 16
      %21 = vsyncadd [#allocation3], %s20
      %s23 = sshll.u32 %s2, 4
      %s24 = int_to_ptr.vmem [resolvable:$true] %s23
      %26 = dma.vmem_to_smem %s24, 16, [#allocation2], [#allocation3]
    $region13: #{resblock_forward.3} parent=1 // pred_fallthru
      _
    // Predicated region
    $region14: #{resblock_forward.3} parent=1 // pred_check
      _
    $region15: #{resblock_forward.3} parent=1 // pred_check_branch
      %28 = sbr.rel (0) target = $region17
    $region16: #{resblock_forward.3} parent=1 // pred_region
      %s30 = ssub.s32 16, 16
      %31 = vsyncadd [#allocation5], %s30
      %s33 = sshll.u32 %s3, 4
      %s34 = int_to_ptr.vmem [resolvable:$true] %s33
      %36 = dma.vmem_to_smem %s34, 16, [#allocation4], [#allocation5]
    $region17: #{resblock_forward.3} parent=1 // pred_fallthru
      _
    // Predicated region
    $region18: #{resblock_forward.3} parent=1 // pred_check
      _
    $region19: #{resblock_forward.3} parent=1 // pred_check_branch
      %38 = sbr.rel (0) target = $region21
    $region20: #{resblock_forward.3} parent=1 // pred_region
      %39 = dma.done [#allocation3], 16
    $region21: #{resblock_forward.3} parent=1 // pred_fallthru
      _
    // Predicated region
    $region22: #{resblock_forward.3} parent=1 // pred_check
      _
    $region23: #{resblock_forward.3} parent=1 // pred_check_branch
      %41 = sbr.rel (0) target = $region25
    $region24: #{resblock_forward.3} parent=1 // pred_region
      %42 = dma.done [#allocation5], 16
    $region25: #{resblock_forward.3} parent=1 // pred_fallthru
      _
    %43 = sfence
    %v44 = vlaneseq
    %v45 = vand.u32 %v44, 127
    %vm46 = vcmp.eq.s32.totalorder %v45, 0
    %vm47 = vcmp.eq.s32.totalorder %v45, 7
    %v48 = vld [vmem:[%s0] sm:$0x3]
    %v49 = vld [vmem:[%s1] sm:$0x3]
    %v50 = vmax.f32 %v48, %v49
    %vm51 = vcmask 1047616
    %52 = vrot.lane.b32.xlu0 %v48, 8
    %v53 = vpop.permute.xlu0 %52
    %v54 = vsel %vm51, %v53, %v48
    %55 = vrot.lane.b32.xlu0 %v54, 8
    %v56 = vpop.permute.xlu0 %55
    %v57 = vsel %vm51, %v56, %v48
    %59 = vrot.lane.b32.xlu0 %v57, 127
    %v60 = vpop.permute.xlu0 %59
    %v62 = vsel %vm47, 0.0, %v60
    %v63 = vmax.f32 %v50, %v62
    %v64 = vmax.f32 %v63, 0.0
    %65 = vrot.lane.b32.xlu0 %v64, 8
    %v66 = vpop.permute.xlu0 %65
    %v67 = vsel %vm51, %v66, %v64
    %68 = vrot.lane.b32.xlu0 %v67, 8
    %v69 = vpop.permute.xlu0 %68
    %v70 = vsel %vm51, %v69, %v64
    %72 = vrot.lane.b32.xlu0 %v70, 121
    %v73 = vpop.permute.xlu0 %72
    %v75 = vsel %vm46, 0.0, %v73
    %76 = vrot.lane.b32.xlu0 %v70, 127
    %v77 = vpop.permute.xlu0 %76
    %v79 = vsel %vm47, 0.0, %v77
    %s80 = scalar_lea.vmem %s0, 2
    %v81 = vld [vmem:[%s80] sm:$0x3]
    %s82 = scalar_lea.vmem %s1, 2
    %v83 = vld [vmem:[%s82] sm:$0x3]
    %v84 = vmax.f32 %v81, %v83
    %85 = vrot.lane.b32.xlu0 %v81, 8
    %v86 = vpop.permute.xlu0 %85
    %v87 = vsel %vm51, %v86, %v81
    %88 = vrot.lane.b32.xlu0 %v87, 8
    %v89 = vpop.permute.xlu0 %88
    %v90 = vsel %vm51, %v89, %v81
    %92 = vrot.lane.b32.xlu0 %v90, 127
    %v93 = vpop.permute.xlu0 %92
    %v95 = vsel %vm47, 0.0, %v93
    %v96 = vmax.f32 %v84, %v95
    %v97 = vmax.f32 %v96, 0.0
    %98 = vrot.lane.b32.xlu0 %v97, 8
    %v99 = vpop.permute.xlu0 %98
    %v100 = vsel %vm51, %v99, %v97
    %101 = vrot.lane.b32.xlu0 %v100, 8
    %v102 = vpop.permute.xlu0 %101
    %v103 = vsel %vm51, %v102, %v97
    %105 = vrot.lane.b32.xlu0 %v103, 121
    %v106 = vpop.permute.xlu0 %105
    %v108 = vsel %vm46, 0.0, %v106
    %109 = vrot.lane.b32.xlu0 %v103, 127
    %v110 = vpop.permute.xlu0 %109
    %v112 = vsel %vm47, 0.0, %v110
    %s113 = scalar_lea.vmem %s0, 4
    %v114 = vld [vmem:[%s113] sm:$0x3]
    %s115 = scalar_lea.vmem %s1, 4
    %v116 = vld [vmem:[%s115] sm:$0x3]
    %v117 = vmax.f32 %v114, %v116
    %118 = vrot.lane.b32.xlu0 %v114, 8
    %v119 = vpop.permute.xlu0 %118
    %v120 = vsel %vm51, %v119, %v114
    %121 = vrot.lane.b32.xlu0 %v120, 8
    %v122 = vpop.permute.xlu0 %121
    %v123 = vsel %vm51, %v122, %v114
    %125 = vrot.lane.b32.xlu0 %v123, 127
    %v126 = vpop.permute.xlu0 %125
    %v128 = vsel %vm47, 0.0, %v126
    %v129 = vmax.f32 %v117, %v128
    %v130 = vmax.f32 %v129, 0.0
    %131 = vrot.lane.b32.xlu0 %v130, 8
    %v132 = vpop.permute.xlu0 %131
    %v133 = vsel %vm51, %v132, %v130
    %134 = vrot.lane.b32.xlu0 %v133, 8
    %v135 = vpop.permute.xlu0 %134
    %v136 = vsel %vm51, %v135, %v130
    %138 = vrot.lane.b32.xlu0 %v136, 121
    %v139 = vpop.permute.xlu0 %138
    %v141 = vsel %vm46, 0.0, %v139
    %142 = vrot.lane.b32.xlu0 %v136, 127
    %v143 = vpop.permute.xlu0 %142
    %v145 = vsel %vm47, 0.0, %v143
    %s146 = scalar_lea.vmem %s0, 6
    %v147 = vld [vmem:[%s146] sm:$0x3]
    %s148 = scalar_lea.vmem %s1, 6
    %v149 = vld [vmem:[%s148] sm:$0x3]
    %v150 = vmax.f32 %v147, %v149
    %151 = vrot.lane.b32.xlu0 %v147, 8
    %v152 = vpop.permute.xlu0 %151
    %v153 = vsel %vm51, %v152, %v147
    %154 = vrot.lane.b32.xlu0 %v153, 8
    %v155 = vpop.permute.xlu0 %154
    %v156 = vsel %vm51, %v155, %v147
    %158 = vrot.lane.b32.xlu0 %v156, 127
    %v159 = vpop.permute.xlu0 %158
    %v161 = vsel %vm47, 0.0, %v159
    %v162 = vmax.f32 %v150, %v161
    %v163 = vmax.f32 %v162, 0.0
    %164 = vrot.lane.b32.xlu0 %v163, 8
    %v165 = vpop.permute.xlu0 %164
    %v166 = vsel %vm51, %v165, %v163
    %167 = vrot.lane.b32.xlu0 %v166, 8
    %v168 = vpop.permute.xlu0 %167
    %v169 = vsel %vm51, %v168, %v163
    %171 = vrot.lane.b32.xlu0 %v169, 121
    %v172 = vpop.permute.xlu0 %171
    %v174 = vsel %vm46, 0.0, %v172
    %175 = vrot.lane.b32.xlu0 %v169, 127
    %v176 = vpop.permute.xlu0 %175
    %v178 = vsel %vm47, 0.0, %v176
    %v179 = vlaneseq
    %v180 = vshrl.u32 %v179, 7
    %s181 = sld [smem:[#allocation2]]
    %v182 = vstv %s181
    %v183 = vmul.f32 %v182, %v75
    %s184 = sld [smem:[#allocation2 + $0x10]]
    %v185 = vstv %s184
    %v186 = vmul.f32 %v185, %v64
    %v187 = vadd.f32 %v183, %v186
    %s188 = sld [smem:[#allocation2 + $0x20]]
    %v189 = vstv %s188
    %v190 = vmul.f32 %v189, %v79
    %v191 = vadd.f32 %v187, %v190
    %s192 = sld [smem:[#allocation2 + $0x1]]
    %v193 = vstv %s192
    %v194 = vmul.f32 %v193, %v108
    %s195 = sld [smem:[#allocation2 + $0x11]]
    %v196 = vstv %s195
    %v197 = vmul.f32 %v196, %v97
    %v198 = vadd.f32 %v194, %v197
    %s199 = sld [smem:[#allocation2 + $0x21]]
    %v200 = vstv %s199
    %v201 = vmul.f32 %v200, %v112
    %v202 = vadd.f32 %v198, %v201
    %v203 = vadd.f32 %v191, %v202
    %s204 = sld [smem:[#allocation2 + $0x2]]
    %v205 = vstv %s204
    %v206 = vmul.f32 %v205, %v141
    %s207 = sld [smem:[#allocation2 + $0x12]]
    %v208 = vstv %s207
    %v209 = vmul.f32 %v208, %v130
    %v210 = vadd.f32 %v206, %v209
    %s211 = sld [smem:[#allocation2 + $0x22]]
    %v212 = vstv %s211
    %v213 = vmul.f32 %v212, %v145
    %v214 = vadd.f32 %v210, %v213
    %v215 = vadd.f32 %v203, %v214
    %s216 = sld [smem:[#allocation2 + $0x3]]
    %v217 = vstv %s216
    %v218 = vmul.f32 %v217, %v174
    %s219 = sld [smem:[#allocation2 + $0x13]]
    %v220 = vstv %s219
    %v221 = vmul.f32 %v220, %v163
    %v222 = vadd.f32 %v218, %v221
    %s223 = sld [smem:[#allocation2 + $0x23]]
    %v224 = vstv %s223
    %v225 = vmul.f32 %v224, %v178
    %v226 = vadd.f32 %v222, %v225
    %v227 = vadd.f32 %v215, %v226
    %s228 = sld [smem:[#allocation4]]
    %v229 = vstv %s228
    %v230 = vadd.f32 %v227, %v229
    %vm231 = vcmask 58368
    %232 = vst.msk [vmem:[%s4] sm:$0x3] %vm231, %v230
    %v233 = vsel %vm231, %v230, 0.0
    %234 = vadd.xlane.f32.xlu0 %v233
    %v235 = vpop.xlane.xlu0 %234
    %v236 = vrot.slane %v235, 4
    %v237 = vadd.f32 %v235, %v236
    %v238 = vrot.slane %v237, 2
    %v239 = vadd.f32 %v237, %v238
    %v240 = vrot.slane %v239, 1
    %v241 = vadd.f32 %v239, %v240
    %s242 = vtos %v241
    %v243 = vmul.f32 %v230, %v230
    %v244 = vsel %vm231, %v243, 0.0
    %245 = vadd.xlane.f32.xlu0 %v244
    %v246 = vpop.xlane.xlu0 %245
    %v247 = vrot.slane %v246, 4
    %v248 = vadd.f32 %v246, %v247
    %v249 = vrot.slane %v248, 2
    %v250 = vadd.f32 %v248, %v249
    %v251 = vrot.slane %v250, 1
    %v252 = vadd.f32 %v250, %v251
    %s253 = vtos %v252
    %vm254 = vcmp.eq.s32.totalorder %v180, 0
    %vm255 = vmand %vm254, %vm46
    %v256 = vstv %s242
    %v257 = vsel %vm255, %v256, 0.0
    %vm258 = vcmp.eq.s32.totalorder %v180, 1
    %vm259 = vmand %vm258, %vm46
    %v260 = vstv %s253
    %v261 = vsel %vm259, %v260, %v257
    %s262 = sld [smem:[#allocation2 + $0x4]]
    %v263 = vstv %s262
    %v264 = vmul.f32 %v263, %v75
    %s265 = sld [smem:[#allocation2 + $0x14]]
    %v266 = vstv %s265
    %v267 = vmul.f32 %v266, %v64
    %v268 = vadd.f32 %v264, %v267
    %s269 = sld [smem:[#allocation2 + $0x24]]
    %v270 = vstv %s269
    %v271 = vmul.f32 %v270, %v79
    %v272 = vadd.f32 %v268, %v271
    %s273 = sld [smem:[#allocation2 + $0x5]]
    %v274 = vstv %s273
    %v275 = vmul.f32 %v274, %v108
    %s276 = sld [smem:[#allocation2 + $0x15]]
    %v277 = vstv %s276
    %v278 = vmul.f32 %v277, %v97
    %v279 = vadd.f32 %v275, %v278
    %s280 = sld [smem:[#allocation2 + $0x25]]
    %v281 = vstv %s280
    %v282 = vmul.f32 %v281, %v112
    %v283 = vadd.f32 %v279, %v282
    %v284 = vadd.f32 %v272, %v283
    %s285 = sld [smem:[#allocation2 + $0x6]]
    %v286 = vstv %s285
    %v287 = vmul.f32 %v286, %v141
    %s288 = sld [smem:[#allocation2 + $0x16]]
    %v289 = vstv %s288
    %v290 = vmul.f32 %v289, %v130
    %v291 = vadd.f32 %v287, %v290
    %s292 = sld [smem:[#allocation2 + $0x26]]
    %v293 = vstv %s292
    %v294 = vmul.f32 %v293, %v145
    %v295 = vadd.f32 %v291, %v294
    %v296 = vadd.f32 %v284, %v295
    %s297 = sld [smem:[#allocation2 + $0x7]]
    %v298 = vstv %s297
    %v299 = vmul.f32 %v298, %v174
    %s300 = sld [smem:[#allocation2 + $0x17]]
    %v301 = vstv %s300
    %v302 = vmul.f32 %v301, %v163
    %v303 = vadd.f32 %v299, %v302
    %s304 = sld [smem:[#allocation2 + $0x27]]
    %v305 = vstv %s304
    %v306 = vmul.f32 %v305, %v178
    %v307 = vadd.f32 %v303, %v306
    %v308 = vadd.f32 %v296, %v307
    %s309 = sld [smem:[#allocation4 + $0x1]]
    %v310 = vstv %s309
    %v311 = vadd.f32 %v308, %v310
    %s312 = scalar_lea.vmem %s4, 2
    %313 = vst.msk [vmem:[%s312] sm:$0x3] %vm231, %v311
    %v314 = vsel %vm231, %v311, 0.0
    %315 = vadd.xlane.f32.xlu0 %v314
    %v316 = vpop.xlane.xlu0 %315
    %v317 = vrot.slane %v316, 4
    %v318 = vadd.f32 %v316, %v317
    %v319 = vrot.slane %v318, 2
    %v320 = vadd.f32 %v318, %v319
    %v321 = vrot.slane %v320, 1
    %v322 = vadd.f32 %v320, %v321
    %s323 = vtos %v322
    %v324 = vmul.f32 %v311, %v311
    %v325 = vsel %vm231, %v324, 0.0
    %326 = vadd.xlane.f32.xlu0 %v325
    %v327 = vpop.xlane.xlu0 %326
    %v328 = vrot.slane %v327, 4
    %v329 = vadd.f32 %v327, %v328
    %v330 = vrot.slane %v329, 2
    %v331 = vadd.f32 %v329, %v330
    %v332 = vrot.slane %v331, 1
    %v333 = vadd.f32 %v331, %v332
    %s334 = vtos %v333
    %vm335 = vcmp.eq.s32.totalorder %v45, 1
    %vm336 = vmand %vm254, %vm335
    %v337 = vstv %s323
    %v338 = vsel %vm336, %v337, %v261
    %vm339 = vmand %vm258, %vm335
    %v340 = vstv %s334
    %v341 = vsel %vm339, %v340, %v338
    %s342 = sld [smem:[#allocation2 + $0x8]]
    %v343 = vstv %s342
    %v344 = vmul.f32 %v343, %v75
    %s345 = sld [smem:[#allocation2 + $0x18]]
    %v346 = vstv %s345
    %v347 = vmul.f32 %v346, %v64
    %v348 = vadd.f32 %v344, %v347
    %s349 = sld [smem:[#allocation2 + $0x28]]
    %v350 = vstv %s349
    %v351 = vmul.f32 %v350, %v79
    %v352 = vadd.f32 %v348, %v351
    %s353 = sld [smem:[#allocation2 + $0x9]]
    %v354 = vstv %s353
    %v355 = vmul.f32 %v354, %v108
    %s356 = sld [smem:[#allocation2 + $0x19]]
    %v357 = vstv %s356
    %v358 = vmul.f32 %v357, %v97
    %v359 = vadd.f32 %v355, %v358
    %s360 = sld [smem:[#allocation2 + $0x29]]
    %v361 = vstv %s360
    %v362 = vmul.f32 %v361, %v112
    %v363 = vadd.f32 %v359, %v362
    %v364 = vadd.f32 %v352, %v363
    %s365 = sld [smem:[#allocation2 + $0xa]]
    %v366 = vstv %s365
    %v367 = vmul.f32 %v366, %v141
    %s368 = sld [smem:[#allocation2 + $0x1a]]
    %v369 = vstv %s368
    %v370 = vmul.f32 %v369, %v130
    %v371 = vadd.f32 %v367, %v370
    %s372 = sld [smem:[#allocation2 + $0x2a]]
    %v373 = vstv %s372
    %v374 = vmul.f32 %v373, %v145
    %v375 = vadd.f32 %v371, %v374
    %v376 = vadd.f32 %v364, %v375
    %s377 = sld [smem:[#allocation2 + $0xb]]
    %v378 = vstv %s377
    %v379 = vmul.f32 %v378, %v174
    %s380 = sld [smem:[#allocation2 + $0x1b]]
    %v381 = vstv %s380
    %v382 = vmul.f32 %v381, %v163
    %v383 = vadd.f32 %v379, %v382
    %s384 = sld [smem:[#allocation2 + $0x2b]]
    %v385 = vstv %s384
    %v386 = vmul.f32 %v385, %v178
    %v387 = vadd.f32 %v383, %v386
    %v388 = vadd.f32 %v376, %v387
    %s389 = sld [smem:[#allocation4 + $0x2]]
    %v390 = vstv %s389
    %v391 = vadd.f32 %v388, %v390
    %s392 = scalar_lea.vmem %s4, 4
    %393 = vst.msk [vmem:[%s392] sm:$0x3] %vm231, %v391
    %v394 = vsel %vm231, %v391, 0.0
    %395 = vadd.xlane.f32.xlu0 %v394
    %v396 = vpop.xlane.xlu0 %395
    %v397 = vrot.slane %v396, 4
    %v398 = vadd.f32 %v396, %v397
    %v399 = vrot.slane %v398, 2
    %v400 = vadd.f32 %v398, %v399
    %v401 = vrot.slane %v400, 1
    %v402 = vadd.f32 %v400, %v401
    %s403 = vtos %v402
    %v404 = vmul.f32 %v391, %v391
    %v405 = vsel %vm231, %v404, 0.0
    %406 = vadd.xlane.f32.xlu0 %v405
    %v407 = vpop.xlane.xlu0 %406
    %v408 = vrot.slane %v407, 4
    %v409 = vadd.f32 %v407, %v408
    %v410 = vrot.slane %v409, 2
    %v411 = vadd.f32 %v409, %v410
    %v412 = vrot.slane %v411, 1
    %v413 = vadd.f32 %v411, %v412
    %s414 = vtos %v413
    %vm415 = vcmp.eq.s32.totalorder %v45, 2
    %vm416 = vmand %vm254, %vm415
    %v417 = vstv %s403
    %v418 = vsel %vm416, %v417, %v341
    %vm419 = vmand %vm258, %vm415
    %v420 = vstv %s414
    %v421 = vsel %vm419, %v420, %v418
    %s422 = sld [smem:[#allocation2 + $0xc]]
    %v423 = vstv %s422
    %v424 = vmul.f32 %v423, %v75
    %s425 = sld [smem:[#allocation2 + $0x1c]]
    %v426 = vstv %s425
    %v427 = vmul.f32 %v426, %v64
    %v428 = vadd.f32 %v424, %v427
    %s429 = sld [smem:[#allocation2 + $0x2c]]
    %v430 = vstv %s429
    %v431 = vmul.f32 %v430, %v79
    %v432 = vadd.f32 %v428, %v431
    %s433 = sld [smem:[#allocation2 + $0xd]]
    %v434 = vstv %s433
    %v435 = vmul.f32 %v434, %v108
    %s436 = sld [smem:[#allocation2 + $0x1d]]
    %v437 = vstv %s436
    %v438 = vmul.f32 %v437, %v97
    %v439 = vadd.f32 %v435, %v438
    %s440 = sld [smem:[#allocation2 + $0x2d]]
    %v441 = vstv %s440
    %v442 = vmul.f32 %v441, %v112
    %v443 = vadd.f32 %v439, %v442
    %v444 = vadd.f32 %v432, %v443
    %s445 = sld [smem:[#allocation2 + $0xe]]
    %v446 = vstv %s445
    %v447 = vmul.f32 %v446, %v141
    %s448 = sld [smem:[#allocation2 + $0x1e]]
    %v449 = vstv %s448
    %v450 = vmul.f32 %v449, %v130
    %v451 = vadd.f32 %v447, %v450
    %s452 = sld [smem:[#allocation2 + $0x2e]]
    %v453 = vstv %s452
    %v454 = vmul.f32 %v453, %v145
    %v455 = vadd.f32 %v451, %v454
    %v456 = vadd.f32 %v444, %v455
    %s457 = sld [smem:[#allocation2 + $0xf]]
    %v458 = vstv %s457
    %v459 = vmul.f32 %v458, %v174
    %s460 = sld [smem:[#allocation2 + $0x1f]]
    %v461 = vstv %s460
    %v462 = vmul.f32 %v461, %v163
    %v463 = vadd.f32 %v459, %v462
    %s464 = sld [smem:[#allocation2 + $0x2f]]
    %v465 = vstv %s464
    %v466 = vmul.f32 %v465, %v178
    %v467 = vadd.f32 %v463, %v466
    %v468 = vadd.f32 %v456, %v467
    %s469 = sld [smem:[#allocation4 + $0x3]]
    %v470 = vstv %s469
    %v471 = vadd.f32 %v468, %v470
    %s472 = scalar_lea.vmem %s4, 6
    %473 = vst.msk [vmem:[%s472] sm:$0x3] %vm231, %v471
    %v474 = vsel %vm231, %v471, 0.0
    %475 = vadd.xlane.f32.xlu0 %v474
    %v476 = vpop.xlane.xlu0 %475
    %v477 = vrot.slane %v476, 4
    %v478 = vadd.f32 %v476, %v477
    %v479 = vrot.slane %v478, 2
    %v480 = vadd.f32 %v478, %v479
    %v481 = vrot.slane %v480, 1
    %v482 = vadd.f32 %v480, %v481
    %s483 = vtos %v482
    %v484 = vmul.f32 %v471, %v471
    %v485 = vsel %vm231, %v484, 0.0
    %486 = vadd.xlane.f32.xlu0 %v485
    %v487 = vpop.xlane.xlu0 %486
    %v488 = vrot.slane %v487, 4
    %v489 = vadd.f32 %v487, %v488
    %v490 = vrot.slane %v489, 2
    %v491 = vadd.f32 %v489, %v490
    %v492 = vrot.slane %v491, 1
    %v493 = vadd.f32 %v491, %v492
    %s494 = vtos %v493
    %vm495 = vcmp.eq.s32.totalorder %v45, 3
    %vm496 = vmand %vm254, %vm495
    %v497 = vstv %s483
    %v498 = vsel %vm496, %v497, %v421
    %vm499 = vmand %vm258, %vm495
    %v500 = vstv %s494
    %v501 = vsel %vm499, %v500, %v498
    %vm502 = vcmask 25600
    %503 = vst.msk [vmem:[%s5] sm:$0x3] %vm502, %v501
    // Predicated region
    $region26: #{resblock_forward.3} parent=1 // pred_check
      _
    $region27: #{resblock_forward.3} parent=1 // pred_check_branch
      %505 = sbr.rel (0) target = $region29
    $region28: #{resblock_forward.3} parent=1 // pred_region
      _
    $region29: #{resblock_forward.3} parent=1 // pred_fallthru
      _
    // Predicated region
    $region30: #{resblock_forward.3} parent=1 // pred_check
      _
    $region31: #{resblock_forward.3} parent=1 // pred_check_branch
      %507 = sbr.rel (0) target = $region33
    $region32: #{resblock_forward.3} parent=1 // pred_region
      _
    $region33: #{resblock_forward.3} parent=1 // pred_fallthru
      _
    // Predicated region
    $region34: #{resblock_forward.3} parent=1 // pred_check
      _
    $region35: #{resblock_forward.3} parent=1 // pred_check_branch
      %509 = sbr.rel (0) target = $region37
    $region36: #{resblock_forward.3} parent=1 // pred_region
      _
    $region37: #{resblock_forward.3} parent=1 // pred_fallthru
      _
    // Predicated region
    $region38: #{resblock_forward.3} parent=1 // pred_check
      _
    $region39: #{resblock_forward.3} parent=1 // pred_check_branch
      %511 = sbr.rel (0) target = $region41
    $region40: #{resblock_forward.3} parent=1 // pred_region
      _
    $region41: #{resblock_forward.3} parent=1 // pred_fallthru
      _
    %512 = vsyncpa [#allocation3], 1
    %513 = vsyncpa [#allocation5], 1

// kernel: resblock_forward.4
$region0: #{resblock_forward.4}
  #allocation0 [shape = 'u32[]', space=smem, size = 0x4, offset = 0x4, fixed_abs, tag = 'smem constant byte address 0x4 - core index']
  #allocation1 [shape = 'u32[144,128]{1,0:T(1,128)}', space=vmem, size = 0x12000, scoped, tag = 'internal scratch']
  %s0 = inlined_call_operand.vmem [shape: f32[4,2,8], index: 0, kind: input, shape index: {}]
  %s1 = inlined_call_operand.vmem [shape: f32[8], index: 1, kind: input, shape index: {}]
  %s2 = inlined_call_operand.vmem [shape: f32[4], index: 2, kind: input, shape index: {}]
  %s3 = inlined_call_operand.vmem [shape: f32[4], index: 3, kind: input, shape index: {}]
  %s4 = inlined_call_operand.vmem [shape: f32[48], index: 4, kind: input, shape index: {}]
  %s5 = inlined_call_operand.vmem [shape: f32[4], index: 5, kind: input, shape index: {}]
  %s6 = inlined_call_operand.vmem [shape: f32[4,2,8], index: 6, kind: output, shape index: {0}]
  %s7 = inlined_call_operand.vmem [shape: f32[1,2,4], index: 7, kind: output, shape index: {1}]
  %8 = xla_tuple %s6, %s7
  %s9 = sld [smem:[#allocation0]]
  $region62: #{resblock_forward.4} parent=0
    _
  %s11 = ssub.s32 1, %s9
  %s12 = scalar_select 0, %s11, %s9
  $region1: #{resblock_forward.4} parent=0
    #allocation2 [shape = 'u8[512]{0}', space=smem, size = 0x200, scoped, tag = 'input window, operand 1, single buffered']
    #allocation3 [shape = 's32[1]{0}', space=sflag, size = 0x4, scoped, tag = 'scoped memory for resblock_forward.4']
    #allocation4 [shape = 'u8[512]{0}', space=smem, size = 0x200, scoped, tag = 'input window, operand 2, single buffered']
    #allocation5 [shape = 's32[1]{0}', space=sflag, size = 0x4, scoped, tag = 'scoped memory for resblock_forward.4']
    #allocation6 [shape = 'u8[512]{0}', space=smem, size = 0x200, scoped, tag = 'input window, operand 3, single buffered']
    #allocation7 [shape = 'u8[512]{0}', space=smem, size = 0x200, scoped, tag = 'input window, operand 4, single buffered']
    #allocation8 [shape = 's32[1]{0}', space=sflag, size = 0x4, scoped, tag = 'scoped memory for resblock_forward.4']
    #allocation9 [shape = 'u8[512]{0}', space=smem, size = 0x200, scoped, tag = 'input window, operand 5, single buffered']
    %13 = vsyncpa [#allocation3], 0
    %14 = vsyncpa [#allocation5], 0
    %15 = vsyncpa [#allocation8], 0
    // Predicated region
    $region2: #{resblock_forward.4} parent=1 // pred_check
      _
    $region3: #{resblock_forward.4} parent=1 // pred_check_branch
      %17 = sbr.rel (0) target = $region5
    $region4: #{resblock_forward.4} parent=1 // pred_region
      _
    $region5: #{resblock_forward.4} parent=1 // pred_fallthru
      _
    // Predicated region
    $region6: #{resblock_forward.4} parent=1 // pred_check
      _
    $region7: #{resblock_forward.4} parent=1 // pred_check_branch
      %19 = sbr.rel (0) target = $region9
    $region8: #{resblock_forward.4} parent=1 // pred_region
      %s21 = ssub.s32 16, 16
      %22 = vsyncadd [#allocation3], %s21
      %s24 = sshll.u32 %s1, 4
      %s25 = int_to_ptr.vmem [resolvable:$true] %s24
      %27 = dma.vmem_to_smem %s25, 16, [#allocation2], [#allocation3]
    $region9: #{resblock_forward.4} parent=1 // pred_fallthru
      _
    // Predicated region
    $region10: #{resblock_forward.4} parent=1 // pred_check
      _
    $region11: #{resblock_forward.4} parent=1 // pred_check_branch
      %29 = sbr.rel (0) target = $region13
    $region12: #{resblock_forward.4} parent=1 // pred_region
      %s31 = ssub.s32 16, 16
      %32 = vsyncadd [#allocation5], %s31
      %s34 = sshll.u32 %s2, 4
      %s35 = int_to_ptr.vmem [resolvable:$true] %s34
      %37 = dma.vmem_to_smem %s35, 16, [#allocation4], [#allocation5]
    $region13: #{resblock_forward.4} parent=1 // pred_fallthru
      _
    // Predicated region
    $region14: #{resblock_forward.4} parent=1 // pred_check
      _
    $region15: #{resblock_forward.4} parent=1 // pred_check_branch
      %39 = sbr.rel (0) target = $region17
    $region16: #{resblock_forward.4} parent=1 // pred_region
      %s41 = ssub.s32 16, 16
      %42 = vsyncadd [#allocation5], %s41
      %s44 = sshll.u32 %s3, 4
      %s45 = int_to_ptr.vmem [resolvable:$true] %s44
      %47 = dma.vmem_to_smem %s45, 16, [#allocation6], [#allocation5]
    $region17: #{resblock_forward.4} parent=1 // pred_fallthru
      _
    // Predicated region
    $region18: #{resblock_forward.4} parent=1 // pred_check
      _
    $region19: #{resblock_forward.4} parent=1 // pred_check_branch
      %49 = sbr.rel (0) target = $region21
    $region20: #{resblock_forward.4} parent=1 // pred_region
      %s51 = ssub.s32 16, 16
      %52 = vsyncadd [#allocation8], %s51
      %s54 = sshll.u32 %s4, 4
      %s55 = int_to_ptr.vmem [resolvable:$true] %s54
      %57 = dma.vmem_to_smem %s55, 16, [#allocation7], [#allocation8]
    $region21: #{resblock_forward.4} parent=1 // pred_fallthru
      _
    // Predicated region
    $region22: #{resblock_forward.4} parent=1 // pred_check
      _
    $region23: #{resblock_forward.4} parent=1 // pred_check_branch
      %59 = sbr.rel (0) target = $region25
    $region24: #{resblock_forward.4} parent=1 // pred_region
      %s61 = ssub.s32 16, 16
      %62 = vsyncadd [#allocation8], %s61
      %s64 = sshll.u32 %s5, 4
      %s65 = int_to_ptr.vmem [resolvable:$true] %s64
      %67 = dma.vmem_to_smem %s65, 16, [#allocation9], [#allocation8]
    $region25: #{resblock_forward.4} parent=1 // pred_fallthru
      _
    // Predicated region
    $region26: #{resblock_forward.4} parent=1 // pred_check
      _
    $region27: #{resblock_forward.4} parent=1 // pred_check_branch
      %69 = sbr.rel (0) target = $region29
    $region28: #{resblock_forward.4} parent=1 // pred_region
      %70 = dma.done [#allocation3], 16
    $region29: #{resblock_forward.4} parent=1 // pred_fallthru
      _
    // Predicated region
    $region30: #{resblock_forward.4} parent=1 // pred_check
      _
    $region31: #{resblock_forward.4} parent=1 // pred_check_branch
      %72 = sbr.rel (0) target = $region33
    $region32: #{resblock_forward.4} parent=1 // pred_region
      %73 = dma.done [#allocation5], 16
    $region33: #{resblock_forward.4} parent=1 // pred_fallthru
      _
    // Predicated region
    $region34: #{resblock_forward.4} parent=1 // pred_check
      _
    $region35: #{resblock_forward.4} parent=1 // pred_check_branch
      %75 = sbr.rel (0) target = $region37
    $region36: #{resblock_forward.4} parent=1 // pred_region
      %76 = dma.done [#allocation5], 16
    $region37: #{resblock_forward.4} parent=1 // pred_fallthru
      _
    // Predicated region
    $region38: #{resblock_forward.4} parent=1 // pred_check
      _
    $region39: #{resblock_forward.4} parent=1 // pred_check_branch
      %78 = sbr.rel (0) target = $region41
    $region40: #{resblock_forward.4} parent=1 // pred_region
      %79 = dma.done [#allocation8], 16
    $region41: #{resblock_forward.4} parent=1 // pred_fallthru
      _
    // Predicated region
    $region42: #{resblock_forward.4} parent=1 // pred_check
      _
    $region43: #{resblock_forward.4} parent=1 // pred_check_branch
      %81 = sbr.rel (0) target = $region45
    $region44: #{resblock_forward.4} parent=1 // pred_region
      %82 = dma.done [#allocation8], 16
    $region45: #{resblock_forward.4} parent=1 // pred_fallthru
      _
    %83 = sfence
    %v84 = vlaneseq
    %v85 = vand.u32 %v84, 127
    %vm86 = vcmp.eq.s32.totalorder %v85, 0
    %vm87 = vcmp.eq.s32.totalorder %v85, 7
    %s88 = sld [smem:[#allocation2]]
    %v89 = vstv %s88
    %s90 = sld [smem:[#allocation2 + $0x4]]
    %v91 = vstv %s90
    %v92 = vmul.f32 %v89, 0.0625
    %v93 = vmul.f32 %v91, 0.0625
    %v94 = vmul.f32 %v92, %v92
    %v95 = vsub.f32 %v93, %v94
    %v96 = vmax.f32 %v95, 0.0
    %s97 = sld [smem:[#allocation4]]
    %v98 = vstv %s97
    %v99 = vadd.f32 %v96, 1e-05
    %v100 = vrsqrt.pop %v99
    %v101 = vmul.f32 %v98, %v100
    %s102 = sld [smem:[#allocation6]]
    %v103 = vstv %s102
    %v104 = vmul.f32 %v92, %v101
    %v105 = vsub.f32 %v103, %v104
    %v106 = vld [vmem:[%s0] sm:$0x3]
    %v107 = vmul.f32 %v106, %v101
    %v108 = vadd.f32 %v107, %v105
    %v109 = vmax.f32 %v108, 0.0
    %vm110 = vcmask 1047616
    %111 = vrot.lane.b32.xlu0 %v109, 8
    %v112 = vpop.permute.xlu0 %111
    %v113 = vsel %vm110, %v112, %v109
    %114 = vrot.lane.b32.xlu0 %v113, 8
    %v115 = vpop.permute.xlu0 %114
    %v116 = vsel %vm110, %v115, %v109
    %118 = vrot.lane.b32.xlu0 %v116, 121
    %v119 = vpop.permute.xlu0 %118
    %v121 = vsel %vm86, 0.0, %v119
    %122 = vrot.lane.b32.xlu0 %v116, 127
    %v123 = vpop.permute.xlu0 %122
    %v125 = vsel %vm87, 0.0, %v123
    %s126 = sld [smem:[#allocation2 + $0x1]]
    %v127 = vstv %s126
    %s128 = sld [smem:[#allocation2 + $0x5]]
    %v129 = vstv %s128
    %v130 = vmul.f32 %v127, 0.0625
    %v131 = vmul.f32 %v129, 0.0625
    %v132 = vmul.f32 %v130, %v130
    %v133 = vsub.f32 %v131, %v132
    %v134 = vmax.f32 %v133, 0.0
    %s135 = sld [smem:[#allocation4 + $0x1]]
    %v136 = vstv %s135
    %v137 = vadd.f32 %v134, 1e-05
    %v138 = vrsqrt.pop %v137
    %v139 = vmul.f32 %v136, %v138
    %s140 = sld [smem:[#allocation6 + $0x1]]
    %v141 = vstv %s140
    %v142 = vmul.f32 %v130, %v139
    %v143 = vsub.f32 %v141, %v142
    %s144 = scalar_lea.vmem %s0, 2
    %v145 = vld [vmem:[%s144] sm:$0x3]
    %v146 = vmul.f32 %v145, %v139
    %v147 = vadd.f32 %v146, %v143
    %v148 = vmax.f32 %v147, 0.0
    %149 = vrot.lane.b32.xlu0 %v148, 8
    %v150 = vpop.permute.xlu0 %149
    %v151 = vsel %vm110, %v150, %v148
    %152 = vrot.lane.b32.xlu0 %v151, 8
    %v153 = vpop.permute.xlu0 %152
    %v154 = vsel %vm110, %v153, %v148
    %156 = vrot.lane.b32.xlu0 %v154, 121
    %v157 = vpop.permute.xlu0 %156
    %v159 = vsel %vm86, 0.0, %v157
    %160 = vrot.lane.b32.xlu0 %v154, 127
    %v161 = vpop.permute.xlu0 %160
    %v163 = vsel %vm87, 0.0, %v161
    %s164 = sld [smem:[#allocation2 + $0x2]]
    %v165 = vstv %s164
    %s166 = sld [smem:[#allocation2 + $0x6]]
    %v167 = vstv %s166
    %v168 = vmul.f32 %v165, 0.0625
    %v169 = vmul.f32 %v167, 0.0625
    %v170 = vmul.f32 %v168, %v168
    %v171 = vsub.f32 %v169, %v170
    %v172 = vmax.f32 %v171, 0.0
    %s173 = sld [smem:[#allocation4 + $0x2]]
    %v174 = vstv %s173
    %v175 = vadd.f32 %v172, 1e-05
    %v176 = vrsqrt.pop %v175
    %v177 = vmul.f32 %v174, %v176
    %s178 = sld [smem:[#allocation6 + $0x2]]
    %v179 = vstv %s178
    %v180 = vmul.f32 %v168, %v177
    %v181 = vsub.f32 %v179, %v180
    %s182 = scalar_lea.vmem %s0, 4
    %v183 = vld [vmem:[%s182] sm:$0x3]
    %v184 = vmul.f32 %v183, %v177
    %v185 = vadd.f32 %v184, %v181
    %v186 = vmax.f32 %v185, 0.0
    %187 = vrot.lane.b32.xlu0 %v186, 8
    %v188 = vpop.permute.xlu0 %187
    %v189 = vsel %vm110, %v188, %v186
    %190 = vrot.lane.b32.xlu0 %v189, 8
    %v191 = vpop.permute.xlu0 %190
    %v192 = vsel %vm110, %v191, %v186
    %194 = vrot.lane.b32.xlu0 %v192, 121
    %v195 = vpop.permute.xlu0 %194
    %v197 = vsel %vm86, 0.0, %v195
    %198 = vrot.lane.b32.xlu0 %v192, 127
    %v199 = vpop.permute.xlu0 %198
    %v201 = vsel %vm87, 0.0, %v199
    %s202 = sld [smem:[#allocation2 + $0x3]]
    %v203 = vstv %s202
    %s204 = sld [smem:[#allocation2 + $0x7]]
    %v205 = vstv %s204
    %v206 = vmul.f32 %v203, 0.0625
    %v207 = vmul.f32 %v205, 0.0625
    %v208 = vmul.f32 %v206, %v206
    %v209 = vsub.f32 %v207, %v208
    %v210 = vmax.f32 %v209, 0.0
    %s211 = sld [smem:[#allocation4 + $0x3]]
    %v212 = vstv %s211
    %v213 = vadd.f32 %v210, 1e-05
    %v214 = vrsqrt.pop %v213
    %v215 = vmul.f32 %v212, %v214
    %s216 = sld [smem:[#allocation6 + $0x3]]
    %v217 = vstv %s216
    %v218 = vmul.f32 %v206, %v215
    %v219 = vsub.f32 %v217, %v218
    %s220 = scalar_lea.vmem %s0, 6
    %v221 = vld [vmem:[%s220] sm:$0x3]
    %v222 = vmul.f32 %v221, %v215
    %v223 = vadd.f32 %v222, %v219
    %v224 = vmax.f32 %v223, 0.0
    %225 = vrot.lane.b32.xlu0 %v224, 8
    %v226 = vpop.permute.xlu0 %225
    %v227 = vsel %vm110, %v226, %v224
    %228 = vrot.lane.b32.xlu0 %v227, 8
    %v229 = vpop.permute.xlu0 %228
    %v230 = vsel %vm110, %v229, %v224
    %232 = vrot.lane.b32.xlu0 %v230, 121
    %v233 = vpop.permute.xlu0 %232
    %v235 = vsel %vm86, 0.0, %v233
    %236 = vrot.lane.b32.xlu0 %v230, 127
    %v237 = vpop.permute.xlu0 %236
    %v239 = vsel %vm87, 0.0, %v237
    %v240 = vlaneseq
    %v241 = vshrl.u32 %v240, 7
    %s242 = sld [smem:[#allocation7]]
    %v243 = vstv %s242
    %v244 = vmul.f32 %v243, %v121
    %s245 = sld [smem:[#allocation7 + $0x10]]
    %v246 = vstv %s245
    %v247 = vmul.f32 %v246, %v109
    %v248 = vadd.f32 %v244, %v247
    %s249 = sld [smem:[#allocation7 + $0x20]]
    %v250 = vstv %s249
    %v251 = vmul.f32 %v250, %v125
    %v252 = vadd.f32 %v248, %v251
    %s253 = sld [smem:[#allocation7 + $0x1]]
    %v254 = vstv %s253
    %v255 = vmul.f32 %v254, %v159
    %s256 = sld [smem:[#allocation7 + $0x11]]
    %v257 = vstv %s256
    %v258 = vmul.f32 %v257, %v148
    %v259 = vadd.f32 %v255, %v258
    %s260 = sld [smem:[#allocation7 + $0x21]]
    %v261 = vstv %s260
    %v262 = vmul.f32 %v261, %v163
    %v263 = vadd.f32 %v259, %v262
    %v264 = vadd.f32 %v252, %v263
    %s265 = sld [smem:[#allocation7 + $0x2]]
    %v266 = vstv %s265
    %v267 = vmul.f32 %v266, %v197
    %s268 = sld [smem:[#allocation7 + $0x12]]
    %v269 = vstv %s268
    %v270 = vmul.f32 %v269, %v186
    %v271 = vadd.f32 %v267, %v270
    %s272 = sld [smem:[#allocation7 + $0x22]]
    %v273 = vstv %s272
    %v274 = vmul.f32 %v273, %v201
    %v275 = vadd.f32 %v271, %v274
    %v276 = vadd.f32 %v264, %v275
    %s277 = sld [smem:[#allocation7 + $0x3]]
    %v278 = vstv %s277
    %v279 = vmul.f32 %v278, %v235
    %s280 = sld [smem:[#allocation7 + $0x13]]
    %v281 = vstv %s280
    %v282 = vmul.f32 %v281, %v224
    %v283 = vadd.f32 %v279, %v282
    %s284 = sld [smem:[#allocation7 + $0x23]]
    %v285 = vstv %s284
    %v286 = vmul.f32 %v285, %v239
    %v287 = vadd.f32 %v283, %v286
    %v288 = vadd.f32 %v276, %v287
    %s289 = sld [smem:[#allocation9]]
    %v290 = vstv %s289
    %v291 = vadd.f32 %v288, %v290
    %vm292 = vcmask 58368
    %293 = vst.msk [vmem:[%s6] sm:$0x3] %vm292, %v291
    %v294 = vsel %vm292, %v291, 0.0
    %295 = vadd.xlane.f32.xlu0 %v294
    %v296 = vpop.xlane.xlu0 %295
    %v297 = vrot.slane %v296, 4
    %v298 = vadd.f32 %v296, %v297
    %v299 = vrot.slane %v298, 2
    %v300 = vadd.f32 %v298, %v299
    %v301 = vrot.slane %v300, 1
    %v302 = vadd.f32 %v300, %v301
    %s303 = vtos %v302
    %v304 = vmul.f32 %v291, %v291
    %v305 = vsel %vm292, %v304, 0.0
    %306 = vadd.xlane.f32.xlu0 %v305
    %v307 = vpop.xlane.xlu0 %306
    %v308 = vrot.slane %v307, 4
    %v309 = vadd.f32 %v307, %v308
    %v310 = vrot.slane %v309, 2
    %v311 = vadd.f32 %v309, %v310
    %v312 = vrot.slane %v311, 1
    %v313 = vadd.f32 %v311, %v312
    %s314 = vtos %v313
    %vm315 = vcmp.eq.s32.totalorder %v241, 0
    %vm316 = vmand %vm315, %vm86
    %v317 = vstv %s303
    %v318 = vsel %vm316, %v317, 0.0
    %vm319 = vcmp.eq.s32.totalorder %v241, 1
    %vm320 = vmand %vm319, %vm86
    %v321 = vstv %s314
    %v322 = vsel %vm320, %v321, %v318
    %s323 = sld [smem:[#allocation7 + $0x4]]
    %v324 = vstv %s323
    %v325 = vmul.f32 %v324, %v121
    %s326 = sld [smem:[#allocation7 + $0x14]]
    %v327 = vstv %s326
    %v328 = vmul.f32 %v327, %v109
    %v329 = vadd.f32 %v325, %v328
    %s330 = sld [smem:[#allocation7 + $0x24]]
    %v331 = vstv %s330
    %v332 = vmul.f32 %v331, %v125
    %v333 = vadd.f32 %v329, %v332
    %s334 = sld [smem:[#allocation7 + $0x5]]
    %v335 = vstv %s334
    %v336 = vmul.f32 %v335, %v159
    %s337 = sld [smem:[#allocation7 + $0x15]]
    %v338 = vstv %s337
    %v339 = vmul.f32 %v338, %v148
    %v340 = vadd.f32 %v336, %v339
    %s341 = sld [smem:[#allocation7 + $0x25]]
    %v342 = vstv %s341
    %v343 = vmul.f32 %v342, %v163
    %v344 = vadd.f32 %v340, %v343
    %v345 = vadd.f32 %v333, %v344
    %s346 = sld [smem:[#allocation7 + $0x6]]
    %v347 = vstv %s346
    %v348 = vmul.f32 %v347, %v197
    %s349 = sld [smem:[#allocation7 + $0x16]]
    %v350 = vstv %s349
    %v351 = vmul.f32 %v350, %v186
    %v352 = vadd.f32 %v348, %v351
    %s353 = sld [smem:[#allocation7 + $0x26]]
    %v354 = vstv %s353
    %v355 = vmul.f32 %v354, %v201
    %v356 = vadd.f32 %v352, %v355
    %v357 = vadd.f32 %v345, %v356
    %s358 = sld [smem:[#allocation7 + $0x7]]
    %v359 = vstv %s358
    %v360 = vmul.f32 %v359, %v235
    %s361 = sld [smem:[#allocation7 + $0x17]]
    %v362 = vstv %s361
    %v363 = vmul.f32 %v362, %v224
    %v364 = vadd.f32 %v360, %v363
    %s365 = sld [smem:[#allocation7 + $0x27]]
    %v366 = vstv %s365
    %v367 = vmul.f32 %v366, %v239
    %v368 = vadd.f32 %v364, %v367
    %v369 = vadd.f32 %v357, %v368
    %s370 = sld [smem:[#allocation9 + $0x1]]
    %v371 = vstv %s370
    %v372 = vadd.f32 %v369, %v371
    %s373 = scalar_lea.vmem %s6, 2
    %374 = vst.msk [vmem:[%s373] sm:$0x3] %vm292, %v372
    %v375 = vsel %vm292, %v372, 0.0
    %376 = vadd.xlane.f32.xlu0 %v375
    %v377 = vpop.xlane.xlu0 %376
    %v378 = vrot.slane %v377, 4
    %v379 = vadd.f32 %v377, %v378
    %v380 = vrot.slane %v379, 2
    %v381 = vadd.f32 %v379, %v380
    %v382 = vrot.slane %v381, 1
    %v383 = vadd.f32 %v381, %v382
    %s384 = vtos %v383
    %v385 = vmul.f32 %v372, %v372
    %v386 = vsel %vm292, %v385, 0.0
    %387 = vadd.xlane.f32.xlu0 %v386
    %v388 = vpop.xlane.xlu0 %387
    %v389 = vrot.slane %v388, 4
    %v390 = vadd.f32 %v388, %v389
    %v391 = vrot.slane %v390, 2
    %v392 = vadd.f32 %v390, %v391
    %v393 = vrot.slane %v392, 1
    %v394 = vadd.f32 %v392, %v393
    %s395 = vtos %v394
    %vm396 = vcmp.eq.s32.totalorder %v85, 1
    %vm397 = vmand %vm315, %vm396
    %v398 = vstv %s384
    %v399 = vsel %vm397, %v398, %v322
    %vm400 = vmand %vm319, %vm396
    %v401 = vstv %s395
    %v402 = vsel %vm400, %v401, %v399
    %s403 = sld [smem:[#allocation7 + $0x8]]
    %v404 = vstv %s403
    %v405 = vmul.f32 %v404, %v121
    %s406 = sld [smem:[#allocation7 + $0x18]]
    %v407 = vstv %s406
    %v408 = vmul.f32 %v407, %v109
    %v409 = vadd.f32 %v405, %v408
    %s410 = sld [smem:[#allocation7 + $0x28]]
    %v411 = vstv %s410
    %v412 = vmul.f32 %v411, %v125
    %v413 = vadd.f32 %v409, %v412
    %s414 = sld [smem:[#allocation7 + $0x9]]
    %v415 = vstv %s414
    %v416 = vmul.f32 %v415, %v159
    %s417 = sld [smem:[#allocation7 + $0x19]]
    %v418 = vstv %s417
    %v419 = vmul.f32 %v418, %v148
    %v420 = vadd.f32 %v416, %v419
    %s421 = sld [smem:[#allocation7 + $0x29]]
    %v422 = vstv %s421
    %v423 = vmul.f32 %v422, %v163
    %v424 = vadd.f32 %v420, %v423
    %v425 = vadd.f32 %v413, %v424
    %s426 = sld [smem:[#allocation7 + $0xa]]
    %v427 = vstv %s426
    %v428 = vmul.f32 %v427, %v197
    %s429 = sld [smem:[#allocation7 + $0x1a]]
    %v430 = vstv %s429
    %v431 = vmul.f32 %v430, %v186
    %v432 = vadd.f32 %v428, %v431
    %s433 = sld [smem:[#allocation7 + $0x2a]]
    %v434 = vstv %s433
    %v435 = vmul.f32 %v434, %v201
    %v436 = vadd.f32 %v432, %v435
    %v437 = vadd.f32 %v425, %v436
    %s438 = sld [smem:[#allocation7 + $0xb]]
    %v439 = vstv %s438
    %v440 = vmul.f32 %v439, %v235
    %s441 = sld [smem:[#allocation7 + $0x1b]]
    %v442 = vstv %s441
    %v443 = vmul.f32 %v442, %v224
    %v444 = vadd.f32 %v440, %v443
    %s445 = sld [smem:[#allocation7 + $0x2b]]
    %v446 = vstv %s445
    %v447 = vmul.f32 %v446, %v239
    %v448 = vadd.f32 %v444, %v447
    %v449 = vadd.f32 %v437, %v448
    %s450 = sld [smem:[#allocation9 + $0x2]]
    %v451 = vstv %s450
    %v452 = vadd.f32 %v449, %v451
    %s453 = scalar_lea.vmem %s6, 4
    %454 = vst.msk [vmem:[%s453] sm:$0x3] %vm292, %v452
    %v455 = vsel %vm292, %v452, 0.0
    %456 = vadd.xlane.f32.xlu0 %v455
    %v457 = vpop.xlane.xlu0 %456
    %v458 = vrot.slane %v457, 4
    %v459 = vadd.f32 %v457, %v458
    %v460 = vrot.slane %v459, 2
    %v461 = vadd.f32 %v459, %v460
    %v462 = vrot.slane %v461, 1
    %v463 = vadd.f32 %v461, %v462
    %s464 = vtos %v463
    %v465 = vmul.f32 %v452, %v452
    %v466 = vsel %vm292, %v465, 0.0
    %467 = vadd.xlane.f32.xlu0 %v466
    %v468 = vpop.xlane.xlu0 %467
    %v469 = vrot.slane %v468, 4
    %v470 = vadd.f32 %v468, %v469
    %v471 = vrot.slane %v470, 2
    %v472 = vadd.f32 %v470, %v471
    %v473 = vrot.slane %v472, 1
    %v474 = vadd.f32 %v472, %v473
    %s475 = vtos %v474
    %vm476 = vcmp.eq.s32.totalorder %v85, 2
    %vm477 = vmand %vm315, %vm476
    %v478 = vstv %s464
    %v479 = vsel %vm477, %v478, %v402
    %vm480 = vmand %vm319, %vm476
    %v481 = vstv %s475
    %v482 = vsel %vm480, %v481, %v479
    %s483 = sld [smem:[#allocation7 + $0xc]]
    %v484 = vstv %s483
    %v485 = vmul.f32 %v484, %v121
    %s486 = sld [smem:[#allocation7 + $0x1c]]
    %v487 = vstv %s486
    %v488 = vmul.f32 %v487, %v109
    %v489 = vadd.f32 %v485, %v488
    %s490 = sld [smem:[#allocation7 + $0x2c]]
    %v491 = vstv %s490
    %v492 = vmul.f32 %v491, %v125
    %v493 = vadd.f32 %v489, %v492
    %s494 = sld [smem:[#allocation7 + $0xd]]
    %v495 = vstv %s494
    %v496 = vmul.f32 %v495, %v159
    %s497 = sld [smem:[#allocation7 + $0x1d]]
    %v498 = vstv %s497
    %v499 = vmul.f32 %v498, %v148
    %v500 = vadd.f32 %v496, %v499
    %s501 = sld [smem:[#allocation7 + $0x2d]]
    %v502 = vstv %s501
    %v503 = vmul.f32 %v502, %v163
    %v504 = vadd.f32 %v500, %v503
    %v505 = vadd.f32 %v493, %v504
    %s506 = sld [smem:[#allocation7 + $0xe]]
    %v507 = vstv %s506
    %v508 = vmul.f32 %v507, %v197
    %s509 = sld [smem:[#allocation7 + $0x1e]]
    %v510 = vstv %s509
    %v511 = vmul.f32 %v510, %v186
    %v512 = vadd.f32 %v508, %v511
    %s513 = sld [smem:[#allocation7 + $0x2e]]
    %v514 = vstv %s513
    %v515 = vmul.f32 %v514, %v201
    %v516 = vadd.f32 %v512, %v515
    %v517 = vadd.f32 %v505, %v516
    %s518 = sld [smem:[#allocation7 + $0xf]]
    %v519 = vstv %s518
    %v520 = vmul.f32 %v519, %v235
    %s521 = sld [smem:[#allocation7 + $0x1f]]
    %v522 = vstv %s521
    %v523 = vmul.f32 %v522, %v224
    %v524 = vadd.f32 %v520, %v523
    %s525 = sld [smem:[#allocation7 + $0x2f]]
    %v526 = vstv %s525
    %v527 = vmul.f32 %v526, %v239
    %v528 = vadd.f32 %v524, %v527
    %v529 = vadd.f32 %v517, %v528
    %s530 = sld [smem:[#allocation9 + $0x3]]
    %v531 = vstv %s530
    %v532 = vadd.f32 %v529, %v531
    %s533 = scalar_lea.vmem %s6, 6
    %534 = vst.msk [vmem:[%s533] sm:$0x3] %vm292, %v532
    %v535 = vsel %vm292, %v532, 0.0
    %536 = vadd.xlane.f32.xlu0 %v535
    %v537 = vpop.xlane.xlu0 %536
    %v538 = vrot.slane %v537, 4
    %v539 = vadd.f32 %v537, %v538
    %v540 = vrot.slane %v539, 2
    %v541 = vadd.f32 %v539, %v540
    %v542 = vrot.slane %v541, 1
    %v543 = vadd.f32 %v541, %v542
    %s544 = vtos %v543
    %v545 = vmul.f32 %v532, %v532
    %v546 = vsel %vm292, %v545, 0.0
    %547 = vadd.xlane.f32.xlu0 %v546
    %v548 = vpop.xlane.xlu0 %547
    %v549 = vrot.slane %v548, 4
    %v550 = vadd.f32 %v548, %v549
    %v551 = vrot.slane %v550, 2
    %v552 = vadd.f32 %v550, %v551
    %v553 = vrot.slane %v552, 1
    %v554 = vadd.f32 %v552, %v553
    %s555 = vtos %v554
    %vm556 = vcmp.eq.s32.totalorder %v85, 3
    %vm557 = vmand %vm315, %vm556
    %v558 = vstv %s544
    %v559 = vsel %vm557, %v558, %v482
    %vm560 = vmand %vm319, %vm556
    %v561 = vstv %s555
    %v562 = vsel %vm560, %v561, %v559
    %vm563 = vcmask 25600
    %564 = vst.msk [vmem:[%s7] sm:$0x3] %vm563, %v562
    // Predicated region
    $region46: #{resblock_forward.4} parent=1 // pred_check
      _
    $region47: #{resblock_forward.4} parent=1 // pred_check_branch
      %566 = sbr.rel (0) target = $region49
    $region48: #{resblock_forward.4} parent=1 // pred_region
      _
    $region49: #{resblock_forward.4} parent=1 // pred_fallthru
      _
    // Predicated region
    $region50: #{resblock_forward.4} parent=1 // pred_check
      _
    $region51: #{resblock_forward.4} parent=1 // pred_check_branch
      %568 = sbr.rel (0) target = $region53
    $region52: #{resblock_forward.4} parent=1 // pred_region
      _
    $region53: #{resblock_forward.4} parent=1 // pred_fallthru
      _
    // Predicated region
    $region54: #{resblock_forward.4} parent=1 // pred_check
      _
    $region55: #{resblock_forward.4} parent=1 // pred_check_branch
      %570 = sbr.rel (0) target = $region57
    $region56: #{resblock_forward.4} parent=1 // pred_region
      _
    $region57: #{resblock_forward.4} parent=1 // pred_fallthru
      _
    // Predicated region
    $region58: #{resblock_forward.4} parent=1 // pred_check
      _
    $region59: #{resblock_forward.4} parent=1 // pred_check_branch
      %572 = sbr.rel (0) target = $region61
    $region60: #{resblock_forward.4} parent=1 // pred_region
      _
    $region61: #{resblock_forward.4} parent=1 // pred_fallthru
      _
    %573 = vsyncpa [#allocation3], 1
    %574 = vsyncpa [#allocation5], 1
    %575 = vsyncpa [#allocation8], 1

</llo_original>
